<compile_context>
chip_gen: v6e
topology: v6e:2x2x1
jax: 0.10.0
libtpu: 0.0.40
codegen_flags: <defaults>
</compile_context>

<pallas_src>
import functools

import jax
import jax.numpy as jnp
from jax.experimental import pallas as pl
from jax.experimental.pallas import tpu as pltpu

_PARAM_NAMES = ("fc1.weight", "fc1.bias", "fc2.weight", "fc2.bias")


def _round_up(a, b):
    return ((a + b - 1) // b) * b


def _num_parallel_splits():
    """2 on v7x (2 TensorCores/chip), 1 elsewhere."""
    try:
        kind = jax.devices()[0].device_kind.lower()
        if "v7" in kind or "7x" in kind:
            return 2
    except Exception:
        pass
    return 1


def _trace_fim_kernel(x_ref, g_ref, w1_ref, b1_ref, w2_ref, w2t_ref, b2_ref,
                      out_ref, *, n_total, tile_n, steps_per_split):
    p = pl.program_id(0)          # parallel split (TensorCore on v7x)
    i = pl.program_id(1)          # reduction step over the sample axis

    @pl.when(i == 0)
    def _init():
        out_ref[...] = jnp.zeros_like(out_ref)

    x = x_ref[...]                # [TN, D]  bf16 (streamed)
    g = g_ref[...]                # [TN, C]  f32  Gumbel noise (streamed)
    w1 = w1_ref[...]              # [D, H]   bf16 (VMEM resident)
    b1 = b1_ref[...]              # [1, H]   f32
    w2 = w2_ref[...]              # [H, C]   bf16
    w2t = w2t_ref[...]            # [C, H]   bf16 (pre-transposed)
    b2 = b2_ref[...]              # [1, C]   f32

    # ---- forward pass (bf16 MXU matmuls, f32 accumulation) ----
    h_pre = jnp.dot(x, w1, preferred_element_type=jnp.float32) + b1          # [TN, H]
    h = jnp.maximum(h_pre, 0.0)
    logits = jnp.dot(h.astype(jnp.bfloat16), w2,
                     preferred_element_type=jnp.float32) + b2                # [TN, C]

    # ---- softmax (f32); reciprocal folded directly into dlogits ----
    m = jnp.max(logits, axis=1, keepdims=True)
    e = jnp.exp(logits - m)
    inv_denom = 1.0 / jnp.sum(e, axis=1, keepdims=True)                      # [TN, 1]

    # ---- sample labels: Gumbel-max trick == multinomial over softmax ----
    c = logits.shape[1]
    scores = logits + g
    iota_c = jax.lax.broadcasted_iota(jnp.int32, scores.shape, 1)
    smax = jnp.max(scores, axis=1, keepdims=True)
    idx = jnp.min(jnp.where(scores >= smax, iota_c, c), axis=1, keepdims=True)
    onehot = (iota_c == idx).astype(jnp.float32)                             # [TN, C]

    # ---- backward pass (per-sample CE grads) ----
    dlogits = e * inv_denom - onehot                                         # [TN, C]
    dh = jnp.dot(dlogits.astype(jnp.bfloat16), w2t,
                 preferred_element_type=jnp.float32)                         # [TN, H]
    dh = dh * (h_pre > 0.0).astype(jnp.float32)

    # ---- per-sample squared-gradient traces (rank-1 identity) ----
    xf = x.astype(jnp.float32)
    sq_dlog = jnp.sum(dlogits * dlogits, axis=1, keepdims=True)              # [TN, 1]
    sq_dh = jnp.sum(dh * dh, axis=1, keepdims=True)
    sq_h = jnp.sum(h * h, axis=1, keepdims=True)
    sq_x = jnp.sum(xf * xf, axis=1, keepdims=True)

    # mask padded samples (last tile of the last split may extend past n_total)
    row = jax.lax.broadcasted_iota(jnp.int32, sq_dh.shape, 0)
    global_start = (p * steps_per_split + i) * tile_n
    valid = ((global_start + row) < n_total).astype(jnp.float32)             # [TN, 1]

    # four cheap scalar partial sums — no [TN,128] temp, no where-chain on it
    t_w1 = jnp.sum(sq_x * sq_dh * valid)      # ||dW1||^2
    t_b1 = jnp.sum(sq_dh * valid)             # ||db1||^2
    t_w2 = jnp.sum(sq_h * sq_dlog * valid)    # ||dW2||^2
    t_b2 = jnp.sum(sq_dlog * valid)           # ||db2||^2

    # scatter the 4 scalars onto lanes 0..3 of the resident (1,128) output block
    lane = jax.lax.broadcasted_iota(jnp.int32, out_ref.shape, 1)
    out_ref[...] += (jnp.where(lane == 0, t_w1, 0.0)
                     + jnp.where(lane == 1, t_b1, 0.0)
                     + jnp.where(lane == 2, t_w2, 0.0)
                     + jnp.where(lane == 3, t_b2, 0.0))

    @pl.when(i == pl.num_programs(1) - 1)
    def _finalize():
        out_ref[...] = out_ref[...] * (1.0 / n_total)        # fused mean


def trace_fim_mean_traces(x, w1, b1, w2, b2, gumbel, *, tile_n=None, max_tile_n=1024):
    """Mean-over-samples FIM traces; returns device array
    [fc1.weight, fc1.bias, fc2.weight, fc2.bias]."""
    n, d = x.shape
    hdim = w1.shape[1]
    c = w2.shape[1]

    n_splits = _num_parallel_splits()
    per_split = -(-n // n_splits)                 # samples handled per core
    if tile_n is None:
        # single grid step per core for small held-out sets, capped so all
        # [TN,128] f32 intermediates stay well under every gen's scoped VMEM
        tile_n = min(max_tile_n, _round_up(per_split, 8))
    tile_n = max(8, _round_up(int(tile_n), 8))

    steps_per_split = -(-per_split // tile_n)
    n_pad = n_splits * steps_per_split * tile_n
    if n_pad != n:
        x = jnp.pad(x, ((0, n_pad - n), (0, 0)))
        gumbel = jnp.pad(gumbel, ((0, n_pad - n), (0, 0)))

    x_bf = x.astype(jnp.bfloat16)
    w1_bf = w1.astype(jnp.bfloat16)
    w2_bf = w2.astype(jnp.bfloat16)
    w2t_bf = w2_bf.T                              # transpose once, outside the kernel
    b1_2d = b1.reshape(1, hdim).astype(jnp.float32)
    b2_2d = b2.reshape(1, c).astype(jnp.float32)
    g_f32 = gumbel.astype(jnp.float32)

    kernel = functools.partial(_trace_fim_kernel, n_total=n, tile_n=tile_n,
                               steps_per_split=steps_per_split)

    out = pl.pallas_call(
        kernel,
        out_shape=jax.ShapeDtypeStruct((n_splits, 128), jnp.float32),
        grid_spec=pltpu.PrefetchScalarGridSpec(
            num_scalar_prefetch=0,
            grid=(n_splits, steps_per_split),
            in_specs=[
                pl.BlockSpec((tile_n, d),
                             lambda p, i: (p * steps_per_split + i, 0)),   # x (streamed)
                pl.BlockSpec((tile_n, c),
                             lambda p, i: (p * steps_per_split + i, 0)),   # Gumbel noise
                pl.BlockSpec((d, hdim), lambda p, i: (0, 0)),              # W1 (resident)
                pl.BlockSpec((1, hdim), lambda p, i: (0, 0)),              # b1
                pl.BlockSpec((hdim, c), lambda p, i: (0, 0)),              # W2
                pl.BlockSpec((c, hdim), lambda p, i: (0, 0)),              # W2^T
                pl.BlockSpec((1, c), lambda p, i: (0, 0)),                 # b2
            ],
            # one accumulator row per parallel split; resident across the
            # reduction axis (i) -> no separate VMEM scratch needed
            out_specs=pl.BlockSpec((1, 128), lambda p, i: (p, 0)),
        ),
        compiler_params=pltpu.CompilerParams(
            dimension_semantics=("parallel", "arbitrary"),
            vmem_limit_bytes=32 * 1024 * 1024,    # explicit; covers v5e's 16 MiB default
        ),
    )(x_bf, g_f32, w1_bf, b1_2d, w2_bf, w2t_bf, b2_2d)

    # each row was already scaled by 1/n_total in-kernel; summing the per-core
    # rows completes the mean (trivial on 1-TC chips where n_splits == 1)
    return jnp.sum(out, axis=0)[:4]


def trace_fim_forward(x_held_out, params, step, key):
    """Equivalent of TraceFIM.forward(step): returns the evaluators dict."""
    n = x_held_out.shape[0]
    c = params["fc2.weight"].shape[1]
    # Fresh Gumbel noise per call == torch.multinomial's 'different' randomness.
    gumbel = jax.random.gumbel(key, (n, c), dtype=jnp.float32)

    means = trace_fim_mean_traces(
        x_held_out,
        params["fc1.weight"], params["fc1.bias"],
        params["fc2.weight"], params["fc2.bias"],
        gumbel,
    )
    # Host sync happens only here, at logging time; training loops that don't
    # need the values immediately should call trace_fim_mean_traces directly.
    vals = jax.device_get(jax.block_until_ready(means))

    evaluators = {}
    overall = 0.0
    for name, v in zip(_PARAM_NAMES, vals):
        v = float(v)
        evaluators[f"trace_fim/{name}"] = v
        overall += v                        # every MLP param is penalized
    evaluators["trace_fim/overall_trace"] = overall
    evaluators["steps/trace_fim"] = step
    # TODO(synk): self.logger.log_scalars and model.eval()/train() toggles have
    # no Pallas equivalent; the evaluators dict is simply returned.
    return evaluators


if __name__ == "__main__":
    N, D, H, C = 256, 128, 128, 10   # held-out samples, features, hidden, classes

    key = jax.random.PRNGKey(0)
    kx, k1, k2, k3, k4, ks = jax.random.split(key, 6)

    x_held_out = jax.random.normal(kx, (N, D), dtype=jnp.float32)
    params = {
        "fc1.weight": jax.random.normal(k1, (D, H), dtype=jnp.float32) / jnp.sqrt(D),
        "fc1.bias": jax.random.normal(k2, (H,), dtype=jnp.float32) * 0.01,
        "fc2.weight": jax.random.normal(k3, (H, C), dtype=jnp.float32) / jnp.sqrt(H),
        "fc2.bias": jax.random.normal(k4, (C,), dtype=jnp.float32) * 0.01,
    }

    evaluators = trace_fim_forward(x_held_out, params, step=0, key=ks)
    for k, v in evaluators.items():
        print(f"{k}: {v}")
    print("KERNEL_OK")
</pallas_src>

<mosaic_0001>
module attributes {stable_mosaic.version = 11 : i64} {
  func.func @_trace_fim_kernel(%arg0: i32, %arg1: i32, %arg2: memref<256x128xbf16, #tpu.memory_space<vmem>>, %arg3: memref<256x10xf32, #tpu.memory_space<vmem>>, %arg4: memref<128x128xbf16, #tpu.memory_space<vmem>>, %arg5: memref<1x128xf32, #tpu.memory_space<vmem>>, %arg6: memref<128x10xbf16, #tpu.memory_space<vmem>>, %arg7: memref<10x128xbf16, #tpu.memory_space<vmem>>, %arg8: memref<1x10xf32, #tpu.memory_space<vmem>>, %arg9: memref<1x128xf32, #tpu.memory_space<vmem>>) attributes {dimension_semantics = [#tpu.dimension_semantics<parallel>, #tpu.dimension_semantics<arbitrary>], iteration_bounds = array<i64: 1, 1>, scalar_prefetch = 0 : i64, scratch_operands = 0 : i64, tpu.core_type = #tpu.core_type<tc>, window_params = [{transform_indices = @transform_0, window_bounds = array<i64: 256, 128>}, {transform_indices = @transform_1, window_bounds = array<i64: 256, 10>}, {pipeline_mode = #tpu.pipeline_mode<synchronous>, transform_indices = @transform_2, window_bounds = array<i64: 128, 128>}, {pipeline_mode = #tpu.pipeline_mode<synchronous>, transform_indices = @transform_3, window_bounds = array<i64: 1, 128>}, {pipeline_mode = #tpu.pipeline_mode<synchronous>, transform_indices = @transform_4, window_bounds = array<i64: 128, 10>}, {pipeline_mode = #tpu.pipeline_mode<synchronous>, transform_indices = @transform_5, window_bounds = array<i64: 10, 128>}, {pipeline_mode = #tpu.pipeline_mode<synchronous>, transform_indices = @transform_6, window_bounds = array<i64: 1, 10>}, {transform_indices = @transform_7, window_bounds = array<i64: 1, 128>}]} {
    %c0_i32 = arith.constant 0 : i32
    %0 = arith.cmpi eq, %arg1, %c0_i32 : i32
    %1 = arith.extui %0 : i1 to i32
    %c0_i32_0 = arith.constant 0 : i32
    %2 = arith.cmpi ne, %1, %c0_i32_0 : i32
    scf.if %2 {
      %cst_44 = arith.constant 0.000000e+00 : f32
      %127 = vector.broadcast %cst_44 : f32 to vector<1x128xf32>
      %c0_45 = arith.constant 0 : index
      %c0_46 = arith.constant 0 : index
      %128 = vector.load %arg9[%c0_45, %c0_46] : memref<1x128xf32, #tpu.memory_space<vmem>>, vector<1x128xf32>
      tpu.vector_store %arg9[%c0_45, %c0_46], %127 {strides = array<i32>} : memref<1x128xf32, #tpu.memory_space<vmem>>, vector<1x128xf32>,
    } else {
    }
    %c0 = arith.constant 0 : index
    %c0_1 = arith.constant 0 : index
    %3 = vector.load %arg2[%c0, %c0_1] : memref<256x128xbf16, #tpu.memory_space<vmem>>, vector<256x128xbf16>
    %c0_2 = arith.constant 0 : index
    %c0_3 = arith.constant 0 : index
    %4 = vector.load %arg3[%c0_2, %c0_3] : memref<256x10xf32, #tpu.memory_space<vmem>>, vector<256x10xf32>
    %c0_4 = arith.constant 0 : index
    %c0_5 = arith.constant 0 : index
    %5 = vector.load %arg4[%c0_4, %c0_5] : memref<128x128xbf16, #tpu.memory_space<vmem>>, vector<128x128xbf16>
    %c0_6 = arith.constant 0 : index
    %c0_7 = arith.constant 0 : index
    %6 = vector.load %arg5[%c0_6, %c0_7] : memref<1x128xf32, #tpu.memory_space<vmem>>, vector<1x128xf32>
    %c0_8 = arith.constant 0 : index
    %c0_9 = arith.constant 0 : index
    %7 = vector.load %arg6[%c0_8, %c0_9] : memref<128x10xbf16, #tpu.memory_space<vmem>>, vector<128x10xbf16>
    %c0_10 = arith.constant 0 : index
    %c0_11 = arith.constant 0 : index
    %8 = vector.load %arg7[%c0_10, %c0_11] : memref<10x128xbf16, #tpu.memory_space<vmem>>, vector<10x128xbf16>
    %c0_12 = arith.constant 0 : index
    %c0_13 = arith.constant 0 : index
    %9 = vector.load %arg8[%c0_12, %c0_13] : memref<1x10xf32, #tpu.memory_space<vmem>>, vector<1x10xf32>
    %cst = arith.constant dense<0.000000e+00> : vector<256x128xf32>
    %10 = tpu.matmul %3, %5, %cst {dimension_numbers = #tpu.dot_dimension_numbers<[1], [0], [0], [1], [0, 0, 1, 1], [], []>} : vector<256x128xbf16>, vector<128x128xbf16>, vector<256x128xf32> -> vector<256x128xf32>
    %11 = vector.broadcast %6 : vector<1x128xf32> to vector<256x128xf32>
    %12 = arith.addf %10, %11 : vector<256x128xf32>
    %cst_14 = arith.constant 0.000000e+00 : f32
    %13 = vector.broadcast %cst_14 : f32 to vector<256x128xf32>
    %14 = arith.maximumf %12, %13 : vector<256x128xf32>
    %15 = arith.truncf %14 : vector<256x128xf32> to vector<256x128xbf16>
    %cst_15 = arith.constant dense<0.000000e+00> : vector<256x10xf32>
    %16 = tpu.matmul %15, %7, %cst_15 {dimension_numbers = #tpu.dot_dimension_numbers<[1], [0], [0], [1], [0, 0, 1, 1], [], []>} : vector<256x128xbf16>, vector<128x10xbf16>, vector<256x10xf32> -> vector<256x10xf32>
    %17 = vector.broadcast %9 : vector<1x10xf32> to vector<256x10xf32>
    %18 = arith.addf %16, %17 : vector<256x10xf32>
    %cst_16 = arith.constant dense<0xFF800000> : vector<256xf32>
    %19 = vector.multi_reduction <maximumf>, %18, %cst_16 [1] : vector<256x10xf32> to vector<256xf32>
    %20 = vector.shape_cast %19 : vector<256xf32> to vector<256x1xf32>
    %21 = vector.broadcast %20 : vector<256x1xf32> to vector<256x10xf32>
    %22 = arith.subf %18, %21 : vector<256x10xf32>
    %23 = math.exp %22 : vector<256x10xf32>
    %cst_17 = arith.constant dense<0.000000e+00> : vector<256xf32>
    %24 = vector.multi_reduction <add>, %23, %cst_17 [1] : vector<256x10xf32> to vector<256xf32>
    %25 = vector.shape_cast %24 : vector<256xf32> to vector<256x1xf32>
    %cst_18 = arith.constant 1.000000e+00 : f32
    %26 = vector.broadcast %cst_18 : f32 to vector<256x1xf32>
    %27 = arith.divf %26, %25 : vector<256x1xf32>
    %28 = arith.addf %18, %4 : vector<256x10xf32>
    %29 = tpu.iota {dimensions = array<i32: 1>} : vector<256x10xi32>
    %cst_19 = arith.constant dense<0xFF800000> : vector<256xf32>
    %30 = vector.multi_reduction <maximumf>, %28, %cst_19 [1] : vector<256x10xf32> to vector<256xf32>
    %31 = vector.shape_cast %30 : vector<256xf32> to vector<256x1xf32>
    %32 = vector.broadcast %31 : vector<256x1xf32> to vector<256x10xf32>
    %33 = arith.cmpf oge, %28, %32 : vector<256x10xf32>
    %c10_i32 = arith.constant 10 : i32
    %34 = vector.broadcast %c10_i32 : i32 to vector<256x10xi32>
    %35 = arith.select %33, %29, %34 : vector<256x10xi1>, vector<256x10xi32>
    %cst_20 = arith.constant dense<2147483647> : vector<256xi32>
    %36 = vector.multi_reduction <minsi>, %35, %cst_20 [1] : vector<256x10xi32> to vector<256xi32>
    %37 = vector.shape_cast %36 : vector<256xi32> to vector<256x1xi32>
    %38 = vector.broadcast %37 : vector<256x1xi32> to vector<256x10xi32>
    %39 = arith.cmpi eq, %29, %38 : vector<256x10xi32>
    %40 = arith.extui %39 : vector<256x10xi1> to vector<256x10xi32>
    %41 = arith.sitofp %40 : vector<256x10xi32> to vector<256x10xf32>
    %42 = vector.broadcast %27 : vector<256x1xf32> to vector<256x10xf32>
    %43 = arith.mulf %23, %42 : vector<256x10xf32>
    %44 = arith.subf %43, %41 : vector<256x10xf32>
    %45 = arith.truncf %44 : vector<256x10xf32> to vector<256x10xbf16>
    %cst_21 = arith.constant dense<0.000000e+00> : vector<256x128xf32>
    %46 = tpu.matmul %45, %8, %cst_21 {dimension_numbers = #tpu.dot_dimension_numbers<[1], [0], [0], [1], [0, 0, 1, 1], [], []>} : vector<256x10xbf16>, vector<10x128xbf16>, vector<256x128xf32> -> vector<256x128xf32>
    %cst_22 = arith.constant 0.000000e+00 : f32
    %47 = vector.broadcast %cst_22 : f32 to vector<256x128xf32>
    %48 = arith.cmpf ogt, %12, %47 : vector<256x128xf32>
    %49 = arith.extui %48 : vector<256x128xi1> to vector<256x128xi32>
    %50 = arith.sitofp %49 : vector<256x128xi32> to vector<256x128xf32>
    %51 = arith.mulf %46, %50 : vector<256x128xf32>
    %52 = arith.extf %3 : vector<256x128xbf16> to vector<256x128xf32>
    %53 = arith.mulf %44, %44 : vector<256x10xf32>
    %cst_23 = arith.constant dense<0.000000e+00> : vector<256xf32>
    %54 = vector.multi_reduction <add>, %53, %cst_23 [1] : vector<256x10xf32> to vector<256xf32>
    %55 = vector.shape_cast %54 : vector<256xf32> to vector<256x1xf32>
    %56 = arith.mulf %51, %51 : vector<256x128xf32>
    %cst_24 = arith.constant dense<0.000000e+00> : vector<256xf32>
    %57 = vector.multi_reduction <add>, %56, %cst_24 [1] : vector<256x128xf32> to vector<256xf32>
    %58 = vector.shape_cast %57 : vector<256xf32> to vector<256x1xf32>
    %59 = arith.mulf %14, %14 : vector<256x128xf32>
    %cst_25 = arith.constant dense<0.000000e+00> : vector<256xf32>
    %60 = vector.multi_reduction <add>, %59, %cst_25 [1] : vector<256x128xf32> to vector<256xf32>
    %61 = vector.shape_cast %60 : vector<256xf32> to vector<256x1xf32>
    %62 = arith.mulf %52, %52 : vector<256x128xf32>
    %cst_26 = arith.constant dense<0.000000e+00> : vector<256xf32>
    %63 = vector.multi_reduction <add>, %62, %cst_26 [1] : vector<256x128xf32> to vector<256xf32>
    %64 = vector.shape_cast %63 : vector<256xf32> to vector<256x1xf32>
    %65 = tpu.iota {dimensions = array<i32: 0>} : vector<256x1xi32>
    %c1_i32 = arith.constant 1 : i32
    %66 = arith.muli %arg0, %c1_i32 : i32
    %67 = arith.addi %66, %arg1 : i32
    %c256_i32 = arith.constant 256 : i32
    %68 = arith.muli %67, %c256_i32 : i32
    %69 = vector.broadcast %68 : i32 to vector<256x1xi32>
    %70 = arith.addi %69, %65 : vector<256x1xi32>
    %c256_i32_27 = arith.constant 256 : i32
    %71 = vector.broadcast %c256_i32_27 : i32 to vector<256x1xi32>
    %72 = arith.cmpi slt, %70, %71 : vector<256x1xi32>
    %73 = arith.extui %72 : vector<256x1xi1> to vector<256x1xi32>
    %74 = arith.sitofp %73 : vector<256x1xi32> to vector<256x1xf32>
    %75 = arith.mulf %64, %58 : vector<256x1xf32>
    %76 = arith.mulf %75, %74 : vector<256x1xf32>
    %77 = vector.shape_cast %76 : vector<256x1xf32> to vector<1x256x1xf32>
    %cst_28 = arith.constant dense<0.000000e+00> : vector<1xf32>
    %78 = vector.multi_reduction <add>, %77, %cst_28 [1, 2] : vector<1x256x1xf32> to vector<1xf32>
    %79 = vector.shape_cast %78 : vector<1xf32> to vector<1x1x1xf32>
    %80 = vector.extract %79[0, 0, 0] : f32 from vector<1x1x1xf32>
    %81 = arith.mulf %58, %74 : vector<256x1xf32>
    %82 = vector.shape_cast %81 : vector<256x1xf32> to vector<1x256x1xf32>
    %cst_29 = arith.constant dense<0.000000e+00> : vector<1xf32>
    %83 = vector.multi_reduction <add>, %82, %cst_29 [1, 2] : vector<1x256x1xf32> to vector<1xf32>
    %84 = vector.shape_cast %83 : vector<1xf32> to vector<1x1x1xf32>
    %85 = vector.extract %84[0, 0, 0] : f32 from vector<1x1x1xf32>
    %86 = arith.mulf %61, %55 : vector<256x1xf32>
    %87 = arith.mulf %86, %74 : vector<256x1xf32>
    %88 = vector.shape_cast %87 : vector<256x1xf32> to vector<1x256x1xf32>
    %cst_30 = arith.constant dense<0.000000e+00> : vector<1xf32>
    %89 = vector.multi_reduction <add>, %88, %cst_30 [1, 2] : vector<1x256x1xf32> to vector<1xf32>
    %90 = vector.shape_cast %89 : vector<1xf32> to vector<1x1x1xf32>
    %91 = vector.extract %90[0, 0, 0] : f32 from vector<1x1x1xf32>
    %92 = arith.mulf %55, %74 : vector<256x1xf32>
    %93 = vector.shape_cast %92 : vector<256x1xf32> to vector<1x256x1xf32>
    %cst_31 = arith.constant dense<0.000000e+00> : vector<1xf32>
    %94 = vector.multi_reduction <add>, %93, %cst_31 [1, 2] : vector<1x256x1xf32> to vector<1xf32>
    %95 = vector.shape_cast %94 : vector<1xf32> to vector<1x1x1xf32>
    %96 = vector.extract %95[0, 0, 0] : f32 from vector<1x1x1xf32>
    %97 = tpu.iota {dimensions = array<i32: 1>} : vector<1x128xi32>
    %c0_32 = arith.constant 0 : index
    %c0_33 = arith.constant 0 : index
    %98 = vector.load %arg9[%c0_32, %c0_33] : memref<1x128xf32, #tpu.memory_space<vmem>>, vector<1x128xf32>
    %c0_i32_34 = arith.constant 0 : i32
    %99 = vector.broadcast %c0_i32_34 : i32 to vector<1x128xi32>
    %100 = arith.cmpi eq, %97, %99 : vector<1x128xi32>
    %cst_35 = arith.constant 0.000000e+00 : f32
    %101 = vector.broadcast %80 : f32 to vector<1x128xf32>
    %102 = vector.broadcast %cst_35 : f32 to vector<1x128xf32>
    %103 = arith.select %100, %101, %102 : vector<1x128xi1>, vector<1x128xf32>
    %c1_i32_36 = arith.constant 1 : i32
    %104 = vector.broadcast %c1_i32_36 : i32 to vector<1x128xi32>
    %105 = arith.cmpi eq, %97, %104 : vector<1x128xi32>
    %cst_37 = arith.constant 0.000000e+00 : f32
    %106 = vector.broadcast %85 : f32 to vector<1x128xf32>
    %107 = vector.broadcast %cst_37 : f32 to vector<1x128xf32>
    %108 = arith.select %105, %106, %107 : vector<1x128xi1>, vector<1x128xf32>
    %109 = arith.addf %103, %108 : vector<1x128xf32>
    %c2_i32 = arith.constant 2 : i32
    %110 = vector.broadcast %c2_i32 : i32 to vector<1x128xi32>
    %111 = arith.cmpi eq, %97, %110 : vector<1x128xi32>
    %cst_38 = arith.constant 0.000000e+00 : f32
    %112 = vector.broadcast %91 : f32 to vector<1x128xf32>
    %113 = vector.broadcast %cst_38 : f32 to vector<1x128xf32>
    %114 = arith.select %111, %112, %113 : vector<1x128xi1>, vector<1x128xf32>
    %115 = arith.addf %109, %114 : vector<1x128xf32>
    %c3_i32 = arith.constant 3 : i32
    %116 = vector.broadcast %c3_i32 : i32 to vector<1x128xi32>
    %117 = arith.cmpi eq, %97, %116 : vector<1x128xi32>
    %cst_39 = arith.constant 0.000000e+00 : f32
    %118 = vector.broadcast %96 : f32 to vector<1x128xf32>
    %119 = vector.broadcast %cst_39 : f32 to vector<1x128xf32>
    %120 = arith.select %117, %118, %119 : vector<1x128xi1>, vector<1x128xf32>
    %121 = arith.addf %115, %120 : vector<1x128xf32>
    %122 = arith.addf %98, %121 : vector<1x128xf32>
    %c0_40 = arith.constant 0 : index
    %c0_41 = arith.constant 0 : index
    %123 = vector.load %arg9[%c0_40, %c0_41] : memref<1x128xf32, #tpu.memory_space<vmem>>, vector<1x128xf32>
    tpu.vector_store %arg9[%c0_40, %c0_41], %122 {strides = array<i32>} : memref<1x128xf32, #tpu.memory_space<vmem>>, vector<1x128xf32>,
    %c0_i32_42 = arith.constant 0 : i32
    %124 = arith.cmpi eq, %arg1, %c0_i32_42 : i32
    %125 = arith.extui %124 : i1 to i32
    %c0_i32_43 = arith.constant 0 : i32
    %126 = arith.cmpi ne, %125, %c0_i32_43 : i32
    scf.if %126 {
      %c0_44 = arith.constant 0 : index
      %c0_45 = arith.constant 0 : index
      %127 = vector.load %arg9[%c0_44, %c0_45] : memref<1x128xf32, #tpu.memory_space<vmem>>, vector<1x128xf32>
      %cst_46 = arith.constant 3.906250e-03 : f32
      %128 = vector.broadcast %cst_46 : f32 to vector<1x128xf32>
      %129 = arith.mulf %127, %128 : vector<1x128xf32>
      %c0_47 = arith.constant 0 : index
      %c0_48 = arith.constant 0 : index
      %130 = vector.load %arg9[%c0_47, %c0_48] : memref<1x128xf32, #tpu.memory_space<vmem>>, vector<1x128xf32>
      tpu.vector_store %arg9[%c0_47, %c0_48], %129 {strides = array<i32>} : memref<1x128xf32, #tpu.memory_space<vmem>>, vector<1x128xf32>,
    } else {
    }
    return
  }
  func.func @transform_0(%arg0: i32, %arg1: i32) -> (i32, i32) {
    %c1_i32 = arith.constant 1 : i32
    %0 = arith.muli %arg0, %c1_i32 : i32
    %1 = arith.addi %0, %arg1 : i32
    %c0_i32 = arith.constant 0 : i32
    %c0_i32_0 = arith.constant 0 : i32
    return %1, %c0_i32 : i32, i32
  }
  func.func @transform_1(%arg0: i32, %arg1: i32) -> (i32, i32) {
    %c1_i32 = arith.constant 1 : i32
    %0 = arith.muli %arg0, %c1_i32 : i32
    %1 = arith.addi %0, %arg1 : i32
    %c0_i32 = arith.constant 0 : i32
    %c0_i32_0 = arith.constant 0 : i32
    return %1, %c0_i32 : i32, i32
  }
  func.func @transform_2(%arg0: i32, %arg1: i32) -> (i32, i32) {
    %c0_i32 = arith.constant 0 : i32
    %c0_i32_0 = arith.constant 0 : i32
    %c0_i32_1 = arith.constant 0 : i32
    return %c0_i32, %c0_i32_0 : i32, i32
  }
  func.func @transform_3(%arg0: i32, %arg1: i32) -> (i32, i32) {
    %c0_i32 = arith.constant 0 : i32
    %c0_i32_0 = arith.constant 0 : i32
    %c0_i32_1 = arith.constant 0 : i32
    return %c0_i32, %c0_i32_0 : i32, i32
  }
  func.func @transform_4(%arg0: i32, %arg1: i32) -> (i32, i32) {
    %c0_i32 = arith.constant 0 : i32
    %c0_i32_0 = arith.constant 0 : i32
    %c0_i32_1 = arith.constant 0 : i32
    return %c0_i32, %c0_i32_0 : i32, i32
  }
  func.func @transform_5(%arg0: i32, %arg1: i32) -> (i32, i32) {
    %c0_i32 = arith.constant 0 : i32
    %c0_i32_0 = arith.constant 0 : i32
    %c0_i32_1 = arith.constant 0 : i32
    return %c0_i32, %c0_i32_0 : i32, i32
  }
  func.func @transform_6(%arg0: i32, %arg1: i32) -> (i32, i32) {
    %c0_i32 = arith.constant 0 : i32
    %c0_i32_0 = arith.constant 0 : i32
    %c0_i32_1 = arith.constant 0 : i32
    return %c0_i32, %c0_i32_0 : i32, i32
  }
  func.func @transform_7(%arg0: i32, %arg1: i32) -> (i32, i32) {
    %c0_i32 = arith.constant 0 : i32
    %c0_i32_0 = arith.constant 0 : i32
    return %arg0, %c0_i32 : i32, i32
  }
}

</mosaic_0001>

<llo_original>
// kernel: tpu_custom_call.1
$region0: #{tpu_custom_call.1}
  #allocation0 [shape = 'u32[]', space=smem, size = 0x4, offset = 0x4, fixed_abs, tag = 'smem constant byte address 0x4 - core index']
  #allocation1 [shape = 'u32[144,128]{1,0:T(1,128)}', space=vmem, size = 0x12000, scoped, tag = 'internal scratch']
  %s0 = inlined_call_operand.vmem [shape: bf16[256,128], index: 0, kind: input, shape index: {}]
  %s1 = inlined_call_operand.vmem [shape: f32[256,10], index: 1, kind: input, shape index: {}]
  %s2 = inlined_call_operand.vmem [shape: bf16[128,128], index: 2, kind: input, shape index: {}]
  %s3 = inlined_call_operand.vmem [shape: f32[1,128], index: 3, kind: input, shape index: {}]
  %s4 = inlined_call_operand.vmem [shape: bf16[128,10], index: 4, kind: input, shape index: {}]
  %s5 = inlined_call_operand.vmem [shape: bf16[10,128], index: 5, kind: input, shape index: {}]
  %s6 = inlined_call_operand.vmem [shape: f32[1,10], index: 6, kind: input, shape index: {}]
  %s7 = inlined_call_operand.hbm [shape: f32[1,128], index: 7, kind: output, shape index: {}]
  %s8 = sld [smem:[#allocation0]]
  $region46: #{tpu_custom_call.1} parent=0
    _
  %s10 = ssub.s32 1, %s8
  %s11 = scalar_select 0, %s10, %s8
  $region1: #{tpu_custom_call.1} parent=0
    #allocation2 [shape = 'u8[512]{0}', space=vmem, size = 0x400, scoped, tag = 'output window, operand 0, single buffered']
    #allocation3 [shape = 's32[1]{0}', space=sflag, size = 0x4, scoped, tag = 'scoped memory for tpu_custom_call.1']
    %12 = vsyncpa [#allocation3], 0
    // Predicated region
    $region2: #{tpu_custom_call.1} parent=1 // pred_check
      _
    $region3: #{tpu_custom_call.1} parent=1 // pred_check_branch
      %14 = sbr.rel (0) target = $region5
    $region4: #{tpu_custom_call.1} parent=1 // pred_region
      %s15 = sadd.s32 0, 0
      %s16 = smul.u32 32, %s15
      %p17 = scmp.lt.s32.totalorder %s16, 31
      %s18 = scalar_select %p17, %s16, 31
      %s19 = smul.addr %s18, 4
      %s20 = scalar_lea.vmem %s0, %s19
      %s21 = sadd.s32 0, 0
      %s22 = smul.u32 32, %s21
    $region5: #{tpu_custom_call.1} parent=1 // pred_fallthru
      _
    // Predicated region
    $region6: #{tpu_custom_call.1} parent=1 // pred_check
      _
    $region7: #{tpu_custom_call.1} parent=1 // pred_check_branch
      %24 = sbr.rel (0) target = $region9
    $region8: #{tpu_custom_call.1} parent=1 // pred_region
      %s25 = sadd.s32 0, 0
      %s26 = smul.u32 32, %s25
      %p27 = scmp.lt.s32.totalorder %s26, 31
      %s28 = scalar_select %p27, %s26, 31
      %s29 = smul.addr %s28, 8
      %s30 = scalar_lea.vmem %s1, %s29
      %s31 = sadd.s32 0, 0
      %s32 = smul.u32 32, %s31
    $region9: #{tpu_custom_call.1} parent=1 // pred_fallthru
      _
    // Predicated region
    $region10: #{tpu_custom_call.1} parent=1 // pred_check
      _
    $region11: #{tpu_custom_call.1} parent=1 // pred_check_branch
      %34 = sbr.rel (0) target = $region13
    $region12: #{tpu_custom_call.1} parent=1 // pred_region
      _
    $region13: #{tpu_custom_call.1} parent=1 // pred_fallthru
      _
    // Predicated region
    $region14: #{tpu_custom_call.1} parent=1 // pred_check
      _
    $region15: #{tpu_custom_call.1} parent=1 // pred_check_branch
      %36 = sbr.rel (0) target = $region17
    $region16: #{tpu_custom_call.1} parent=1 // pred_region
      _
    $region17: #{tpu_custom_call.1} parent=1 // pred_fallthru
      _
    // Predicated region
    $region18: #{tpu_custom_call.1} parent=1 // pred_check
      _
    $region19: #{tpu_custom_call.1} parent=1 // pred_check_branch
      %38 = sbr.rel (0) target = $region21
    $region20: #{tpu_custom_call.1} parent=1 // pred_region
      _
    $region21: #{tpu_custom_call.1} parent=1 // pred_fallthru
      _
    // Predicated region
    $region22: #{tpu_custom_call.1} parent=1 // pred_check
      _
    $region23: #{tpu_custom_call.1} parent=1 // pred_check_branch
      %40 = sbr.rel (0) target = $region25
    $region24: #{tpu_custom_call.1} parent=1 // pred_region
      _
    $region25: #{tpu_custom_call.1} parent=1 // pred_fallthru
      _
    // Predicated region
    $region26: #{tpu_custom_call.1} parent=1 // pred_check
      _
    $region27: #{tpu_custom_call.1} parent=1 // pred_check_branch
      %42 = sbr.rel (0) target = $region29
    $region28: #{tpu_custom_call.1} parent=1 // pred_region
      _
    $region29: #{tpu_custom_call.1} parent=1 // pred_fallthru
      _
    %s43 = sadd.s32 0, 0
    %s44 = smul.u32 32, %s43
    %p45 = scmp.lt.s32.totalorder %s44, 31
    %s46 = scalar_select %p45, %s44, 31
    %s47 = smul.addr %s46, 4
    %s48 = scalar_lea.vmem %s0, %s47
    %s49 = sadd.s32 0, 0
    %s50 = smul.u32 32, %s49
    %p51 = scmp.lt.s32.totalorder %s50, 31
    %s52 = scalar_select %p51, %s50, 31
    %s53 = smul.addr %s52, 8
    %s54 = scalar_lea.vmem %s1, %s53
    %s55 = sadd.s32 0, 0
    %s56 = smul.u32 32, %s55
    %p57 = scmp.lt.s32.totalorder %s56, 31
    %s58 = scalar_select %p57, %s56, 31
    %s59 = smul.addr %s58, 4
    %s60 = scalar_lea.vmem %s0, %s59
    %s61 = sadd.s32 0, 0
    %s62 = smul.u32 32, %s61
    %s63 = sadd.s32 0, 0
    %s64 = smul.u32 32, %s63
    %p65 = scmp.lt.s32.totalorder %s64, 31
    %s66 = scalar_select %p65, %s64, 31
    %s67 = smul.addr %s66, 8
    %s68 = scalar_lea.vmem %s1, %s67
    %s69 = sadd.s32 0, 0
    %s70 = smul.u32 32, %s69
    %p72 = scmp.eq.s32.totalorder 0, 0
    // Predicated region
    $region30: #{tpu_custom_call.1} parent=1 // pred_check
      %p73 = pneg %p72
    $region31: #{tpu_custom_call.1} parent=1 // pred_check_branch
      %75 = sbr.rel (%p73) target = $region33
    $region32: #{tpu_custom_call.1} parent=1 // pred_region
      %76 = vst [vmem:[#allocation2] sm:$0x1] 0.0
    $region33: #{tpu_custom_call.1} parent=1 // pred_fallthru
      _
    %v77 = vld [vmem:[%s60] sm:$0xf]
    %v78 = vld [vmem:[%s60 + $0x4] sm:$0xf]
    %v79 = vld [vmem:[%s60 + $0x8] sm:$0xf]
    %v80 = vld [vmem:[%s60 + $0xc] sm:$0xf]
    %v81 = vld [vmem:[%s60 + $0x10] sm:$0xf]
    %v82 = vld [vmem:[%s60 + $0x14] sm:$0xf]
    %v83 = vld [vmem:[%s60 + $0x18] sm:$0xf]
    %v84 = vld [vmem:[%s60 + $0x1c] sm:$0xf]
    %v85 = vld [vmem:[%s60 + $0x20] sm:$0xf]
    %v86 = vld [vmem:[%s60 + $0x24] sm:$0xf]
    %v87 = vld [vmem:[%s60 + $0x28] sm:$0xf]
    %v88 = vld [vmem:[%s60 + $0x2c] sm:$0xf]
    %v89 = vld [vmem:[%s60 + $0x30] sm:$0xf]
    %v90 = vld [vmem:[%s60 + $0x34] sm:$0xf]
    %v91 = vld [vmem:[%s60 + $0x38] sm:$0xf]
    %v92 = vld [vmem:[%s60 + $0x3c] sm:$0xf]
    %v93 = vld [vmem:[%s60 + $0x40] sm:$0xf]
    %v94 = vld [vmem:[%s60 + $0x44] sm:$0xf]
    %v95 = vld [vmem:[%s60 + $0x48] sm:$0xf]
    %v96 = vld [vmem:[%s60 + $0x4c] sm:$0xf]
    %v97 = vld [vmem:[%s60 + $0x50] sm:$0xf]
    %v98 = vld [vmem:[%s60 + $0x54] sm:$0xf]
    %v99 = vld [vmem:[%s60 + $0x58] sm:$0xf]
    %v100 = vld [vmem:[%s60 + $0x5c] sm:$0xf]
    %v101 = vld [vmem:[%s60 + $0x60] sm:$0xf]
    %v102 = vld [vmem:[%s60 + $0x64] sm:$0xf]
    %v103 = vld [vmem:[%s60 + $0x68] sm:$0xf]
    %v104 = vld [vmem:[%s60 + $0x6c] sm:$0xf]
    %v105 = vld [vmem:[%s60 + $0x70] sm:$0xf]
    %v106 = vld [vmem:[%s60 + $0x74] sm:$0xf]
    %v107 = vld [vmem:[%s60 + $0x78] sm:$0xf]
    %v108 = vld [vmem:[%s60 + $0x7c] sm:$0xf]
    %v109 = vld [vmem:[%s68] sm:$0xff]
    %v110 = vld [vmem:[%s68 + $0x8] sm:$0xff]
    %v111 = vld [vmem:[%s68 + $0x10] sm:$0xff]
    %v112 = vld [vmem:[%s68 + $0x18] sm:$0xff]
    %v113 = vld [vmem:[%s68 + $0x20] sm:$0xff]
    %v114 = vld [vmem:[%s68 + $0x28] sm:$0xff]
    %v115 = vld [vmem:[%s68 + $0x30] sm:$0xff]
    %v116 = vld [vmem:[%s68 + $0x38] sm:$0xff]
    %v117 = vld [vmem:[%s68 + $0x40] sm:$0xff]
    %v118 = vld [vmem:[%s68 + $0x48] sm:$0xff]
    %v119 = vld [vmem:[%s68 + $0x50] sm:$0xff]
    %v120 = vld [vmem:[%s68 + $0x58] sm:$0xff]
    %v121 = vld [vmem:[%s68 + $0x60] sm:$0xff]
    %v122 = vld [vmem:[%s68 + $0x68] sm:$0xff]
    %v123 = vld [vmem:[%s68 + $0x70] sm:$0xff]
    %v124 = vld [vmem:[%s68 + $0x78] sm:$0xff]
    %v125 = vld [vmem:[%s68 + $0x80] sm:$0xff]
    %v126 = vld [vmem:[%s68 + $0x88] sm:$0xff]
    %v127 = vld [vmem:[%s68 + $0x90] sm:$0xff]
    %v128 = vld [vmem:[%s68 + $0x98] sm:$0xff]
    %v129 = vld [vmem:[%s68 + $0xa0] sm:$0xff]
    %v130 = vld [vmem:[%s68 + $0xa8] sm:$0xff]
    %v131 = vld [vmem:[%s68 + $0xb0] sm:$0xff]
    %v132 = vld [vmem:[%s68 + $0xb8] sm:$0xff]
    %v133 = vld [vmem:[%s68 + $0xc0] sm:$0xff]
    %v134 = vld [vmem:[%s68 + $0xc8] sm:$0xff]
    %v135 = vld [vmem:[%s68 + $0xd0] sm:$0xff]
    %v136 = vld [vmem:[%s68 + $0xd8] sm:$0xff]
    %v137 = vld [vmem:[%s68 + $0xe0] sm:$0xff]
    %v138 = vld [vmem:[%s68 + $0xe8] sm:$0xff]
    %v139 = vld [vmem:[%s68 + $0xf0] sm:$0xff]
    %v140 = vld [vmem:[%s68 + $0xf8] sm:$0xff]
    %v141 = vld [vmem:[%s2] sm:$0xf]
    %v142 = vld [vmem:[%s2 + $0x4] sm:$0xf]
    %v143 = vld [vmem:[%s2 + $0x8] sm:$0xf]
    %v144 = vld [vmem:[%s2 + $0xc] sm:$0xf]
    %v145 = vld [vmem:[%s2 + $0x10] sm:$0xf]
    %v146 = vld [vmem:[%s2 + $0x14] sm:$0xf]
    %v147 = vld [vmem:[%s2 + $0x18] sm:$0xf]
    %v148 = vld [vmem:[%s2 + $0x1c] sm:$0xf]
    %v149 = vld [vmem:[%s2 + $0x20] sm:$0xf]
    %v150 = vld [vmem:[%s2 + $0x24] sm:$0xf]
    %v151 = vld [vmem:[%s2 + $0x28] sm:$0xf]
    %v152 = vld [vmem:[%s2 + $0x2c] sm:$0xf]
    %v153 = vld [vmem:[%s2 + $0x30] sm:$0xf]
    %v154 = vld [vmem:[%s2 + $0x34] sm:$0xf]
    %v155 = vld [vmem:[%s2 + $0x38] sm:$0xf]
    %v156 = vld [vmem:[%s2 + $0x3c] sm:$0xf]
    %v157 = vld [vmem:[%s3] sm:$0x1]
    %v158 = vld [vmem:[%s4] sm:$0xf]
    %v159 = vld [vmem:[%s4 + $0x4] sm:$0xf]
    %v160 = vld [vmem:[%s4 + $0x8] sm:$0xf]
    %v161 = vld [vmem:[%s4 + $0xc] sm:$0xf]
    %v162 = vld [vmem:[%s4 + $0x10] sm:$0xf]
    %v163 = vld [vmem:[%s4 + $0x14] sm:$0xf]
    %v164 = vld [vmem:[%s4 + $0x18] sm:$0xf]
    %v165 = vld [vmem:[%s4 + $0x1c] sm:$0xf]
    %v166 = vld [vmem:[%s4 + $0x20] sm:$0xf]
    %v167 = vld [vmem:[%s4 + $0x24] sm:$0xf]
    %v168 = vld [vmem:[%s4 + $0x28] sm:$0xf]
    %v169 = vld [vmem:[%s4 + $0x2c] sm:$0xf]
    %v170 = vld [vmem:[%s4 + $0x30] sm:$0xf]
    %v171 = vld [vmem:[%s4 + $0x34] sm:$0xf]
    %v172 = vld [vmem:[%s4 + $0x38] sm:$0xf]
    %v173 = vld [vmem:[%s4 + $0x3c] sm:$0xf]
    %v174 = vld [vmem:[%s5] sm:$0xf]
    %v175 = vld [vmem:[%s5 + $0x4] sm:$0x1]
    %v176 = vld [vmem:[%s6] sm:$0x1]
    %v178 = vlaneseq
    %v179 = vshrl.u32 %v178, 7
    %v180 = vsub.s32 0, %v179
    %v181 = vrot.slane %v157, %v180
    %v215 = vunpack.c.l.b16 %v77
    %v216 = vunpack.c.l.b16 %v78
    %v217 = vunpack.c.l.b16 %v79
    %v218 = vunpack.c.l.b16 %v80
    %v219 = vunpack.c.l.b16 %v81
    %v220 = vunpack.c.l.b16 %v82
    %v221 = vunpack.c.l.b16 %v83
    %v222 = vunpack.c.l.b16 %v84
    %v223 = vunpack.c.l.b16 %v85
    %v224 = vunpack.c.l.b16 %v86
    %v225 = vunpack.c.l.b16 %v87
    %v226 = vunpack.c.l.b16 %v88
    %v227 = vunpack.c.l.b16 %v89
    %v228 = vunpack.c.l.b16 %v90
    %v229 = vunpack.c.l.b16 %v91
    %v230 = vunpack.c.l.b16 %v92
    %v231 = vunpack.c.l.b16 %v93
    %v232 = vunpack.c.l.b16 %v94
    %v233 = vunpack.c.l.b16 %v95
    %v234 = vunpack.c.l.b16 %v96
    %v235 = vunpack.c.l.b16 %v97
    %v236 = vunpack.c.l.b16 %v98
    %v237 = vunpack.c.l.b16 %v99
    %v238 = vunpack.c.l.b16 %v100
    %v239 = vunpack.c.l.b16 %v101
    %v240 = vunpack.c.l.b16 %v102
    %v241 = vunpack.c.l.b16 %v103
    %v242 = vunpack.c.l.b16 %v104
    %v243 = vunpack.c.l.b16 %v105
    %v244 = vunpack.c.l.b16 %v106
    %v245 = vunpack.c.l.b16 %v107
    %v246 = vunpack.c.l.b16 %v108
    %v247 = vpack.c.b16 %v216, %v215
    %v248 = vpack.c.b16 %v218, %v217
    %v249 = vpack.c.b16 %v220, %v219
    %v250 = vpack.c.b16 %v222, %v221
    %v251 = vpack.c.b16 %v224, %v223
    %v252 = vpack.c.b16 %v226, %v225
    %v253 = vpack.c.b16 %v228, %v227
    %v254 = vpack.c.b16 %v230, %v229
    %v255 = vpack.c.b16 %v232, %v231
    %v256 = vpack.c.b16 %v234, %v233
    %v257 = vpack.c.b16 %v236, %v235
    %v258 = vpack.c.b16 %v238, %v237
    %v259 = vpack.c.b16 %v240, %v239
    %v260 = vpack.c.b16 %v242, %v241
    %v261 = vpack.c.b16 %v244, %v243
    %v262 = vpack.c.b16 %v246, %v245
    %v295 = vunpack.c.l.b16 %v141
    %v296 = vunpack.c.l.b16 %v142
    %v297 = vunpack.c.l.b16 %v143
    %v298 = vunpack.c.l.b16 %v144
    %v299 = vunpack.c.l.b16 %v145
    %v300 = vunpack.c.l.b16 %v146
    %v301 = vunpack.c.l.b16 %v147
    %v302 = vunpack.c.l.b16 %v148
    %v303 = vunpack.c.l.b16 %v149
    %v304 = vunpack.c.l.b16 %v150
    %v305 = vunpack.c.l.b16 %v151
    %v306 = vunpack.c.l.b16 %v152
    %v307 = vunpack.c.l.b16 %v153
    %v308 = vunpack.c.l.b16 %v154
    %v309 = vunpack.c.l.b16 %v155
    %v310 = vunpack.c.l.b16 %v156
    %v311 = vpack.c.b16 %v296, %v295
    %v312 = vpack.c.b16 %v298, %v297
    %v313 = vpack.c.b16 %v300, %v299
    %v314 = vpack.c.b16 %v302, %v301
    %v315 = vpack.c.b16 %v304, %v303
    %v316 = vpack.c.b16 %v306, %v305
    %v317 = vpack.c.b16 %v308, %v307
    %v318 = vpack.c.b16 %v310, %v309
    %327 = vmatprep.subr.bf16.mxu0 0
    %328 = vmatpush1.bf16.msra.mxu0 %v318
    %329 = vmatprep.subr.bf16.mxu0 0
    %330 = vmatpush1.bf16.msra.mxu0 %v317
    %331 = vmatprep.subr.bf16.mxu0 0
    %332 = vmatpush1.bf16.msra.mxu0 %v316
    %333 = vmatprep.subr.bf16.mxu0 0
    %334 = vmatpush1.bf16.msra.mxu0 %v315
    %335 = vmatprep.subr.bf16.mxu0 0
    %336 = vmatpush1.bf16.msra.mxu0 %v314
    %337 = vmatprep.subr.bf16.mxu0 0
    %338 = vmatpush1.bf16.msra.mxu0 %v313
    %339 = vmatprep.subr.bf16.mxu0 0
    %340 = vmatpush1.bf16.msra.mxu0 %v312
    %341 = vmatprep.subr.bf16.mxu0 0
    %342 = vmatpush1.bf16.msra.mxu0 %v311
    %343 = vmatprep.subr.bf16.mxu0 0
    %344 = vmatpush2.bf16.msra.mxu0 0
    %345 = vmatprep.subr.bf16.mxu0 0
    %346 = vmatpush2.bf16.msra.mxu0 0
    %347 = vmatprep.subr.bf16.mxu0 0
    %348 = vmatpush2.bf16.msra.mxu0 0
    %349 = vmatprep.subr.bf16.mxu0 0
    %350 = vmatpush2.bf16.msra.mxu0 0
    %351 = vmatprep.subr.bf16.mxu0 0
    %352 = vmatpush2.bf16.msra.mxu0 0
    %353 = vmatprep.subr.bf16.mxu0 0
    %354 = vmatpush2.bf16.msra.mxu0 0
    %355 = vmatprep.subr.bf16.mxu0 0
    %356 = vmatpush2.bf16.msra.mxu0 0
    %357 = vmatprep.subr.bf16.mxu0 0
    %358 = vmatpush2.bf16.msra.mxu0 0
    %359 = vmatprep.mubr.bf16.mxu0 0
    %360 = vmatmul.mubr.bf16.gmra.mxu0 %v247
    %v361 = vpop.f32.mrf.mxu0
    %v362 = vadd.f32 %v181, %v361
    %v363 = vpop.f32.mrf.mxu0
    %v364 = vpop.f32.mrf.mxu0
    %v365 = vadd.f32 %v181, %v364
    %v366 = vpop.f32.mrf.mxu0
    %367 = vmatprep.mubr.bf16.mxu0 0
    %368 = vmatmul.mubr.bf16.gmra.mxu0 %v248
    %v369 = vpop.f32.mrf.mxu0
    %v370 = vadd.f32 %v181, %v369
    %v371 = vpop.f32.mrf.mxu0
    %v372 = vpop.f32.mrf.mxu0
    %v373 = vadd.f32 %v181, %v372
    %v374 = vpop.f32.mrf.mxu0
    %375 = vmatprep.mubr.bf16.mxu0 0
    %376 = vmatmul.mubr.bf16.gmra.mxu0 %v249
    %v377 = vpop.f32.mrf.mxu0
    %v378 = vadd.f32 %v181, %v377
    %v379 = vpop.f32.mrf.mxu0
    %v380 = vpop.f32.mrf.mxu0
    %v381 = vadd.f32 %v181, %v380
    %v382 = vpop.f32.mrf.mxu0
    %383 = vmatprep.mubr.bf16.mxu0 0
    %384 = vmatmul.mubr.bf16.gmra.mxu0 %v250
    %v385 = vpop.f32.mrf.mxu0
    %v386 = vadd.f32 %v181, %v385
    %v387 = vpop.f32.mrf.mxu0
    %v388 = vpop.f32.mrf.mxu0
    %v389 = vadd.f32 %v181, %v388
    %v390 = vpop.f32.mrf.mxu0
    %391 = vmatprep.mubr.bf16.mxu0 0
    %392 = vmatmul.mubr.bf16.gmra.mxu0 %v251
    %v393 = vpop.f32.mrf.mxu0
    %v394 = vadd.f32 %v181, %v393
    %v395 = vpop.f32.mrf.mxu0
    %v396 = vpop.f32.mrf.mxu0
    %v397 = vadd.f32 %v181, %v396
    %v398 = vpop.f32.mrf.mxu0
    %399 = vmatprep.mubr.bf16.mxu0 0
    %400 = vmatmul.mubr.bf16.gmra.mxu0 %v252
    %v401 = vpop.f32.mrf.mxu0
    %v402 = vadd.f32 %v181, %v401
    %v403 = vpop.f32.mrf.mxu0
    %v404 = vpop.f32.mrf.mxu0
    %v405 = vadd.f32 %v181, %v404
    %v406 = vpop.f32.mrf.mxu0
    %407 = vmatprep.mubr.bf16.mxu0 0
    %408 = vmatmul.mubr.bf16.gmra.mxu0 %v253
    %v409 = vpop.f32.mrf.mxu0
    %v410 = vadd.f32 %v181, %v409
    %v411 = vpop.f32.mrf.mxu0
    %v412 = vpop.f32.mrf.mxu0
    %v413 = vadd.f32 %v181, %v412
    %v414 = vpop.f32.mrf.mxu0
    %415 = vmatprep.mubr.bf16.mxu0 0
    %416 = vmatmul.mubr.bf16.gmra.mxu0 %v254
    %v417 = vpop.f32.mrf.mxu0
    %v418 = vadd.f32 %v181, %v417
    %v419 = vpop.f32.mrf.mxu0
    %v420 = vpop.f32.mrf.mxu0
    %v421 = vadd.f32 %v181, %v420
    %v422 = vpop.f32.mrf.mxu0
    %423 = vmatprep.mubr.bf16.mxu0 0
    %424 = vmatmul.mubr.bf16.gmra.mxu0 %v255
    %v425 = vpop.f32.mrf.mxu0
    %v426 = vadd.f32 %v181, %v425
    %v427 = vpop.f32.mrf.mxu0
    %v428 = vpop.f32.mrf.mxu0
    %v429 = vadd.f32 %v181, %v428
    %v430 = vpop.f32.mrf.mxu0
    %431 = vmatprep.mubr.bf16.mxu0 0
    %432 = vmatmul.mubr.bf16.gmra.mxu0 %v256
    %v433 = vpop.f32.mrf.mxu0
    %v434 = vadd.f32 %v181, %v433
    %v435 = vpop.f32.mrf.mxu0
    %v436 = vpop.f32.mrf.mxu0
    %v437 = vadd.f32 %v181, %v436
    %v438 = vpop.f32.mrf.mxu0
    %439 = vmatprep.mubr.bf16.mxu0 0
    %440 = vmatmul.mubr.bf16.gmra.mxu0 %v257
    %v441 = vpop.f32.mrf.mxu0
    %v442 = vadd.f32 %v181, %v441
    %v443 = vpop.f32.mrf.mxu0
    %v444 = vpop.f32.mrf.mxu0
    %v445 = vadd.f32 %v181, %v444
    %v446 = vpop.f32.mrf.mxu0
    %447 = vmatprep.mubr.bf16.mxu0 0
    %448 = vmatmul.mubr.bf16.gmra.mxu0 %v258
    %v449 = vpop.f32.mrf.mxu0
    %v450 = vadd.f32 %v181, %v449
    %v451 = vpop.f32.mrf.mxu0
    %v452 = vpop.f32.mrf.mxu0
    %v453 = vadd.f32 %v181, %v452
    %v454 = vpop.f32.mrf.mxu0
    %455 = vmatprep.mubr.bf16.mxu0 0
    %456 = vmatmul.mubr.bf16.gmra.mxu0 %v259
    %v457 = vpop.f32.mrf.mxu0
    %v458 = vadd.f32 %v181, %v457
    %v459 = vpop.f32.mrf.mxu0
    %v460 = vpop.f32.mrf.mxu0
    %v461 = vadd.f32 %v181, %v460
    %v462 = vpop.f32.mrf.mxu0
    %463 = vmatprep.mubr.bf16.mxu0 0
    %464 = vmatmul.mubr.bf16.gmra.mxu0 %v260
    %v465 = vpop.f32.mrf.mxu0
    %v466 = vadd.f32 %v181, %v465
    %v467 = vpop.f32.mrf.mxu0
    %v468 = vpop.f32.mrf.mxu0
    %v469 = vadd.f32 %v181, %v468
    %v470 = vpop.f32.mrf.mxu0
    %471 = vmatprep.mubr.bf16.mxu0 0
    %472 = vmatmul.mubr.bf16.gmra.mxu0 %v261
    %v473 = vpop.f32.mrf.mxu0
    %v474 = vadd.f32 %v181, %v473
    %v475 = vpop.f32.mrf.mxu0
    %v476 = vpop.f32.mrf.mxu0
    %v477 = vadd.f32 %v181, %v476
    %v478 = vpop.f32.mrf.mxu0
    %479 = vmatprep.mubr.bf16.mxu0 0
    %480 = vmatmul.mubr.bf16.gmra.mxu0 %v262
    %v481 = vpop.f32.mrf.mxu0
    %v482 = vadd.f32 %v181, %v481
    %v483 = vpop.f32.mrf.mxu0
    %v484 = vpop.f32.mrf.mxu0
    %v485 = vadd.f32 %v181, %v484
    %v486 = vpop.f32.mrf.mxu0
    %487 = vdwg.mxu0
    %v488 = vmax.f32 %v362, 0.0
    %v489 = vmax.f32 %v365, 0.0
    %v490 = vmax.f32 %v370, 0.0
    %v491 = vmax.f32 %v373, 0.0
    %v492 = vmax.f32 %v378, 0.0
    %v493 = vmax.f32 %v381, 0.0
    %v494 = vmax.f32 %v386, 0.0
    %v495 = vmax.f32 %v389, 0.0
    %v496 = vmax.f32 %v394, 0.0
    %v497 = vmax.f32 %v397, 0.0
    %v498 = vmax.f32 %v402, 0.0
    %v499 = vmax.f32 %v405, 0.0
    %v500 = vmax.f32 %v410, 0.0
    %v501 = vmax.f32 %v413, 0.0
    %v502 = vmax.f32 %v418, 0.0
    %v503 = vmax.f32 %v421, 0.0
    %v504 = vmax.f32 %v426, 0.0
    %v505 = vmax.f32 %v429, 0.0
    %v506 = vmax.f32 %v434, 0.0
    %v507 = vmax.f32 %v437, 0.0
    %v508 = vmax.f32 %v442, 0.0
    %v509 = vmax.f32 %v445, 0.0
    %v510 = vmax.f32 %v450, 0.0
    %v511 = vmax.f32 %v453, 0.0
    %v512 = vmax.f32 %v458, 0.0
    %v513 = vmax.f32 %v461, 0.0
    %v514 = vmax.f32 %v466, 0.0
    %v515 = vmax.f32 %v469, 0.0
    %v516 = vmax.f32 %v474, 0.0
    %v517 = vmax.f32 %v477, 0.0
    %v518 = vmax.f32 %v482, 0.0
    %v519 = vmax.f32 %v485, 0.0
    %v520 = vpack.c.bf16 %v489, %v488
    %v521 = vpack.c.bf16 %v491, %v490
    %v522 = vpack.c.bf16 %v493, %v492
    %v523 = vpack.c.bf16 %v495, %v494
    %v524 = vpack.c.bf16 %v497, %v496
    %v525 = vpack.c.bf16 %v499, %v498
    %v526 = vpack.c.bf16 %v501, %v500
    %v527 = vpack.c.bf16 %v503, %v502
    %v528 = vpack.c.bf16 %v505, %v504
    %v529 = vpack.c.bf16 %v507, %v506
    %v530 = vpack.c.bf16 %v509, %v508
    %v531 = vpack.c.bf16 %v511, %v510
    %v532 = vpack.c.bf16 %v513, %v512
    %v533 = vpack.c.bf16 %v515, %v514
    %v534 = vpack.c.bf16 %v517, %v516
    %v535 = vpack.c.bf16 %v519, %v518
    %v537 = vlaneseq
    %v538 = vshrl.u32 %v537, 7
    %v539 = vsub.s32 0, %v538
    %v540 = vrot.slane %v176, %v539
    %v558 = vunpack.c.l.b16 %v158
    %v559 = vunpack.c.l.b16 %v159
    %v560 = vunpack.c.l.b16 %v160
    %v561 = vunpack.c.l.b16 %v161
    %v562 = vunpack.c.l.b16 %v162
    %v563 = vunpack.c.l.b16 %v163
    %v564 = vunpack.c.l.b16 %v164
    %v565 = vunpack.c.l.b16 %v165
    %v566 = vunpack.c.l.b16 %v166
    %v567 = vunpack.c.l.b16 %v167
    %v568 = vunpack.c.l.b16 %v168
    %v569 = vunpack.c.l.b16 %v169
    %v570 = vunpack.c.l.b16 %v170
    %v571 = vunpack.c.l.b16 %v171
    %v572 = vunpack.c.l.b16 %v172
    %v573 = vunpack.c.l.b16 %v173
    %v574 = vpack.c.b16 %v559, %v558
    %v575 = vpack.c.b16 %v561, %v560
    %v576 = vpack.c.b16 %v563, %v562
    %v577 = vpack.c.b16 %v565, %v564
    %v578 = vpack.c.b16 %v567, %v566
    %v579 = vpack.c.b16 %v569, %v568
    %v580 = vpack.c.b16 %v571, %v570
    %v581 = vpack.c.b16 %v573, %v572
    %590 = vmatprep.subr.bf16.mxu0 0
    %591 = vmatpush1.bf16.msra.mxu0 %v581
    %592 = vmatprep.subr.bf16.mxu0 0
    %593 = vmatpush1.bf16.msra.mxu0 %v580
    %594 = vmatprep.subr.bf16.mxu0 0
    %595 = vmatpush1.bf16.msra.mxu0 %v579
    %596 = vmatprep.subr.bf16.mxu0 0
    %597 = vmatpush1.bf16.msra.mxu0 %v578
    %598 = vmatprep.subr.bf16.mxu0 0
    %599 = vmatpush1.bf16.msra.mxu0 %v577
    %600 = vmatprep.subr.bf16.mxu0 0
    %601 = vmatpush1.bf16.msra.mxu0 %v576
    %602 = vmatprep.subr.bf16.mxu0 0
    %603 = vmatpush1.bf16.msra.mxu0 %v575
    %604 = vmatprep.subr.bf16.mxu0 0
    %605 = vmatpush1.bf16.msra.mxu0 %v574
    %606 = vmatprep.subr.bf16.mxu0 0
    %607 = vmatpush2.bf16.msra.mxu0 0
    %608 = vmatprep.subr.bf16.mxu0 0
    %609 = vmatpush2.bf16.msra.mxu0 0
    %610 = vmatprep.subr.bf16.mxu0 0
    %611 = vmatpush2.bf16.msra.mxu0 0
    %612 = vmatprep.subr.bf16.mxu0 0
    %613 = vmatpush2.bf16.msra.mxu0 0
    %614 = vmatprep.subr.bf16.mxu0 0
    %615 = vmatpush2.bf16.msra.mxu0 0
    %616 = vmatprep.subr.bf16.mxu0 0
    %617 = vmatpush2.bf16.msra.mxu0 0
    %618 = vmatprep.subr.bf16.mxu0 0
    %619 = vmatpush2.bf16.msra.mxu0 0
    %620 = vmatprep.subr.bf16.mxu0 0
    %621 = vmatpush2.bf16.msra.mxu0 0
    %622 = vmatprep.mubr.bf16.mxu0 0
    %623 = vmatmul.mubr.bf16.gmra.mxu0 %v520
    %v624 = vpop.f32.mrf.mxu0
    %v625 = vadd.f32 %v540, %v624
    %v626 = vpop.f32.mrf.mxu0
    %v627 = vpop.f32.mrf.mxu0
    %v628 = vadd.f32 %v540, %v627
    %v629 = vpop.f32.mrf.mxu0
    %630 = vmatprep.mubr.bf16.mxu0 0
    %631 = vmatmul.mubr.bf16.gmra.mxu0 %v521
    %v632 = vpop.f32.mrf.mxu0
    %v633 = vadd.f32 %v540, %v632
    %v634 = vpop.f32.mrf.mxu0
    %v635 = vpop.f32.mrf.mxu0
    %v636 = vadd.f32 %v540, %v635
    %v637 = vpop.f32.mrf.mxu0
    %638 = vmatprep.mubr.bf16.mxu0 0
    %639 = vmatmul.mubr.bf16.gmra.mxu0 %v522
    %v640 = vpop.f32.mrf.mxu0
    %v641 = vadd.f32 %v540, %v640
    %v642 = vpop.f32.mrf.mxu0
    %v643 = vpop.f32.mrf.mxu0
    %v644 = vadd.f32 %v540, %v643
    %v645 = vpop.f32.mrf.mxu0
    %646 = vmatprep.mubr.bf16.mxu0 0
    %647 = vmatmul.mubr.bf16.gmra.mxu0 %v523
    %v648 = vpop.f32.mrf.mxu0
    %v649 = vadd.f32 %v540, %v648
    %v650 = vpop.f32.mrf.mxu0
    %v651 = vpop.f32.mrf.mxu0
    %v652 = vadd.f32 %v540, %v651
    %v653 = vpop.f32.mrf.mxu0
    %654 = vmatprep.mubr.bf16.mxu0 0
    %655 = vmatmul.mubr.bf16.gmra.mxu0 %v524
    %v656 = vpop.f32.mrf.mxu0
    %v657 = vadd.f32 %v540, %v656
    %v658 = vpop.f32.mrf.mxu0
    %v659 = vpop.f32.mrf.mxu0
    %v660 = vadd.f32 %v540, %v659
    %v661 = vpop.f32.mrf.mxu0
    %662 = vmatprep.mubr.bf16.mxu0 0
    %663 = vmatmul.mubr.bf16.gmra.mxu0 %v525
    %v664 = vpop.f32.mrf.mxu0
    %v665 = vadd.f32 %v540, %v664
    %v666 = vpop.f32.mrf.mxu0
    %v667 = vpop.f32.mrf.mxu0
    %v668 = vadd.f32 %v540, %v667
    %v669 = vpop.f32.mrf.mxu0
    %670 = vmatprep.mubr.bf16.mxu0 0
    %671 = vmatmul.mubr.bf16.gmra.mxu0 %v526
    %v672 = vpop.f32.mrf.mxu0
    %v673 = vadd.f32 %v540, %v672
    %v674 = vpop.f32.mrf.mxu0
    %v675 = vpop.f32.mrf.mxu0
    %v676 = vadd.f32 %v540, %v675
    %v677 = vpop.f32.mrf.mxu0
    %678 = vmatprep.mubr.bf16.mxu0 0
    %679 = vmatmul.mubr.bf16.gmra.mxu0 %v527
    %v680 = vpop.f32.mrf.mxu0
    %v681 = vadd.f32 %v540, %v680
    %v682 = vpop.f32.mrf.mxu0
    %v683 = vpop.f32.mrf.mxu0
    %v684 = vadd.f32 %v540, %v683
    %v685 = vpop.f32.mrf.mxu0
    %686 = vmatprep.mubr.bf16.mxu0 0
    %687 = vmatmul.mubr.bf16.gmra.mxu0 %v528
    %v688 = vpop.f32.mrf.mxu0
    %v689 = vadd.f32 %v540, %v688
    %v690 = vpop.f32.mrf.mxu0
    %v691 = vpop.f32.mrf.mxu0
    %v692 = vadd.f32 %v540, %v691
    %v693 = vpop.f32.mrf.mxu0
    %694 = vmatprep.mubr.bf16.mxu0 0
    %695 = vmatmul.mubr.bf16.gmra.mxu0 %v529
    %v696 = vpop.f32.mrf.mxu0
    %v697 = vadd.f32 %v540, %v696
    %v698 = vpop.f32.mrf.mxu0
    %v699 = vpop.f32.mrf.mxu0
    %v700 = vadd.f32 %v540, %v699
    %v701 = vpop.f32.mrf.mxu0
    %702 = vmatprep.mubr.bf16.mxu0 0
    %703 = vmatmul.mubr.bf16.gmra.mxu0 %v530
    %v704 = vpop.f32.mrf.mxu0
    %v705 = vadd.f32 %v540, %v704
    %v706 = vpop.f32.mrf.mxu0
    %v707 = vpop.f32.mrf.mxu0
    %v708 = vadd.f32 %v540, %v707
    %v709 = vpop.f32.mrf.mxu0
    %710 = vmatprep.mubr.bf16.mxu0 0
    %711 = vmatmul.mubr.bf16.gmra.mxu0 %v531
    %v712 = vpop.f32.mrf.mxu0
    %v713 = vadd.f32 %v540, %v712
    %v714 = vpop.f32.mrf.mxu0
    %v715 = vpop.f32.mrf.mxu0
    %v716 = vadd.f32 %v540, %v715
    %v717 = vpop.f32.mrf.mxu0
    %718 = vmatprep.mubr.bf16.mxu0 0
    %719 = vmatmul.mubr.bf16.gmra.mxu0 %v532
    %v720 = vpop.f32.mrf.mxu0
    %v721 = vadd.f32 %v540, %v720
    %v722 = vpop.f32.mrf.mxu0
    %v723 = vpop.f32.mrf.mxu0
    %v724 = vadd.f32 %v540, %v723
    %v725 = vpop.f32.mrf.mxu0
    %726 = vmatprep.mubr.bf16.mxu0 0
    %727 = vmatmul.mubr.bf16.gmra.mxu0 %v533
    %v728 = vpop.f32.mrf.mxu0
    %v729 = vadd.f32 %v540, %v728
    %v730 = vpop.f32.mrf.mxu0
    %v731 = vpop.f32.mrf.mxu0
    %v732 = vadd.f32 %v540, %v731
    %v733 = vpop.f32.mrf.mxu0
    %734 = vmatprep.mubr.bf16.mxu0 0
    %735 = vmatmul.mubr.bf16.gmra.mxu0 %v534
    %v736 = vpop.f32.mrf.mxu0
    %v737 = vadd.f32 %v540, %v736
    %v738 = vpop.f32.mrf.mxu0
    %v739 = vpop.f32.mrf.mxu0
    %v740 = vadd.f32 %v540, %v739
    %v741 = vpop.f32.mrf.mxu0
    %742 = vmatprep.mubr.bf16.mxu0 0
    %743 = vmatmul.mubr.bf16.gmra.mxu0 %v535
    %v744 = vpop.f32.mrf.mxu0
    %v745 = vadd.f32 %v540, %v744
    %v746 = vpop.f32.mrf.mxu0
    %v747 = vpop.f32.mrf.mxu0
    %v748 = vadd.f32 %v540, %v747
    %v749 = vpop.f32.mrf.mxu0
    %750 = vdwg.mxu0
    %vm751 = vcmask 80896
    %v752 = vsel %vm751, %v625, -inf
    %753 = vmax.xlane.f32.xlu0 %v752
    %v754 = vpop.xlane.xlu0 %753
    %v755 = vsel %vm751, %v628, -inf
    %756 = vmax.xlane.f32.xlu0 %v755
    %v757 = vpop.xlane.xlu0 %756
    %v758 = vsel %vm751, %v633, -inf
    %759 = vmax.xlane.f32.xlu0 %v758
    %v760 = vpop.xlane.xlu0 %759
    %v761 = vsel %vm751, %v636, -inf
    %762 = vmax.xlane.f32.xlu0 %v761
    %v763 = vpop.xlane.xlu0 %762
    %v764 = vsel %vm751, %v641, -inf
    %765 = vmax.xlane.f32.xlu0 %v764
    %v766 = vpop.xlane.xlu0 %765
    %v767 = vsel %vm751, %v644, -inf
    %768 = vmax.xlane.f32.xlu0 %v767
    %v769 = vpop.xlane.xlu0 %768
    %v770 = vsel %vm751, %v649, -inf
    %771 = vmax.xlane.f32.xlu0 %v770
    %v772 = vpop.xlane.xlu0 %771
    %v773 = vsel %vm751, %v652, -inf
    %774 = vmax.xlane.f32.xlu0 %v773
    %v775 = vpop.xlane.xlu0 %774
    %v776 = vsel %vm751, %v657, -inf
    %777 = vmax.xlane.f32.xlu0 %v776
    %v778 = vpop.xlane.xlu0 %777
    %v779 = vsel %vm751, %v660, -inf
    %780 = vmax.xlane.f32.xlu0 %v779
    %v781 = vpop.xlane.xlu0 %780
    %v782 = vsel %vm751, %v665, -inf
    %783 = vmax.xlane.f32.xlu0 %v782
    %v784 = vpop.xlane.xlu0 %783
    %v785 = vsel %vm751, %v668, -inf
    %786 = vmax.xlane.f32.xlu0 %v785
    %v787 = vpop.xlane.xlu0 %786
    %v788 = vsel %vm751, %v673, -inf
    %789 = vmax.xlane.f32.xlu0 %v788
    %v790 = vpop.xlane.xlu0 %789
    %v791 = vsel %vm751, %v676, -inf
    %792 = vmax.xlane.f32.xlu0 %v791
    %v793 = vpop.xlane.xlu0 %792
    %v794 = vsel %vm751, %v681, -inf
    %795 = vmax.xlane.f32.xlu0 %v794
    %v796 = vpop.xlane.xlu0 %795
    %v797 = vsel %vm751, %v684, -inf
    %798 = vmax.xlane.f32.xlu0 %v797
    %v799 = vpop.xlane.xlu0 %798
    %v800 = vsel %vm751, %v689, -inf
    %801 = vmax.xlane.f32.xlu0 %v800
    %v802 = vpop.xlane.xlu0 %801
    %v803 = vsel %vm751, %v692, -inf
    %804 = vmax.xlane.f32.xlu0 %v803
    %v805 = vpop.xlane.xlu0 %804
    %v806 = vsel %vm751, %v697, -inf
    %807 = vmax.xlane.f32.xlu0 %v806
    %v808 = vpop.xlane.xlu0 %807
    %v809 = vsel %vm751, %v700, -inf
    %810 = vmax.xlane.f32.xlu0 %v809
    %v811 = vpop.xlane.xlu0 %810
    %v812 = vsel %vm751, %v705, -inf
    %813 = vmax.xlane.f32.xlu0 %v812
    %v814 = vpop.xlane.xlu0 %813
    %v815 = vsel %vm751, %v708, -inf
    %816 = vmax.xlane.f32.xlu0 %v815
    %v817 = vpop.xlane.xlu0 %816
    %v818 = vsel %vm751, %v713, -inf
    %819 = vmax.xlane.f32.xlu0 %v818
    %v820 = vpop.xlane.xlu0 %819
    %v821 = vsel %vm751, %v716, -inf
    %822 = vmax.xlane.f32.xlu0 %v821
    %v823 = vpop.xlane.xlu0 %822
    %v824 = vsel %vm751, %v721, -inf
    %825 = vmax.xlane.f32.xlu0 %v824
    %v826 = vpop.xlane.xlu0 %825
    %v827 = vsel %vm751, %v724, -inf
    %828 = vmax.xlane.f32.xlu0 %v827
    %v829 = vpop.xlane.xlu0 %828
    %v830 = vsel %vm751, %v729, -inf
    %831 = vmax.xlane.f32.xlu0 %v830
    %v832 = vpop.xlane.xlu0 %831
    %v833 = vsel %vm751, %v732, -inf
    %834 = vmax.xlane.f32.xlu0 %v833
    %v835 = vpop.xlane.xlu0 %834
    %v836 = vsel %vm751, %v737, -inf
    %837 = vmax.xlane.f32.xlu0 %v836
    %v838 = vpop.xlane.xlu0 %837
    %v839 = vsel %vm751, %v740, -inf
    %840 = vmax.xlane.f32.xlu0 %v839
    %v841 = vpop.xlane.xlu0 %840
    %v842 = vsel %vm751, %v745, -inf
    %843 = vmax.xlane.f32.xlu0 %v842
    %v844 = vpop.xlane.xlu0 %843
    %v845 = vsel %vm751, %v748, -inf
    %846 = vmax.xlane.f32.xlu0 %v845
    %v847 = vpop.xlane.xlu0 %846
    %v848 = vsub.f32 %v625, %v754
    %v849 = vsub.f32 %v628, %v757
    %v850 = vsub.f32 %v633, %v760
    %v851 = vsub.f32 %v636, %v763
    %v852 = vsub.f32 %v641, %v766
    %v853 = vsub.f32 %v644, %v769
    %v854 = vsub.f32 %v649, %v772
    %v855 = vsub.f32 %v652, %v775
    %v856 = vsub.f32 %v657, %v778
    %v857 = vsub.f32 %v660, %v781
    %v858 = vsub.f32 %v665, %v784
    %v859 = vsub.f32 %v668, %v787
    %v860 = vsub.f32 %v673, %v790
    %v861 = vsub.f32 %v676, %v793
    %v862 = vsub.f32 %v681, %v796
    %v863 = vsub.f32 %v684, %v799
    %v864 = vsub.f32 %v689, %v802
    %v865 = vsub.f32 %v692, %v805
    %v866 = vsub.f32 %v697, %v808
    %v867 = vsub.f32 %v700, %v811
    %v868 = vsub.f32 %v705, %v814
    %v869 = vsub.f32 %v708, %v817
    %v870 = vsub.f32 %v713, %v820
    %v871 = vsub.f32 %v716, %v823
    %v872 = vsub.f32 %v721, %v826
    %v873 = vsub.f32 %v724, %v829
    %v874 = vsub.f32 %v729, %v832
    %v875 = vsub.f32 %v732, %v835
    %v876 = vsub.f32 %v737, %v838
    %v877 = vsub.f32 %v740, %v841
    %v878 = vsub.f32 %v745, %v844
    %v879 = vsub.f32 %v748, %v847
    %v880 = vmul.f32 %v848, 1.442695
    %v881 = vpow.pop %v880
    %v882 = vmul.f32 %v849, 1.442695
    %v883 = vpow.pop %v882
    %v884 = vmul.f32 %v850, 1.442695
    %v885 = vpow.pop %v884
    %v886 = vmul.f32 %v851, 1.442695
    %v887 = vpow.pop %v886
    %v888 = vmul.f32 %v852, 1.442695
    %v889 = vpow.pop %v888
    %v890 = vmul.f32 %v853, 1.442695
    %v891 = vpow.pop %v890
    %v892 = vmul.f32 %v854, 1.442695
    %v893 = vpow.pop %v892
    %v894 = vmul.f32 %v855, 1.442695
    %v895 = vpow.pop %v894
    %v896 = vmul.f32 %v856, 1.442695
    %v897 = vpow.pop %v896
    %v898 = vmul.f32 %v857, 1.442695
    %v899 = vpow.pop %v898
    %v900 = vmul.f32 %v858, 1.442695
    %v901 = vpow.pop %v900
    %v902 = vmul.f32 %v859, 1.442695
    %v903 = vpow.pop %v902
    %v904 = vmul.f32 %v860, 1.442695
    %v905 = vpow.pop %v904
    %v906 = vmul.f32 %v861, 1.442695
    %v907 = vpow.pop %v906
    %v908 = vmul.f32 %v862, 1.442695
    %v909 = vpow.pop %v908
    %v910 = vmul.f32 %v863, 1.442695
    %v911 = vpow.pop %v910
    %v912 = vmul.f32 %v864, 1.442695
    %v913 = vpow.pop %v912
    %v914 = vmul.f32 %v865, 1.442695
    %v915 = vpow.pop %v914
    %v916 = vmul.f32 %v866, 1.442695
    %v917 = vpow.pop %v916
    %v918 = vmul.f32 %v867, 1.442695
    %v919 = vpow.pop %v918
    %v920 = vmul.f32 %v868, 1.442695
    %v921 = vpow.pop %v920
    %v922 = vmul.f32 %v869, 1.442695
    %v923 = vpow.pop %v922
    %v924 = vmul.f32 %v870, 1.442695
    %v925 = vpow.pop %v924
    %v926 = vmul.f32 %v871, 1.442695
    %v927 = vpow.pop %v926
    %v928 = vmul.f32 %v872, 1.442695
    %v929 = vpow.pop %v928
    %v930 = vmul.f32 %v873, 1.442695
    %v931 = vpow.pop %v930
    %v932 = vmul.f32 %v874, 1.442695
    %v933 = vpow.pop %v932
    %v934 = vmul.f32 %v875, 1.442695
    %v935 = vpow.pop %v934
    %v936 = vmul.f32 %v876, 1.442695
    %v937 = vpow.pop %v936
    %v938 = vmul.f32 %v877, 1.442695
    %v939 = vpow.pop %v938
    %v940 = vmul.f32 %v878, 1.442695
    %v941 = vpow.pop %v940
    %v942 = vmul.f32 %v879, 1.442695
    %v943 = vpow.pop %v942
    %v944 = vsel %vm751, %v881, 0.0
    %945 = vadd.xlane.f32.xlu0 %v944
    %v946 = vpop.xlane.xlu0 %945
    %v947 = vsel %vm751, %v883, 0.0
    %948 = vadd.xlane.f32.xlu0 %v947
    %v949 = vpop.xlane.xlu0 %948
    %v950 = vsel %vm751, %v885, 0.0
    %951 = vadd.xlane.f32.xlu0 %v950
    %v952 = vpop.xlane.xlu0 %951
    %v953 = vsel %vm751, %v887, 0.0
    %954 = vadd.xlane.f32.xlu0 %v953
    %v955 = vpop.xlane.xlu0 %954
    %v956 = vsel %vm751, %v889, 0.0
    %957 = vadd.xlane.f32.xlu0 %v956
    %v958 = vpop.xlane.xlu0 %957
    %v959 = vsel %vm751, %v891, 0.0
    %960 = vadd.xlane.f32.xlu0 %v959
    %v961 = vpop.xlane.xlu0 %960
    %v962 = vsel %vm751, %v893, 0.0
    %963 = vadd.xlane.f32.xlu0 %v962
    %v964 = vpop.xlane.xlu0 %963
    %v965 = vsel %vm751, %v895, 0.0
    %966 = vadd.xlane.f32.xlu0 %v965
    %v967 = vpop.xlane.xlu0 %966
    %v968 = vsel %vm751, %v897, 0.0
    %969 = vadd.xlane.f32.xlu0 %v968
    %v970 = vpop.xlane.xlu0 %969
    %v971 = vsel %vm751, %v899, 0.0
    %972 = vadd.xlane.f32.xlu0 %v971
    %v973 = vpop.xlane.xlu0 %972
    %v974 = vsel %vm751, %v901, 0.0
    %975 = vadd.xlane.f32.xlu0 %v974
    %v976 = vpop.xlane.xlu0 %975
    %v977 = vsel %vm751, %v903, 0.0
    %978 = vadd.xlane.f32.xlu0 %v977
    %v979 = vpop.xlane.xlu0 %978
    %v980 = vsel %vm751, %v905, 0.0
    %981 = vadd.xlane.f32.xlu0 %v980
    %v982 = vpop.xlane.xlu0 %981
    %v983 = vsel %vm751, %v907, 0.0
    %984 = vadd.xlane.f32.xlu0 %v983
    %v985 = vpop.xlane.xlu0 %984
    %v986 = vsel %vm751, %v909, 0.0
    %987 = vadd.xlane.f32.xlu0 %v986
    %v988 = vpop.xlane.xlu0 %987
    %v989 = vsel %vm751, %v911, 0.0
    %990 = vadd.xlane.f32.xlu0 %v989
    %v991 = vpop.xlane.xlu0 %990
    %v992 = vsel %vm751, %v913, 0.0
    %993 = vadd.xlane.f32.xlu0 %v992
    %v994 = vpop.xlane.xlu0 %993
    %v995 = vsel %vm751, %v915, 0.0
    %996 = vadd.xlane.f32.xlu0 %v995
    %v997 = vpop.xlane.xlu0 %996
    %v998 = vsel %vm751, %v917, 0.0
    %999 = vadd.xlane.f32.xlu0 %v998
    %v1000 = vpop.xlane.xlu0 %999
    %v1001 = vsel %vm751, %v919, 0.0
    %1002 = vadd.xlane.f32.xlu0 %v1001
    %v1003 = vpop.xlane.xlu0 %1002
    %v1004 = vsel %vm751, %v921, 0.0
    %1005 = vadd.xlane.f32.xlu0 %v1004
    %v1006 = vpop.xlane.xlu0 %1005
    %v1007 = vsel %vm751, %v923, 0.0
    %1008 = vadd.xlane.f32.xlu0 %v1007
    %v1009 = vpop.xlane.xlu0 %1008
    %v1010 = vsel %vm751, %v925, 0.0
    %1011 = vadd.xlane.f32.xlu0 %v1010
    %v1012 = vpop.xlane.xlu0 %1011
    %v1013 = vsel %vm751, %v927, 0.0
    %1014 = vadd.xlane.f32.xlu0 %v1013
    %v1015 = vpop.xlane.xlu0 %1014
    %v1016 = vsel %vm751, %v929, 0.0
    %1017 = vadd.xlane.f32.xlu0 %v1016
    %v1018 = vpop.xlane.xlu0 %1017
    %v1019 = vsel %vm751, %v931, 0.0
    %1020 = vadd.xlane.f32.xlu0 %v1019
    %v1021 = vpop.xlane.xlu0 %1020
    %v1022 = vsel %vm751, %v933, 0.0
    %1023 = vadd.xlane.f32.xlu0 %v1022
    %v1024 = vpop.xlane.xlu0 %1023
    %v1025 = vsel %vm751, %v935, 0.0
    %1026 = vadd.xlane.f32.xlu0 %v1025
    %v1027 = vpop.xlane.xlu0 %1026
    %v1028 = vsel %vm751, %v937, 0.0
    %1029 = vadd.xlane.f32.xlu0 %v1028
    %v1030 = vpop.xlane.xlu0 %1029
    %v1031 = vsel %vm751, %v939, 0.0
    %1032 = vadd.xlane.f32.xlu0 %v1031
    %v1033 = vpop.xlane.xlu0 %1032
    %v1034 = vsel %vm751, %v941, 0.0
    %1035 = vadd.xlane.f32.xlu0 %v1034
    %v1036 = vpop.xlane.xlu0 %1035
    %v1037 = vsel %vm751, %v943, 0.0
    %1038 = vadd.xlane.f32.xlu0 %v1037
    %v1039 = vpop.xlane.xlu0 %1038
    %v1040 = vrcp.pop %v946
    %v1041 = vmul.f32 1.0, %v1040
    %v1042 = vrcp.pop %v949
    %v1043 = vmul.f32 1.0, %v1042
    %v1044 = vrcp.pop %v952
    %v1045 = vmul.f32 1.0, %v1044
    %v1046 = vrcp.pop %v955
    %v1047 = vmul.f32 1.0, %v1046
    %v1048 = vrcp.pop %v958
    %v1049 = vmul.f32 1.0, %v1048
    %v1050 = vrcp.pop %v961
    %v1051 = vmul.f32 1.0, %v1050
    %v1052 = vrcp.pop %v964
    %v1053 = vmul.f32 1.0, %v1052
    %v1054 = vrcp.pop %v967
    %v1055 = vmul.f32 1.0, %v1054
    %v1056 = vrcp.pop %v970
    %v1057 = vmul.f32 1.0, %v1056
    %v1058 = vrcp.pop %v973
    %v1059 = vmul.f32 1.0, %v1058
    %v1060 = vrcp.pop %v976
    %v1061 = vmul.f32 1.0, %v1060
    %v1062 = vrcp.pop %v979
    %v1063 = vmul.f32 1.0, %v1062
    %v1064 = vrcp.pop %v982
    %v1065 = vmul.f32 1.0, %v1064
    %v1066 = vrcp.pop %v985
    %v1067 = vmul.f32 1.0, %v1066
    %v1068 = vrcp.pop %v988
    %v1069 = vmul.f32 1.0, %v1068
    %v1070 = vrcp.pop %v991
    %v1071 = vmul.f32 1.0, %v1070
    %v1072 = vrcp.pop %v994
    %v1073 = vmul.f32 1.0, %v1072
    %v1074 = vrcp.pop %v997
    %v1075 = vmul.f32 1.0, %v1074
    %v1076 = vrcp.pop %v1000
    %v1077 = vmul.f32 1.0, %v1076
    %v1078 = vrcp.pop %v1003
    %v1079 = vmul.f32 1.0, %v1078
    %v1080 = vrcp.pop %v1006
    %v1081 = vmul.f32 1.0, %v1080
    %v1082 = vrcp.pop %v1009
    %v1083 = vmul.f32 1.0, %v1082
    %v1084 = vrcp.pop %v1012
    %v1085 = vmul.f32 1.0, %v1084
    %v1086 = vrcp.pop %v1015
    %v1087 = vmul.f32 1.0, %v1086
    %v1088 = vrcp.pop %v1018
    %v1089 = vmul.f32 1.0, %v1088
    %v1090 = vrcp.pop %v1021
    %v1091 = vmul.f32 1.0, %v1090
    %v1092 = vrcp.pop %v1024
    %v1093 = vmul.f32 1.0, %v1092
    %v1094 = vrcp.pop %v1027
    %v1095 = vmul.f32 1.0, %v1094
    %v1096 = vrcp.pop %v1030
    %v1097 = vmul.f32 1.0, %v1096
    %v1098 = vrcp.pop %v1033
    %v1099 = vmul.f32 1.0, %v1098
    %v1100 = vrcp.pop %v1036
    %v1101 = vmul.f32 1.0, %v1100
    %v1102 = vrcp.pop %v1039
    %v1103 = vmul.f32 1.0, %v1102
    %v1104 = vadd.f32 %v625, %v109
    %v1105 = vadd.f32 %v628, %v110
    %v1106 = vadd.f32 %v633, %v111
    %v1107 = vadd.f32 %v636, %v112
    %v1108 = vadd.f32 %v641, %v113
    %v1109 = vadd.f32 %v644, %v114
    %v1110 = vadd.f32 %v649, %v115
    %v1111 = vadd.f32 %v652, %v116
    %v1112 = vadd.f32 %v657, %v117
    %v1113 = vadd.f32 %v660, %v118
    %v1114 = vadd.f32 %v665, %v119
    %v1115 = vadd.f32 %v668, %v120
    %v1116 = vadd.f32 %v673, %v121
    %v1117 = vadd.f32 %v676, %v122
    %v1118 = vadd.f32 %v681, %v123
    %v1119 = vadd.f32 %v684, %v124
    %v1120 = vadd.f32 %v689, %v125
    %v1121 = vadd.f32 %v692, %v126
    %v1122 = vadd.f32 %v697, %v127
    %v1123 = vadd.f32 %v700, %v128
    %v1124 = vadd.f32 %v705, %v129
    %v1125 = vadd.f32 %v708, %v130
    %v1126 = vadd.f32 %v713, %v131
    %v1127 = vadd.f32 %v716, %v132
    %v1128 = vadd.f32 %v721, %v133
    %v1129 = vadd.f32 %v724, %v134
    %v1130 = vadd.f32 %v729, %v135
    %v1131 = vadd.f32 %v732, %v136
    %v1132 = vadd.f32 %v737, %v137
    %v1133 = vadd.f32 %v740, %v138
    %v1134 = vadd.f32 %v745, %v139
    %v1135 = vadd.f32 %v748, %v140
    %v1136 = vlaneseq
    %v1137 = vand.u32 %v1136, 127
    %v1138 = vsel %vm751, %v1104, -inf
    %1139 = vmax.xlane.f32.xlu0 %v1138
    %v1140 = vpop.xlane.xlu0 %1139
    %v1141 = vsel %vm751, %v1105, -inf
    %1142 = vmax.xlane.f32.xlu0 %v1141
    %v1143 = vpop.xlane.xlu0 %1142
    %v1144 = vsel %vm751, %v1106, -inf
    %1145 = vmax.xlane.f32.xlu0 %v1144
    %v1146 = vpop.xlane.xlu0 %1145
    %v1147 = vsel %vm751, %v1107, -inf
    %1148 = vmax.xlane.f32.xlu0 %v1147
    %v1149 = vpop.xlane.xlu0 %1148
    %v1150 = vsel %vm751, %v1108, -inf
    %1151 = vmax.xlane.f32.xlu0 %v1150
    %v1152 = vpop.xlane.xlu0 %1151
    %v1153 = vsel %vm751, %v1109, -inf
    %1154 = vmax.xlane.f32.xlu0 %v1153
    %v1155 = vpop.xlane.xlu0 %1154
    %v1156 = vsel %vm751, %v1110, -inf
    %1157 = vmax.xlane.f32.xlu0 %v1156
    %v1158 = vpop.xlane.xlu0 %1157
    %v1159 = vsel %vm751, %v1111, -inf
    %1160 = vmax.xlane.f32.xlu0 %v1159
    %v1161 = vpop.xlane.xlu0 %1160
    %v1162 = vsel %vm751, %v1112, -inf
    %1163 = vmax.xlane.f32.xlu0 %v1162
    %v1164 = vpop.xlane.xlu0 %1163
    %v1165 = vsel %vm751, %v1113, -inf
    %1166 = vmax.xlane.f32.xlu0 %v1165
    %v1167 = vpop.xlane.xlu0 %1166
    %v1168 = vsel %vm751, %v1114, -inf
    %1169 = vmax.xlane.f32.xlu0 %v1168
    %v1170 = vpop.xlane.xlu0 %1169
    %v1171 = vsel %vm751, %v1115, -inf
    %1172 = vmax.xlane.f32.xlu0 %v1171
    %v1173 = vpop.xlane.xlu0 %1172
    %v1174 = vsel %vm751, %v1116, -inf
    %1175 = vmax.xlane.f32.xlu0 %v1174
    %v1176 = vpop.xlane.xlu0 %1175
    %v1177 = vsel %vm751, %v1117, -inf
    %1178 = vmax.xlane.f32.xlu0 %v1177
    %v1179 = vpop.xlane.xlu0 %1178
    %v1180 = vsel %vm751, %v1118, -inf
    %1181 = vmax.xlane.f32.xlu0 %v1180
    %v1182 = vpop.xlane.xlu0 %1181
    %v1183 = vsel %vm751, %v1119, -inf
    %1184 = vmax.xlane.f32.xlu0 %v1183
    %v1185 = vpop.xlane.xlu0 %1184
    %v1186 = vsel %vm751, %v1120, -inf
    %1187 = vmax.xlane.f32.xlu0 %v1186
    %v1188 = vpop.xlane.xlu0 %1187
    %v1189 = vsel %vm751, %v1121, -inf
    %1190 = vmax.xlane.f32.xlu0 %v1189
    %v1191 = vpop.xlane.xlu0 %1190
    %v1192 = vsel %vm751, %v1122, -inf
    %1193 = vmax.xlane.f32.xlu0 %v1192
    %v1194 = vpop.xlane.xlu0 %1193
    %v1195 = vsel %vm751, %v1123, -inf
    %1196 = vmax.xlane.f32.xlu0 %v1195
    %v1197 = vpop.xlane.xlu0 %1196
    %v1198 = vsel %vm751, %v1124, -inf
    %1199 = vmax.xlane.f32.xlu0 %v1198
    %v1200 = vpop.xlane.xlu0 %1199
    %v1201 = vsel %vm751, %v1125, -inf
    %1202 = vmax.xlane.f32.xlu0 %v1201
    %v1203 = vpop.xlane.xlu0 %1202
    %v1204 = vsel %vm751, %v1126, -inf
    %1205 = vmax.xlane.f32.xlu0 %v1204
    %v1206 = vpop.xlane.xlu0 %1205
    %v1207 = vsel %vm751, %v1127, -inf
    %1208 = vmax.xlane.f32.xlu0 %v1207
    %v1209 = vpop.xlane.xlu0 %1208
    %v1210 = vsel %vm751, %v1128, -inf
    %1211 = vmax.xlane.f32.xlu0 %v1210
    %v1212 = vpop.xlane.xlu0 %1211
    %v1213 = vsel %vm751, %v1129, -inf
    %1214 = vmax.xlane.f32.xlu0 %v1213
    %v1215 = vpop.xlane.xlu0 %1214
    %v1216 = vsel %vm751, %v1130, -inf
    %1217 = vmax.xlane.f32.xlu0 %v1216
    %v1218 = vpop.xlane.xlu0 %1217
    %v1219 = vsel %vm751, %v1131, -inf
    %1220 = vmax.xlane.f32.xlu0 %v1219
    %v1221 = vpop.xlane.xlu0 %1220
    %v1222 = vsel %vm751, %v1132, -inf
    %1223 = vmax.xlane.f32.xlu0 %v1222
    %v1224 = vpop.xlane.xlu0 %1223
    %v1225 = vsel %vm751, %v1133, -inf
    %1226 = vmax.xlane.f32.xlu0 %v1225
    %v1227 = vpop.xlane.xlu0 %1226
    %v1228 = vsel %vm751, %v1134, -inf
    %1229 = vmax.xlane.f32.xlu0 %v1228
    %v1230 = vpop.xlane.xlu0 %1229
    %v1231 = vsel %vm751, %v1135, -inf
    %1232 = vmax.xlane.f32.xlu0 %v1231
    %v1233 = vpop.xlane.xlu0 %1232
    %vm1234 = vcmp.ge.f32.partialorder %v1104, %v1140
    %vm1235 = vcmp.ge.f32.partialorder %v1105, %v1143
    %vm1236 = vcmp.ge.f32.partialorder %v1106, %v1146
    %vm1237 = vcmp.ge.f32.partialorder %v1107, %v1149
    %vm1238 = vcmp.ge.f32.partialorder %v1108, %v1152
    %vm1239 = vcmp.ge.f32.partialorder %v1109, %v1155
    %vm1240 = vcmp.ge.f32.partialorder %v1110, %v1158
    %vm1241 = vcmp.ge.f32.partialorder %v1111, %v1161
    %vm1242 = vcmp.ge.f32.partialorder %v1112, %v1164
    %vm1243 = vcmp.ge.f32.partialorder %v1113, %v1167
    %vm1244 = vcmp.ge.f32.partialorder %v1114, %v1170
    %vm1245 = vcmp.ge.f32.partialorder %v1115, %v1173
    %vm1246 = vcmp.ge.f32.partialorder %v1116, %v1176
    %vm1247 = vcmp.ge.f32.partialorder %v1117, %v1179
    %vm1248 = vcmp.ge.f32.partialorder %v1118, %v1182
    %vm1249 = vcmp.ge.f32.partialorder %v1119, %v1185
    %vm1250 = vcmp.ge.f32.partialorder %v1120, %v1188
    %vm1251 = vcmp.ge.f32.partialorder %v1121, %v1191
    %vm1252 = vcmp.ge.f32.partialorder %v1122, %v1194
    %vm1253 = vcmp.ge.f32.partialorder %v1123, %v1197
    %vm1254 = vcmp.ge.f32.partialorder %v1124, %v1200
    %vm1255 = vcmp.ge.f32.partialorder %v1125, %v1203
    %vm1256 = vcmp.ge.f32.partialorder %v1126, %v1206
    %vm1257 = vcmp.ge.f32.partialorder %v1127, %v1209
    %vm1258 = vcmp.ge.f32.partialorder %v1128, %v1212
    %vm1259 = vcmp.ge.f32.partialorder %v1129, %v1215
    %vm1260 = vcmp.ge.f32.partialorder %v1130, %v1218
    %vm1261 = vcmp.ge.f32.partialorder %v1131, %v1221
    %vm1262 = vcmp.ge.f32.partialorder %v1132, %v1224
    %vm1263 = vcmp.ge.f32.partialorder %v1133, %v1227
    %vm1264 = vcmp.ge.f32.partialorder %v1134, %v1230
    %vm1265 = vcmp.ge.f32.partialorder %v1135, %v1233
    %v1266 = vsel %vm1234, %v1137, 10
    %v1267 = vsel %vm1235, %v1137, 10
    %v1268 = vsel %vm1236, %v1137, 10
    %v1269 = vsel %vm1237, %v1137, 10
    %v1270 = vsel %vm1238, %v1137, 10
    %v1271 = vsel %vm1239, %v1137, 10
    %v1272 = vsel %vm1240, %v1137, 10
    %v1273 = vsel %vm1241, %v1137, 10
    %v1274 = vsel %vm1242, %v1137, 10
    %v1275 = vsel %vm1243, %v1137, 10
    %v1276 = vsel %vm1244, %v1137, 10
    %v1277 = vsel %vm1245, %v1137, 10
    %v1278 = vsel %vm1246, %v1137, 10
    %v1279 = vsel %vm1247, %v1137, 10
    %v1280 = vsel %vm1248, %v1137, 10
    %v1281 = vsel %vm1249, %v1137, 10
    %v1282 = vsel %vm1250, %v1137, 10
    %v1283 = vsel %vm1251, %v1137, 10
    %v1284 = vsel %vm1252, %v1137, 10
    %v1285 = vsel %vm1253, %v1137, 10
    %v1286 = vsel %vm1254, %v1137, 10
    %v1287 = vsel %vm1255, %v1137, 10
    %v1288 = vsel %vm1256, %v1137, 10
    %v1289 = vsel %vm1257, %v1137, 10
    %v1290 = vsel %vm1258, %v1137, 10
    %v1291 = vsel %vm1259, %v1137, 10
    %v1292 = vsel %vm1260, %v1137, 10
    %v1293 = vsel %vm1261, %v1137, 10
    %v1294 = vsel %vm1262, %v1137, 10
    %v1295 = vsel %vm1263, %v1137, 10
    %v1296 = vsel %vm1264, %v1137, 10
    %v1297 = vsel %vm1265, %v1137, 10
    %v1298 = vsel %vm751, %v1266, 2147483647
    %v1299 = vand.u32 %v1298, 65535
    %v1300 = vshra.s32 %v1298, 16
    %v1301 = vcvt.s32.f32 %v1299
    %v1302 = vcvt.s32.f32 %v1300
    %1303 = vmin.xlane.f32.xlu0 %v1302
    %v1304 = vpop.xlane.xlu0 %1303
    %vm1305 = vcmp.eq.f32.partialorder %v1302, %v1304
    %v1306 = vsel %vm1305, %v1301, inf
    %1307 = vmin.xlane.f32.xlu0 %v1306
    %v1308 = vpop.xlane.xlu0 %1307
    %v1309 = vcvt.f32.s32 %v1308
    %v1310 = vcvt.f32.s32 %v1304
    %v1311 = vshll.u32 %v1310, 16
    %v1312 = vadd.s32 %v1311, %v1309
    %v1313 = vsel %vm751, %v1267, 2147483647
    %v1314 = vand.u32 %v1313, 65535
    %v1315 = vshra.s32 %v1313, 16
    %v1316 = vcvt.s32.f32 %v1314
    %v1317 = vcvt.s32.f32 %v1315
    %1318 = vmin.xlane.f32.xlu0 %v1317
    %v1319 = vpop.xlane.xlu0 %1318
    %vm1320 = vcmp.eq.f32.partialorder %v1317, %v1319
    %v1321 = vsel %vm1320, %v1316, inf
    %1322 = vmin.xlane.f32.xlu0 %v1321
    %v1323 = vpop.xlane.xlu0 %1322
    %v1324 = vcvt.f32.s32 %v1323
    %v1325 = vcvt.f32.s32 %v1319
    %v1326 = vshll.u32 %v1325, 16
    %v1327 = vadd.s32 %v1326, %v1324
    %v1328 = vsel %vm751, %v1268, 2147483647
    %v1329 = vand.u32 %v1328, 65535
    %v1330 = vshra.s32 %v1328, 16
    %v1331 = vcvt.s32.f32 %v1329
    %v1332 = vcvt.s32.f32 %v1330
    %1333 = vmin.xlane.f32.xlu0 %v1332
    %v1334 = vpop.xlane.xlu0 %1333
    %vm1335 = vcmp.eq.f32.partialorder %v1332, %v1334
    %v1336 = vsel %vm1335, %v1331, inf
    %1337 = vmin.xlane.f32.xlu0 %v1336
    %v1338 = vpop.xlane.xlu0 %1337
    %v1339 = vcvt.f32.s32 %v1338
    %v1340 = vcvt.f32.s32 %v1334
    %v1341 = vshll.u32 %v1340, 16
    %v1342 = vadd.s32 %v1341, %v1339
    %v1343 = vsel %vm751, %v1269, 2147483647
    %v1344 = vand.u32 %v1343, 65535
    %v1345 = vshra.s32 %v1343, 16
    %v1346 = vcvt.s32.f32 %v1344
    %v1347 = vcvt.s32.f32 %v1345
    %1348 = vmin.xlane.f32.xlu0 %v1347
    %v1349 = vpop.xlane.xlu0 %1348
    %vm1350 = vcmp.eq.f32.partialorder %v1347, %v1349
    %v1351 = vsel %vm1350, %v1346, inf
    %1352 = vmin.xlane.f32.xlu0 %v1351
    %v1353 = vpop.xlane.xlu0 %1352
    %v1354 = vcvt.f32.s32 %v1353
    %v1355 = vcvt.f32.s32 %v1349
    %v1356 = vshll.u32 %v1355, 16
    %v1357 = vadd.s32 %v1356, %v1354
    %v1358 = vsel %vm751, %v1270, 2147483647
    %v1359 = vand.u32 %v1358, 65535
    %v1360 = vshra.s32 %v1358, 16
    %v1361 = vcvt.s32.f32 %v1359
    %v1362 = vcvt.s32.f32 %v1360
    %1363 = vmin.xlane.f32.xlu0 %v1362
    %v1364 = vpop.xlane.xlu0 %1363
    %vm1365 = vcmp.eq.f32.partialorder %v1362, %v1364
    %v1366 = vsel %vm1365, %v1361, inf
    %1367 = vmin.xlane.f32.xlu0 %v1366
    %v1368 = vpop.xlane.xlu0 %1367
    %v1369 = vcvt.f32.s32 %v1368
    %v1370 = vcvt.f32.s32 %v1364
    %v1371 = vshll.u32 %v1370, 16
    %v1372 = vadd.s32 %v1371, %v1369
    %v1373 = vsel %vm751, %v1271, 2147483647
    %v1374 = vand.u32 %v1373, 65535
    %v1375 = vshra.s32 %v1373, 16
    %v1376 = vcvt.s32.f32 %v1374
    %v1377 = vcvt.s32.f32 %v1375
    %1378 = vmin.xlane.f32.xlu0 %v1377
    %v1379 = vpop.xlane.xlu0 %1378
    %vm1380 = vcmp.eq.f32.partialorder %v1377, %v1379
    %v1381 = vsel %vm1380, %v1376, inf
    %1382 = vmin.xlane.f32.xlu0 %v1381
    %v1383 = vpop.xlane.xlu0 %1382
    %v1384 = vcvt.f32.s32 %v1383
    %v1385 = vcvt.f32.s32 %v1379
    %v1386 = vshll.u32 %v1385, 16
    %v1387 = vadd.s32 %v1386, %v1384
    %v1388 = vsel %vm751, %v1272, 2147483647
    %v1389 = vand.u32 %v1388, 65535
    %v1390 = vshra.s32 %v1388, 16
    %v1391 = vcvt.s32.f32 %v1389
    %v1392 = vcvt.s32.f32 %v1390
    %1393 = vmin.xlane.f32.xlu0 %v1392
    %v1394 = vpop.xlane.xlu0 %1393
    %vm1395 = vcmp.eq.f32.partialorder %v1392, %v1394
    %v1396 = vsel %vm1395, %v1391, inf
    %1397 = vmin.xlane.f32.xlu0 %v1396
    %v1398 = vpop.xlane.xlu0 %1397
    %v1399 = vcvt.f32.s32 %v1398
    %v1400 = vcvt.f32.s32 %v1394
    %v1401 = vshll.u32 %v1400, 16
    %v1402 = vadd.s32 %v1401, %v1399
    %v1403 = vsel %vm751, %v1273, 2147483647
    %v1404 = vand.u32 %v1403, 65535
    %v1405 = vshra.s32 %v1403, 16
    %v1406 = vcvt.s32.f32 %v1404
    %v1407 = vcvt.s32.f32 %v1405
    %1408 = vmin.xlane.f32.xlu0 %v1407
    %v1409 = vpop.xlane.xlu0 %1408
    %vm1410 = vcmp.eq.f32.partialorder %v1407, %v1409
    %v1411 = vsel %vm1410, %v1406, inf
    %1412 = vmin.xlane.f32.xlu0 %v1411
    %v1413 = vpop.xlane.xlu0 %1412
    %v1414 = vcvt.f32.s32 %v1413
    %v1415 = vcvt.f32.s32 %v1409
    %v1416 = vshll.u32 %v1415, 16
    %v1417 = vadd.s32 %v1416, %v1414
    %v1418 = vsel %vm751, %v1274, 2147483647
    %v1419 = vand.u32 %v1418, 65535
    %v1420 = vshra.s32 %v1418, 16
    %v1421 = vcvt.s32.f32 %v1419
    %v1422 = vcvt.s32.f32 %v1420
    %1423 = vmin.xlane.f32.xlu0 %v1422
    %v1424 = vpop.xlane.xlu0 %1423
    %vm1425 = vcmp.eq.f32.partialorder %v1422, %v1424
    %v1426 = vsel %vm1425, %v1421, inf
    %1427 = vmin.xlane.f32.xlu0 %v1426
    %v1428 = vpop.xlane.xlu0 %1427
    %v1429 = vcvt.f32.s32 %v1428
    %v1430 = vcvt.f32.s32 %v1424
    %v1431 = vshll.u32 %v1430, 16
    %v1432 = vadd.s32 %v1431, %v1429
    %v1433 = vsel %vm751, %v1275, 2147483647
    %v1434 = vand.u32 %v1433, 65535
    %v1435 = vshra.s32 %v1433, 16
    %v1436 = vcvt.s32.f32 %v1434
    %v1437 = vcvt.s32.f32 %v1435
    %1438 = vmin.xlane.f32.xlu0 %v1437
    %v1439 = vpop.xlane.xlu0 %1438
    %vm1440 = vcmp.eq.f32.partialorder %v1437, %v1439
    %v1441 = vsel %vm1440, %v1436, inf
    %1442 = vmin.xlane.f32.xlu0 %v1441
    %v1443 = vpop.xlane.xlu0 %1442
    %v1444 = vcvt.f32.s32 %v1443
    %v1445 = vcvt.f32.s32 %v1439
    %v1446 = vshll.u32 %v1445, 16
    %v1447 = vadd.s32 %v1446, %v1444
    %v1448 = vsel %vm751, %v1276, 2147483647
    %v1449 = vand.u32 %v1448, 65535
    %v1450 = vshra.s32 %v1448, 16
    %v1451 = vcvt.s32.f32 %v1449
    %v1452 = vcvt.s32.f32 %v1450
    %1453 = vmin.xlane.f32.xlu0 %v1452
    %v1454 = vpop.xlane.xlu0 %1453
    %vm1455 = vcmp.eq.f32.partialorder %v1452, %v1454
    %v1456 = vsel %vm1455, %v1451, inf
    %1457 = vmin.xlane.f32.xlu0 %v1456
    %v1458 = vpop.xlane.xlu0 %1457
    %v1459 = vcvt.f32.s32 %v1458
    %v1460 = vcvt.f32.s32 %v1454
    %v1461 = vshll.u32 %v1460, 16
    %v1462 = vadd.s32 %v1461, %v1459
    %v1463 = vsel %vm751, %v1277, 2147483647
    %v1464 = vand.u32 %v1463, 65535
    %v1465 = vshra.s32 %v1463, 16
    %v1466 = vcvt.s32.f32 %v1464
    %v1467 = vcvt.s32.f32 %v1465
    %1468 = vmin.xlane.f32.xlu0 %v1467
    %v1469 = vpop.xlane.xlu0 %1468
    %vm1470 = vcmp.eq.f32.partialorder %v1467, %v1469
    %v1471 = vsel %vm1470, %v1466, inf
    %1472 = vmin.xlane.f32.xlu0 %v1471
    %v1473 = vpop.xlane.xlu0 %1472
    %v1474 = vcvt.f32.s32 %v1473
    %v1475 = vcvt.f32.s32 %v1469
    %v1476 = vshll.u32 %v1475, 16
    %v1477 = vadd.s32 %v1476, %v1474
    %v1478 = vsel %vm751, %v1278, 2147483647
    %v1479 = vand.u32 %v1478, 65535
    %v1480 = vshra.s32 %v1478, 16
    %v1481 = vcvt.s32.f32 %v1479
    %v1482 = vcvt.s32.f32 %v1480
    %1483 = vmin.xlane.f32.xlu0 %v1482
    %v1484 = vpop.xlane.xlu0 %1483
    %vm1485 = vcmp.eq.f32.partialorder %v1482, %v1484
    %v1486 = vsel %vm1485, %v1481, inf
    %1487 = vmin.xlane.f32.xlu0 %v1486
    %v1488 = vpop.xlane.xlu0 %1487
    %v1489 = vcvt.f32.s32 %v1488
    %v1490 = vcvt.f32.s32 %v1484
    %v1491 = vshll.u32 %v1490, 16
    %v1492 = vadd.s32 %v1491, %v1489
    %v1493 = vsel %vm751, %v1279, 2147483647
    %v1494 = vand.u32 %v1493, 65535
    %v1495 = vshra.s32 %v1493, 16
    %v1496 = vcvt.s32.f32 %v1494
    %v1497 = vcvt.s32.f32 %v1495
    %1498 = vmin.xlane.f32.xlu0 %v1497
    %v1499 = vpop.xlane.xlu0 %1498
    %vm1500 = vcmp.eq.f32.partialorder %v1497, %v1499
    %v1501 = vsel %vm1500, %v1496, inf
    %1502 = vmin.xlane.f32.xlu0 %v1501
    %v1503 = vpop.xlane.xlu0 %1502
    %v1504 = vcvt.f32.s32 %v1503
    %v1505 = vcvt.f32.s32 %v1499
    %v1506 = vshll.u32 %v1505, 16
    %v1507 = vadd.s32 %v1506, %v1504
    %v1508 = vsel %vm751, %v1280, 2147483647
    %v1509 = vand.u32 %v1508, 65535
    %v1510 = vshra.s32 %v1508, 16
    %v1511 = vcvt.s32.f32 %v1509
    %v1512 = vcvt.s32.f32 %v1510
    %1513 = vmin.xlane.f32.xlu0 %v1512
    %v1514 = vpop.xlane.xlu0 %1513
    %vm1515 = vcmp.eq.f32.partialorder %v1512, %v1514
    %v1516 = vsel %vm1515, %v1511, inf
    %1517 = vmin.xlane.f32.xlu0 %v1516
    %v1518 = vpop.xlane.xlu0 %1517
    %v1519 = vcvt.f32.s32 %v1518
    %v1520 = vcvt.f32.s32 %v1514
    %v1521 = vshll.u32 %v1520, 16
    %v1522 = vadd.s32 %v1521, %v1519
    %v1523 = vsel %vm751, %v1281, 2147483647
    %v1524 = vand.u32 %v1523, 65535
    %v1525 = vshra.s32 %v1523, 16
    %v1526 = vcvt.s32.f32 %v1524
    %v1527 = vcvt.s32.f32 %v1525
    %1528 = vmin.xlane.f32.xlu0 %v1527
    %v1529 = vpop.xlane.xlu0 %1528
    %vm1530 = vcmp.eq.f32.partialorder %v1527, %v1529
    %v1531 = vsel %vm1530, %v1526, inf
    %1532 = vmin.xlane.f32.xlu0 %v1531
    %v1533 = vpop.xlane.xlu0 %1532
    %v1534 = vcvt.f32.s32 %v1533
    %v1535 = vcvt.f32.s32 %v1529
    %v1536 = vshll.u32 %v1535, 16
    %v1537 = vadd.s32 %v1536, %v1534
    %v1538 = vsel %vm751, %v1282, 2147483647
    %v1539 = vand.u32 %v1538, 65535
    %v1540 = vshra.s32 %v1538, 16
    %v1541 = vcvt.s32.f32 %v1539
    %v1542 = vcvt.s32.f32 %v1540
    %1543 = vmin.xlane.f32.xlu0 %v1542
    %v1544 = vpop.xlane.xlu0 %1543
    %vm1545 = vcmp.eq.f32.partialorder %v1542, %v1544
    %v1546 = vsel %vm1545, %v1541, inf
    %1547 = vmin.xlane.f32.xlu0 %v1546
    %v1548 = vpop.xlane.xlu0 %1547
    %v1549 = vcvt.f32.s32 %v1548
    %v1550 = vcvt.f32.s32 %v1544
    %v1551 = vshll.u32 %v1550, 16
    %v1552 = vadd.s32 %v1551, %v1549
    %v1553 = vsel %vm751, %v1283, 2147483647
    %v1554 = vand.u32 %v1553, 65535
    %v1555 = vshra.s32 %v1553, 16
    %v1556 = vcvt.s32.f32 %v1554
    %v1557 = vcvt.s32.f32 %v1555
    %1558 = vmin.xlane.f32.xlu0 %v1557
    %v1559 = vpop.xlane.xlu0 %1558
    %vm1560 = vcmp.eq.f32.partialorder %v1557, %v1559
    %v1561 = vsel %vm1560, %v1556, inf
    %1562 = vmin.xlane.f32.xlu0 %v1561
    %v1563 = vpop.xlane.xlu0 %1562
    %v1564 = vcvt.f32.s32 %v1563
    %v1565 = vcvt.f32.s32 %v1559
    %v1566 = vshll.u32 %v1565, 16
    %v1567 = vadd.s32 %v1566, %v1564
    %v1568 = vsel %vm751, %v1284, 2147483647
    %v1569 = vand.u32 %v1568, 65535
    %v1570 = vshra.s32 %v1568, 16
    %v1571 = vcvt.s32.f32 %v1569
    %v1572 = vcvt.s32.f32 %v1570
    %1573 = vmin.xlane.f32.xlu0 %v1572
    %v1574 = vpop.xlane.xlu0 %1573
    %vm1575 = vcmp.eq.f32.partialorder %v1572, %v1574
    %v1576 = vsel %vm1575, %v1571, inf
    %1577 = vmin.xlane.f32.xlu0 %v1576
    %v1578 = vpop.xlane.xlu0 %1577
    %v1579 = vcvt.f32.s32 %v1578
    %v1580 = vcvt.f32.s32 %v1574
    %v1581 = vshll.u32 %v1580, 16
    %v1582 = vadd.s32 %v1581, %v1579
    %v1583 = vsel %vm751, %v1285, 2147483647
    %v1584 = vand.u32 %v1583, 65535
    %v1585 = vshra.s32 %v1583, 16
    %v1586 = vcvt.s32.f32 %v1584
    %v1587 = vcvt.s32.f32 %v1585
    %1588 = vmin.xlane.f32.xlu0 %v1587
    %v1589 = vpop.xlane.xlu0 %1588
    %vm1590 = vcmp.eq.f32.partialorder %v1587, %v1589
    %v1591 = vsel %vm1590, %v1586, inf
    %1592 = vmin.xlane.f32.xlu0 %v1591
    %v1593 = vpop.xlane.xlu0 %1592
    %v1594 = vcvt.f32.s32 %v1593
    %v1595 = vcvt.f32.s32 %v1589
    %v1596 = vshll.u32 %v1595, 16
    %v1597 = vadd.s32 %v1596, %v1594
    %v1598 = vsel %vm751, %v1286, 2147483647
    %v1599 = vand.u32 %v1598, 65535
    %v1600 = vshra.s32 %v1598, 16
    %v1601 = vcvt.s32.f32 %v1599
    %v1602 = vcvt.s32.f32 %v1600
    %1603 = vmin.xlane.f32.xlu0 %v1602
    %v1604 = vpop.xlane.xlu0 %1603
    %vm1605 = vcmp.eq.f32.partialorder %v1602, %v1604
    %v1606 = vsel %vm1605, %v1601, inf
    %1607 = vmin.xlane.f32.xlu0 %v1606
    %v1608 = vpop.xlane.xlu0 %1607
    %v1609 = vcvt.f32.s32 %v1608
    %v1610 = vcvt.f32.s32 %v1604
    %v1611 = vshll.u32 %v1610, 16
    %v1612 = vadd.s32 %v1611, %v1609
    %v1613 = vsel %vm751, %v1287, 2147483647
    %v1614 = vand.u32 %v1613, 65535
    %v1615 = vshra.s32 %v1613, 16
    %v1616 = vcvt.s32.f32 %v1614
    %v1617 = vcvt.s32.f32 %v1615
    %1618 = vmin.xlane.f32.xlu0 %v1617
    %v1619 = vpop.xlane.xlu0 %1618
    %vm1620 = vcmp.eq.f32.partialorder %v1617, %v1619
    %v1621 = vsel %vm1620, %v1616, inf
    %1622 = vmin.xlane.f32.xlu0 %v1621
    %v1623 = vpop.xlane.xlu0 %1622
    %v1624 = vcvt.f32.s32 %v1623
    %v1625 = vcvt.f32.s32 %v1619
    %v1626 = vshll.u32 %v1625, 16
    %v1627 = vadd.s32 %v1626, %v1624
    %v1628 = vsel %vm751, %v1288, 2147483647
    %v1629 = vand.u32 %v1628, 65535
    %v1630 = vshra.s32 %v1628, 16
    %v1631 = vcvt.s32.f32 %v1629
    %v1632 = vcvt.s32.f32 %v1630
    %1633 = vmin.xlane.f32.xlu0 %v1632
    %v1634 = vpop.xlane.xlu0 %1633
    %vm1635 = vcmp.eq.f32.partialorder %v1632, %v1634
    %v1636 = vsel %vm1635, %v1631, inf
    %1637 = vmin.xlane.f32.xlu0 %v1636
    %v1638 = vpop.xlane.xlu0 %1637
    %v1639 = vcvt.f32.s32 %v1638
    %v1640 = vcvt.f32.s32 %v1634
    %v1641 = vshll.u32 %v1640, 16
    %v1642 = vadd.s32 %v1641, %v1639
    %v1643 = vsel %vm751, %v1289, 2147483647
    %v1644 = vand.u32 %v1643, 65535
    %v1645 = vshra.s32 %v1643, 16
    %v1646 = vcvt.s32.f32 %v1644
    %v1647 = vcvt.s32.f32 %v1645
    %1648 = vmin.xlane.f32.xlu0 %v1647
    %v1649 = vpop.xlane.xlu0 %1648
    %vm1650 = vcmp.eq.f32.partialorder %v1647, %v1649
    %v1651 = vsel %vm1650, %v1646, inf
    %1652 = vmin.xlane.f32.xlu0 %v1651
    %v1653 = vpop.xlane.xlu0 %1652
    %v1654 = vcvt.f32.s32 %v1653
    %v1655 = vcvt.f32.s32 %v1649
    %v1656 = vshll.u32 %v1655, 16
    %v1657 = vadd.s32 %v1656, %v1654
    %v1658 = vsel %vm751, %v1290, 2147483647
    %v1659 = vand.u32 %v1658, 65535
    %v1660 = vshra.s32 %v1658, 16
    %v1661 = vcvt.s32.f32 %v1659
    %v1662 = vcvt.s32.f32 %v1660
    %1663 = vmin.xlane.f32.xlu0 %v1662
    %v1664 = vpop.xlane.xlu0 %1663
    %vm1665 = vcmp.eq.f32.partialorder %v1662, %v1664
    %v1666 = vsel %vm1665, %v1661, inf
    %1667 = vmin.xlane.f32.xlu0 %v1666
    %v1668 = vpop.xlane.xlu0 %1667
    %v1669 = vcvt.f32.s32 %v1668
    %v1670 = vcvt.f32.s32 %v1664
    %v1671 = vshll.u32 %v1670, 16
    %v1672 = vadd.s32 %v1671, %v1669
    %v1673 = vsel %vm751, %v1291, 2147483647
    %v1674 = vand.u32 %v1673, 65535
    %v1675 = vshra.s32 %v1673, 16
    %v1676 = vcvt.s32.f32 %v1674
    %v1677 = vcvt.s32.f32 %v1675
    %1678 = vmin.xlane.f32.xlu0 %v1677
    %v1679 = vpop.xlane.xlu0 %1678
    %vm1680 = vcmp.eq.f32.partialorder %v1677, %v1679
    %v1681 = vsel %vm1680, %v1676, inf
    %1682 = vmin.xlane.f32.xlu0 %v1681
    %v1683 = vpop.xlane.xlu0 %1682
    %v1684 = vcvt.f32.s32 %v1683
    %v1685 = vcvt.f32.s32 %v1679
    %v1686 = vshll.u32 %v1685, 16
    %v1687 = vadd.s32 %v1686, %v1684
    %v1688 = vsel %vm751, %v1292, 2147483647
    %v1689 = vand.u32 %v1688, 65535
    %v1690 = vshra.s32 %v1688, 16
    %v1691 = vcvt.s32.f32 %v1689
    %v1692 = vcvt.s32.f32 %v1690
    %1693 = vmin.xlane.f32.xlu0 %v1692
    %v1694 = vpop.xlane.xlu0 %1693
    %vm1695 = vcmp.eq.f32.partialorder %v1692, %v1694
    %v1696 = vsel %vm1695, %v1691, inf
    %1697 = vmin.xlane.f32.xlu0 %v1696
    %v1698 = vpop.xlane.xlu0 %1697
    %v1699 = vcvt.f32.s32 %v1698
    %v1700 = vcvt.f32.s32 %v1694
    %v1701 = vshll.u32 %v1700, 16
    %v1702 = vadd.s32 %v1701, %v1699
    %v1703 = vsel %vm751, %v1293, 2147483647
    %v1704 = vand.u32 %v1703, 65535
    %v1705 = vshra.s32 %v1703, 16
    %v1706 = vcvt.s32.f32 %v1704
    %v1707 = vcvt.s32.f32 %v1705
    %1708 = vmin.xlane.f32.xlu0 %v1707
    %v1709 = vpop.xlane.xlu0 %1708
    %vm1710 = vcmp.eq.f32.partialorder %v1707, %v1709
    %v1711 = vsel %vm1710, %v1706, inf
    %1712 = vmin.xlane.f32.xlu0 %v1711
    %v1713 = vpop.xlane.xlu0 %1712
    %v1714 = vcvt.f32.s32 %v1713
    %v1715 = vcvt.f32.s32 %v1709
    %v1716 = vshll.u32 %v1715, 16
    %v1717 = vadd.s32 %v1716, %v1714
    %v1718 = vsel %vm751, %v1294, 2147483647
    %v1719 = vand.u32 %v1718, 65535
    %v1720 = vshra.s32 %v1718, 16
    %v1721 = vcvt.s32.f32 %v1719
    %v1722 = vcvt.s32.f32 %v1720
    %1723 = vmin.xlane.f32.xlu0 %v1722
    %v1724 = vpop.xlane.xlu0 %1723
    %vm1725 = vcmp.eq.f32.partialorder %v1722, %v1724
    %v1726 = vsel %vm1725, %v1721, inf
    %1727 = vmin.xlane.f32.xlu0 %v1726
    %v1728 = vpop.xlane.xlu0 %1727
    %v1729 = vcvt.f32.s32 %v1728
    %v1730 = vcvt.f32.s32 %v1724
    %v1731 = vshll.u32 %v1730, 16
    %v1732 = vadd.s32 %v1731, %v1729
    %v1733 = vsel %vm751, %v1295, 2147483647
    %v1734 = vand.u32 %v1733, 65535
    %v1735 = vshra.s32 %v1733, 16
    %v1736 = vcvt.s32.f32 %v1734
    %v1737 = vcvt.s32.f32 %v1735
    %1738 = vmin.xlane.f32.xlu0 %v1737
    %v1739 = vpop.xlane.xlu0 %1738
    %vm1740 = vcmp.eq.f32.partialorder %v1737, %v1739
    %v1741 = vsel %vm1740, %v1736, inf
    %1742 = vmin.xlane.f32.xlu0 %v1741
    %v1743 = vpop.xlane.xlu0 %1742
    %v1744 = vcvt.f32.s32 %v1743
    %v1745 = vcvt.f32.s32 %v1739
    %v1746 = vshll.u32 %v1745, 16
    %v1747 = vadd.s32 %v1746, %v1744
    %v1748 = vsel %vm751, %v1296, 2147483647
    %v1749 = vand.u32 %v1748, 65535
    %v1750 = vshra.s32 %v1748, 16
    %v1751 = vcvt.s32.f32 %v1749
    %v1752 = vcvt.s32.f32 %v1750
    %1753 = vmin.xlane.f32.xlu0 %v1752
    %v1754 = vpop.xlane.xlu0 %1753
    %vm1755 = vcmp.eq.f32.partialorder %v1752, %v1754
    %v1756 = vsel %vm1755, %v1751, inf
    %1757 = vmin.xlane.f32.xlu0 %v1756
    %v1758 = vpop.xlane.xlu0 %1757
    %v1759 = vcvt.f32.s32 %v1758
    %v1760 = vcvt.f32.s32 %v1754
    %v1761 = vshll.u32 %v1760, 16
    %v1762 = vadd.s32 %v1761, %v1759
    %v1763 = vsel %vm751, %v1297, 2147483647
    %v1764 = vand.u32 %v1763, 65535
    %v1765 = vshra.s32 %v1763, 16
    %v1766 = vcvt.s32.f32 %v1764
    %v1767 = vcvt.s32.f32 %v1765
    %1768 = vmin.xlane.f32.xlu0 %v1767
    %v1769 = vpop.xlane.xlu0 %1768
    %vm1770 = vcmp.eq.f32.partialorder %v1767, %v1769
    %v1771 = vsel %vm1770, %v1766, inf
    %1772 = vmin.xlane.f32.xlu0 %v1771
    %v1773 = vpop.xlane.xlu0 %1772
    %v1774 = vcvt.f32.s32 %v1773
    %v1775 = vcvt.f32.s32 %v1769
    %v1776 = vshll.u32 %v1775, 16
    %v1777 = vadd.s32 %v1776, %v1774
    %vm1778 = vcmp.eq.s32.totalorder %v1137, %v1312
    %vm1779 = vcmp.eq.s32.totalorder %v1137, %v1327
    %vm1780 = vcmp.eq.s32.totalorder %v1137, %v1342
    %vm1781 = vcmp.eq.s32.totalorder %v1137, %v1357
    %vm1782 = vcmp.eq.s32.totalorder %v1137, %v1372
    %vm1783 = vcmp.eq.s32.totalorder %v1137, %v1387
    %vm1784 = vcmp.eq.s32.totalorder %v1137, %v1402
    %vm1785 = vcmp.eq.s32.totalorder %v1137, %v1417
    %vm1786 = vcmp.eq.s32.totalorder %v1137, %v1432
    %vm1787 = vcmp.eq.s32.totalorder %v1137, %v1447
    %vm1788 = vcmp.eq.s32.totalorder %v1137, %v1462
    %vm1789 = vcmp.eq.s32.totalorder %v1137, %v1477
    %vm1790 = vcmp.eq.s32.totalorder %v1137, %v1492
    %vm1791 = vcmp.eq.s32.totalorder %v1137, %v1507
    %vm1792 = vcmp.eq.s32.totalorder %v1137, %v1522
    %vm1793 = vcmp.eq.s32.totalorder %v1137, %v1537
    %vm1794 = vcmp.eq.s32.totalorder %v1137, %v1552
    %vm1795 = vcmp.eq.s32.totalorder %v1137, %v1567
    %vm1796 = vcmp.eq.s32.totalorder %v1137, %v1582
    %vm1797 = vcmp.eq.s32.totalorder %v1137, %v1597
    %vm1798 = vcmp.eq.s32.totalorder %v1137, %v1612
    %vm1799 = vcmp.eq.s32.totalorder %v1137, %v1627
    %vm1800 = vcmp.eq.s32.totalorder %v1137, %v1642
    %vm1801 = vcmp.eq.s32.totalorder %v1137, %v1657
    %vm1802 = vcmp.eq.s32.totalorder %v1137, %v1672
    %vm1803 = vcmp.eq.s32.totalorder %v1137, %v1687
    %vm1804 = vcmp.eq.s32.totalorder %v1137, %v1702
    %vm1805 = vcmp.eq.s32.totalorder %v1137, %v1717
    %vm1806 = vcmp.eq.s32.totalorder %v1137, %v1732
    %vm1807 = vcmp.eq.s32.totalorder %v1137, %v1747
    %vm1808 = vcmp.eq.s32.totalorder %v1137, %v1762
    %vm1809 = vcmp.eq.s32.totalorder %v1137, %v1777
    %v1810 = vsel %vm1778, 1, 0
    %v1811 = vsel %vm1779, 1, 0
    %v1812 = vsel %vm1780, 1, 0
    %v1813 = vsel %vm1781, 1, 0
    %v1814 = vsel %vm1782, 1, 0
    %v1815 = vsel %vm1783, 1, 0
    %v1816 = vsel %vm1784, 1, 0
    %v1817 = vsel %vm1785, 1, 0
    %v1818 = vsel %vm1786, 1, 0
    %v1819 = vsel %vm1787, 1, 0
    %v1820 = vsel %vm1788, 1, 0
    %v1821 = vsel %vm1789, 1, 0
    %v1822 = vsel %vm1790, 1, 0
    %v1823 = vsel %vm1791, 1, 0
    %v1824 = vsel %vm1792, 1, 0
    %v1825 = vsel %vm1793, 1, 0
    %v1826 = vsel %vm1794, 1, 0
    %v1827 = vsel %vm1795, 1, 0
    %v1828 = vsel %vm1796, 1, 0
    %v1829 = vsel %vm1797, 1, 0
    %v1830 = vsel %vm1798, 1, 0
    %v1831 = vsel %vm1799, 1, 0
    %v1832 = vsel %vm1800, 1, 0
    %v1833 = vsel %vm1801, 1, 0
    %v1834 = vsel %vm1802, 1, 0
    %v1835 = vsel %vm1803, 1, 0
    %v1836 = vsel %vm1804, 1, 0
    %v1837 = vsel %vm1805, 1, 0
    %v1838 = vsel %vm1806, 1, 0
    %v1839 = vsel %vm1807, 1, 0
    %v1840 = vsel %vm1808, 1, 0
    %v1841 = vsel %vm1809, 1, 0
    %v1842 = vcvt.s32.f32 %v1810
    %v1843 = vcvt.s32.f32 %v1811
    %v1844 = vcvt.s32.f32 %v1812
    %v1845 = vcvt.s32.f32 %v1813
    %v1846 = vcvt.s32.f32 %v1814
    %v1847 = vcvt.s32.f32 %v1815
    %v1848 = vcvt.s32.f32 %v1816
    %v1849 = vcvt.s32.f32 %v1817
    %v1850 = vcvt.s32.f32 %v1818
    %v1851 = vcvt.s32.f32 %v1819
    %v1852 = vcvt.s32.f32 %v1820
    %v1853 = vcvt.s32.f32 %v1821
    %v1854 = vcvt.s32.f32 %v1822
    %v1855 = vcvt.s32.f32 %v1823
    %v1856 = vcvt.s32.f32 %v1824
    %v1857 = vcvt.s32.f32 %v1825
    %v1858 = vcvt.s32.f32 %v1826
    %v1859 = vcvt.s32.f32 %v1827
    %v1860 = vcvt.s32.f32 %v1828
    %v1861 = vcvt.s32.f32 %v1829
    %v1862 = vcvt.s32.f32 %v1830
    %v1863 = vcvt.s32.f32 %v1831
    %v1864 = vcvt.s32.f32 %v1832
    %v1865 = vcvt.s32.f32 %v1833
    %v1866 = vcvt.s32.f32 %v1834
    %v1867 = vcvt.s32.f32 %v1835
    %v1868 = vcvt.s32.f32 %v1836
    %v1869 = vcvt.s32.f32 %v1837
    %v1870 = vcvt.s32.f32 %v1838
    %v1871 = vcvt.s32.f32 %v1839
    %v1872 = vcvt.s32.f32 %v1840
    %v1873 = vcvt.s32.f32 %v1841
    %v1874 = vmul.f32 %v881, %v1041
    %v1875 = vmul.f32 %v883, %v1043
    %v1876 = vmul.f32 %v885, %v1045
    %v1877 = vmul.f32 %v887, %v1047
    %v1878 = vmul.f32 %v889, %v1049
    %v1879 = vmul.f32 %v891, %v1051
    %v1880 = vmul.f32 %v893, %v1053
    %v1881 = vmul.f32 %v895, %v1055
    %v1882 = vmul.f32 %v897, %v1057
    %v1883 = vmul.f32 %v899, %v1059
    %v1884 = vmul.f32 %v901, %v1061
    %v1885 = vmul.f32 %v903, %v1063
    %v1886 = vmul.f32 %v905, %v1065
    %v1887 = vmul.f32 %v907, %v1067
    %v1888 = vmul.f32 %v909, %v1069
    %v1889 = vmul.f32 %v911, %v1071
    %v1890 = vmul.f32 %v913, %v1073
    %v1891 = vmul.f32 %v915, %v1075
    %v1892 = vmul.f32 %v917, %v1077
    %v1893 = vmul.f32 %v919, %v1079
    %v1894 = vmul.f32 %v921, %v1081
    %v1895 = vmul.f32 %v923, %v1083
    %v1896 = vmul.f32 %v925, %v1085
    %v1897 = vmul.f32 %v927, %v1087
    %v1898 = vmul.f32 %v929, %v1089
    %v1899 = vmul.f32 %v931, %v1091
    %v1900 = vmul.f32 %v933, %v1093
    %v1901 = vmul.f32 %v935, %v1095
    %v1902 = vmul.f32 %v937, %v1097
    %v1903 = vmul.f32 %v939, %v1099
    %v1904 = vmul.f32 %v941, %v1101
    %v1905 = vmul.f32 %v943, %v1103
    %v1906 = vsub.f32 %v1874, %v1842
    %v1907 = vsub.f32 %v1875, %v1843
    %v1908 = vsub.f32 %v1876, %v1844
    %v1909 = vsub.f32 %v1877, %v1845
    %v1910 = vsub.f32 %v1878, %v1846
    %v1911 = vsub.f32 %v1879, %v1847
    %v1912 = vsub.f32 %v1880, %v1848
    %v1913 = vsub.f32 %v1881, %v1849
    %v1914 = vsub.f32 %v1882, %v1850
    %v1915 = vsub.f32 %v1883, %v1851
    %v1916 = vsub.f32 %v1884, %v1852
    %v1917 = vsub.f32 %v1885, %v1853
    %v1918 = vsub.f32 %v1886, %v1854
    %v1919 = vsub.f32 %v1887, %v1855
    %v1920 = vsub.f32 %v1888, %v1856
    %v1921 = vsub.f32 %v1889, %v1857
    %v1922 = vsub.f32 %v1890, %v1858
    %v1923 = vsub.f32 %v1891, %v1859
    %v1924 = vsub.f32 %v1892, %v1860
    %v1925 = vsub.f32 %v1893, %v1861
    %v1926 = vsub.f32 %v1894, %v1862
    %v1927 = vsub.f32 %v1895, %v1863
    %v1928 = vsub.f32 %v1896, %v1864
    %v1929 = vsub.f32 %v1897, %v1865
    %v1930 = vsub.f32 %v1898, %v1866
    %v1931 = vsub.f32 %v1899, %v1867
    %v1932 = vsub.f32 %v1900, %v1868
    %v1933 = vsub.f32 %v1901, %v1869
    %v1934 = vsub.f32 %v1902, %v1870
    %v1935 = vsub.f32 %v1903, %v1871
    %v1936 = vsub.f32 %v1904, %v1872
    %v1937 = vsub.f32 %v1905, %v1873
    %v1938 = vpack.c.bf16 %v1907, %v1906
    %v1939 = vpack.c.bf16 %v1909, %v1908
    %v1940 = vpack.c.bf16 %v1911, %v1910
    %v1941 = vpack.c.bf16 %v1913, %v1912
    %v1942 = vpack.c.bf16 %v1915, %v1914
    %v1943 = vpack.c.bf16 %v1917, %v1916
    %v1944 = vpack.c.bf16 %v1919, %v1918
    %v1945 = vpack.c.bf16 %v1921, %v1920
    %v1946 = vpack.c.bf16 %v1923, %v1922
    %v1947 = vpack.c.bf16 %v1925, %v1924
    %v1948 = vpack.c.bf16 %v1927, %v1926
    %v1949 = vpack.c.bf16 %v1929, %v1928
    %v1950 = vpack.c.bf16 %v1931, %v1930
    %v1951 = vpack.c.bf16 %v1933, %v1932
    %v1952 = vpack.c.bf16 %v1935, %v1934
    %v1953 = vpack.c.bf16 %v1937, %v1936
    %v1956 = vunpack.c.l.b16 %v174
    %v1957 = vunpack.c.l.b16 %v175
    %v1958 = vpack.c.b16 %v1957, %v1956
    %v1960 = vsel %vm751, %v1938, 0
    %v1963 = vsel %vm751, %v1939, 0
    %v1966 = vsel %vm751, %v1940, 0
    %v1969 = vsel %vm751, %v1941, 0
    %v1972 = vsel %vm751, %v1942, 0
    %v1975 = vsel %vm751, %v1943, 0
    %v1978 = vsel %vm751, %v1944, 0
    %v1981 = vsel %vm751, %v1945, 0
    %v1984 = vsel %vm751, %v1946, 0
    %v1987 = vsel %vm751, %v1947, 0
    %v1990 = vsel %vm751, %v1948, 0
    %v1993 = vsel %vm751, %v1949, 0
    %v1996 = vsel %vm751, %v1950, 0
    %v1999 = vsel %vm751, %v1951, 0
    %v2002 = vsel %vm751, %v1952, 0
    %v2005 = vsel %vm751, %v1953, 0
    %vm2007 = vcmask 1044480
    %v2009 = vsel %vm2007, %v1958, 0
    %2011 = vmatprep.subr.bf16.mxu0 0
    %2012 = vmatpush1.bf16.msra.mxu0 0
    %2013 = vmatprep.subr.bf16.mxu0 0
    %2014 = vmatpush1.bf16.msra.mxu0 0
    %2015 = vmatprep.subr.bf16.mxu0 0
    %2016 = vmatpush1.bf16.msra.mxu0 0
    %2017 = vmatprep.subr.bf16.mxu0 0
    %2018 = vmatpush1.bf16.msra.mxu0 0
    %2019 = vmatprep.subr.bf16.mxu0 0
    %2020 = vmatpush1.bf16.msra.mxu0 0
    %2021 = vmatprep.subr.bf16.mxu0 0
    %2022 = vmatpush1.bf16.msra.mxu0 0
    %2023 = vmatprep.subr.bf16.mxu0 0
    %2024 = vmatpush1.bf16.msra.mxu0 0
    %2025 = vmatprep.subr.bf16.mxu0 0
    %2026 = vmatpush1.bf16.msra.mxu0 %v2009
    %2027 = vmatprep.subr.bf16.mxu0 0
    %2028 = vmatpush2.bf16.msra.mxu0 0
    %2029 = vmatprep.subr.bf16.mxu0 0
    %2030 = vmatpush2.bf16.msra.mxu0 0
    %2031 = vmatprep.subr.bf16.mxu0 0
    %2032 = vmatpush2.bf16.msra.mxu0 0
    %2033 = vmatprep.subr.bf16.mxu0 0
    %2034 = vmatpush2.bf16.msra.mxu0 0
    %2035 = vmatprep.subr.bf16.mxu0 0
    %2036 = vmatpush2.bf16.msra.mxu0 0
    %2037 = vmatprep.subr.bf16.mxu0 0
    %2038 = vmatpush2.bf16.msra.mxu0 0
    %2039 = vmatprep.subr.bf16.mxu0 0
    %2040 = vmatpush2.bf16.msra.mxu0 0
    %2041 = vmatprep.subr.bf16.mxu0 0
    %2042 = vmatpush2.bf16.msra.mxu0 0
    %2043 = vmatprep.mubr.bf16.mxu0 0
    %2044 = vmatmul.mubr.bf16.gmra.mxu0 %v1960
    %v2045 = vpop.f32.mrf.mxu0
    %v2046 = vadd.f32 0.0, %v2045
    %v2047 = vpop.f32.mrf.mxu0
    %v2048 = vpop.f32.mrf.mxu0
    %v2049 = vadd.f32 0.0, %v2048
    %v2050 = vpop.f32.mrf.mxu0
    %2051 = vmatprep.mubr.bf16.mxu0 0
    %2052 = vmatmul.mubr.bf16.gmra.mxu0 %v1963
    %v2053 = vpop.f32.mrf.mxu0
    %v2054 = vadd.f32 0.0, %v2053
    %v2055 = vpop.f32.mrf.mxu0
    %v2056 = vpop.f32.mrf.mxu0
    %v2057 = vadd.f32 0.0, %v2056
    %v2058 = vpop.f32.mrf.mxu0
    %2059 = vmatprep.mubr.bf16.mxu0 0
    %2060 = vmatmul.mubr.bf16.gmra.mxu0 %v1966
    %v2061 = vpop.f32.mrf.mxu0
    %v2062 = vadd.f32 0.0, %v2061
    %v2063 = vpop.f32.mrf.mxu0
    %v2064 = vpop.f32.mrf.mxu0
    %v2065 = vadd.f32 0.0, %v2064
    %v2066 = vpop.f32.mrf.mxu0
    %2067 = vmatprep.mubr.bf16.mxu0 0
    %2068 = vmatmul.mubr.bf16.gmra.mxu0 %v1969
    %v2069 = vpop.f32.mrf.mxu0
    %v2070 = vadd.f32 0.0, %v2069
    %v2071 = vpop.f32.mrf.mxu0
    %v2072 = vpop.f32.mrf.mxu0
    %v2073 = vadd.f32 0.0, %v2072
    %v2074 = vpop.f32.mrf.mxu0
    %2075 = vmatprep.mubr.bf16.mxu0 0
    %2076 = vmatmul.mubr.bf16.gmra.mxu0 %v1972
    %v2077 = vpop.f32.mrf.mxu0
    %v2078 = vadd.f32 0.0, %v2077
    %v2079 = vpop.f32.mrf.mxu0
    %v2080 = vpop.f32.mrf.mxu0
    %v2081 = vadd.f32 0.0, %v2080
    %v2082 = vpop.f32.mrf.mxu0
    %2083 = vmatprep.mubr.bf16.mxu0 0
    %2084 = vmatmul.mubr.bf16.gmra.mxu0 %v1975
    %v2085 = vpop.f32.mrf.mxu0
    %v2086 = vadd.f32 0.0, %v2085
    %v2087 = vpop.f32.mrf.mxu0
    %v2088 = vpop.f32.mrf.mxu0
    %v2089 = vadd.f32 0.0, %v2088
    %v2090 = vpop.f32.mrf.mxu0
    %2091 = vmatprep.mubr.bf16.mxu0 0
    %2092 = vmatmul.mubr.bf16.gmra.mxu0 %v1978
    %v2093 = vpop.f32.mrf.mxu0
    %v2094 = vadd.f32 0.0, %v2093
    %v2095 = vpop.f32.mrf.mxu0
    %v2096 = vpop.f32.mrf.mxu0
    %v2097 = vadd.f32 0.0, %v2096
    %v2098 = vpop.f32.mrf.mxu0
    %2099 = vmatprep.mubr.bf16.mxu0 0
    %2100 = vmatmul.mubr.bf16.gmra.mxu0 %v1981
    %v2101 = vpop.f32.mrf.mxu0
    %v2102 = vadd.f32 0.0, %v2101
    %v2103 = vpop.f32.mrf.mxu0
    %v2104 = vpop.f32.mrf.mxu0
    %v2105 = vadd.f32 0.0, %v2104
    %v2106 = vpop.f32.mrf.mxu0
    %2107 = vmatprep.mubr.bf16.mxu0 0
    %2108 = vmatmul.mubr.bf16.gmra.mxu0 %v1984
    %v2109 = vpop.f32.mrf.mxu0
    %v2110 = vadd.f32 0.0, %v2109
    %v2111 = vpop.f32.mrf.mxu0
    %v2112 = vpop.f32.mrf.mxu0
    %v2113 = vadd.f32 0.0, %v2112
    %v2114 = vpop.f32.mrf.mxu0
    %2115 = vmatprep.mubr.bf16.mxu0 0
    %2116 = vmatmul.mubr.bf16.gmra.mxu0 %v1987
    %v2117 = vpop.f32.mrf.mxu0
    %v2118 = vadd.f32 0.0, %v2117
    %v2119 = vpop.f32.mrf.mxu0
    %v2120 = vpop.f32.mrf.mxu0
    %v2121 = vadd.f32 0.0, %v2120
    %v2122 = vpop.f32.mrf.mxu0
    %2123 = vmatprep.mubr.bf16.mxu0 0
    %2124 = vmatmul.mubr.bf16.gmra.mxu0 %v1990
    %v2125 = vpop.f32.mrf.mxu0
    %v2126 = vadd.f32 0.0, %v2125
    %v2127 = vpop.f32.mrf.mxu0
    %v2128 = vpop.f32.mrf.mxu0
    %v2129 = vadd.f32 0.0, %v2128
    %v2130 = vpop.f32.mrf.mxu0
    %2131 = vmatprep.mubr.bf16.mxu0 0
    %2132 = vmatmul.mubr.bf16.gmra.mxu0 %v1993
    %v2133 = vpop.f32.mrf.mxu0
    %v2134 = vadd.f32 0.0, %v2133
    %v2135 = vpop.f32.mrf.mxu0
    %v2136 = vpop.f32.mrf.mxu0
    %v2137 = vadd.f32 0.0, %v2136
    %v2138 = vpop.f32.mrf.mxu0
    %2139 = vmatprep.mubr.bf16.mxu0 0
    %2140 = vmatmul.mubr.bf16.gmra.mxu0 %v1996
    %v2141 = vpop.f32.mrf.mxu0
    %v2142 = vadd.f32 0.0, %v2141
    %v2143 = vpop.f32.mrf.mxu0
    %v2144 = vpop.f32.mrf.mxu0
    %v2145 = vadd.f32 0.0, %v2144
    %v2146 = vpop.f32.mrf.mxu0
    %2147 = vmatprep.mubr.bf16.mxu0 0
    %2148 = vmatmul.mubr.bf16.gmra.mxu0 %v1999
    %v2149 = vpop.f32.mrf.mxu0
    %v2150 = vadd.f32 0.0, %v2149
    %v2151 = vpop.f32.mrf.mxu0
    %v2152 = vpop.f32.mrf.mxu0
    %v2153 = vadd.f32 0.0, %v2152
    %v2154 = vpop.f32.mrf.mxu0
    %2155 = vmatprep.mubr.bf16.mxu0 0
    %2156 = vmatmul.mubr.bf16.gmra.mxu0 %v2002
    %v2157 = vpop.f32.mrf.mxu0
    %v2158 = vadd.f32 0.0, %v2157
    %v2159 = vpop.f32.mrf.mxu0
    %v2160 = vpop.f32.mrf.mxu0
    %v2161 = vadd.f32 0.0, %v2160
    %v2162 = vpop.f32.mrf.mxu0
    %2163 = vmatprep.mubr.bf16.mxu0 0
    %2164 = vmatmul.mubr.bf16.gmra.mxu0 %v2005
    %v2165 = vpop.f32.mrf.mxu0
    %v2166 = vadd.f32 0.0, %v2165
    %v2167 = vpop.f32.mrf.mxu0
    %v2168 = vpop.f32.mrf.mxu0
    %v2169 = vadd.f32 0.0, %v2168
    %v2170 = vpop.f32.mrf.mxu0
    %2171 = vdwg.mxu0
    %vm2172 = vcmp.gt.f32.partialorder %v362, 0.0
    %vm2173 = vcmp.gt.f32.partialorder %v365, 0.0
    %vm2174 = vcmp.gt.f32.partialorder %v370, 0.0
    %vm2175 = vcmp.gt.f32.partialorder %v373, 0.0
    %vm2176 = vcmp.gt.f32.partialorder %v378, 0.0
    %vm2177 = vcmp.gt.f32.partialorder %v381, 0.0
    %vm2178 = vcmp.gt.f32.partialorder %v386, 0.0
    %vm2179 = vcmp.gt.f32.partialorder %v389, 0.0
    %vm2180 = vcmp.gt.f32.partialorder %v394, 0.0
    %vm2181 = vcmp.gt.f32.partialorder %v397, 0.0
    %vm2182 = vcmp.gt.f32.partialorder %v402, 0.0
    %vm2183 = vcmp.gt.f32.partialorder %v405, 0.0
    %vm2184 = vcmp.gt.f32.partialorder %v410, 0.0
    %vm2185 = vcmp.gt.f32.partialorder %v413, 0.0
    %vm2186 = vcmp.gt.f32.partialorder %v418, 0.0
    %vm2187 = vcmp.gt.f32.partialorder %v421, 0.0
    %vm2188 = vcmp.gt.f32.partialorder %v426, 0.0
    %vm2189 = vcmp.gt.f32.partialorder %v429, 0.0
    %vm2190 = vcmp.gt.f32.partialorder %v434, 0.0
    %vm2191 = vcmp.gt.f32.partialorder %v437, 0.0
    %vm2192 = vcmp.gt.f32.partialorder %v442, 0.0
    %vm2193 = vcmp.gt.f32.partialorder %v445, 0.0
    %vm2194 = vcmp.gt.f32.partialorder %v450, 0.0
    %vm2195 = vcmp.gt.f32.partialorder %v453, 0.0
    %vm2196 = vcmp.gt.f32.partialorder %v458, 0.0
    %vm2197 = vcmp.gt.f32.partialorder %v461, 0.0
    %vm2198 = vcmp.gt.f32.partialorder %v466, 0.0
    %vm2199 = vcmp.gt.f32.partialorder %v469, 0.0
    %vm2200 = vcmp.gt.f32.partialorder %v474, 0.0
    %vm2201 = vcmp.gt.f32.partialorder %v477, 0.0
    %vm2202 = vcmp.gt.f32.partialorder %v482, 0.0
    %vm2203 = vcmp.gt.f32.partialorder %v485, 0.0
    %v2204 = vsel %vm2172, 1, 0
    %v2205 = vsel %vm2173, 1, 0
    %v2206 = vsel %vm2174, 1, 0
    %v2207 = vsel %vm2175, 1, 0
    %v2208 = vsel %vm2176, 1, 0
    %v2209 = vsel %vm2177, 1, 0
    %v2210 = vsel %vm2178, 1, 0
    %v2211 = vsel %vm2179, 1, 0
    %v2212 = vsel %vm2180, 1, 0
    %v2213 = vsel %vm2181, 1, 0
    %v2214 = vsel %vm2182, 1, 0
    %v2215 = vsel %vm2183, 1, 0
    %v2216 = vsel %vm2184, 1, 0
    %v2217 = vsel %vm2185, 1, 0
    %v2218 = vsel %vm2186, 1, 0
    %v2219 = vsel %vm2187, 1, 0
    %v2220 = vsel %vm2188, 1, 0
    %v2221 = vsel %vm2189, 1, 0
    %v2222 = vsel %vm2190, 1, 0
    %v2223 = vsel %vm2191, 1, 0
    %v2224 = vsel %vm2192, 1, 0
    %v2225 = vsel %vm2193, 1, 0
    %v2226 = vsel %vm2194, 1, 0
    %v2227 = vsel %vm2195, 1, 0
    %v2228 = vsel %vm2196, 1, 0
    %v2229 = vsel %vm2197, 1, 0
    %v2230 = vsel %vm2198, 1, 0
    %v2231 = vsel %vm2199, 1, 0
    %v2232 = vsel %vm2200, 1, 0
    %v2233 = vsel %vm2201, 1, 0
    %v2234 = vsel %vm2202, 1, 0
    %v2235 = vsel %vm2203, 1, 0
    %v2236 = vcvt.s32.f32 %v2204
    %v2237 = vcvt.s32.f32 %v2205
    %v2238 = vcvt.s32.f32 %v2206
    %v2239 = vcvt.s32.f32 %v2207
    %v2240 = vcvt.s32.f32 %v2208
    %v2241 = vcvt.s32.f32 %v2209
    %v2242 = vcvt.s32.f32 %v2210
    %v2243 = vcvt.s32.f32 %v2211
    %v2244 = vcvt.s32.f32 %v2212
    %v2245 = vcvt.s32.f32 %v2213
    %v2246 = vcvt.s32.f32 %v2214
    %v2247 = vcvt.s32.f32 %v2215
    %v2248 = vcvt.s32.f32 %v2216
    %v2249 = vcvt.s32.f32 %v2217
    %v2250 = vcvt.s32.f32 %v2218
    %v2251 = vcvt.s32.f32 %v2219
    %v2252 = vcvt.s32.f32 %v2220
    %v2253 = vcvt.s32.f32 %v2221
    %v2254 = vcvt.s32.f32 %v2222
    %v2255 = vcvt.s32.f32 %v2223
    %v2256 = vcvt.s32.f32 %v2224
    %v2257 = vcvt.s32.f32 %v2225
    %v2258 = vcvt.s32.f32 %v2226
    %v2259 = vcvt.s32.f32 %v2227
    %v2260 = vcvt.s32.f32 %v2228
    %v2261 = vcvt.s32.f32 %v2229
    %v2262 = vcvt.s32.f32 %v2230
    %v2263 = vcvt.s32.f32 %v2231
    %v2264 = vcvt.s32.f32 %v2232
    %v2265 = vcvt.s32.f32 %v2233
    %v2266 = vcvt.s32.f32 %v2234
    %v2267 = vcvt.s32.f32 %v2235
    %v2268 = vmul.f32 %v2046, %v2236
    %v2269 = vmul.f32 %v2049, %v2237
    %v2270 = vmul.f32 %v2054, %v2238
    %v2271 = vmul.f32 %v2057, %v2239
    %v2272 = vmul.f32 %v2062, %v2240
    %v2273 = vmul.f32 %v2065, %v2241
    %v2274 = vmul.f32 %v2070, %v2242
    %v2275 = vmul.f32 %v2073, %v2243
    %v2276 = vmul.f32 %v2078, %v2244
    %v2277 = vmul.f32 %v2081, %v2245
    %v2278 = vmul.f32 %v2086, %v2246
    %v2279 = vmul.f32 %v2089, %v2247
    %v2280 = vmul.f32 %v2094, %v2248
    %v2281 = vmul.f32 %v2097, %v2249
    %v2282 = vmul.f32 %v2102, %v2250
    %v2283 = vmul.f32 %v2105, %v2251
    %v2284 = vmul.f32 %v2110, %v2252
    %v2285 = vmul.f32 %v2113, %v2253
    %v2286 = vmul.f32 %v2118, %v2254
    %v2287 = vmul.f32 %v2121, %v2255
    %v2288 = vmul.f32 %v2126, %v2256
    %v2289 = vmul.f32 %v2129, %v2257
    %v2290 = vmul.f32 %v2134, %v2258
    %v2291 = vmul.f32 %v2137, %v2259
    %v2292 = vmul.f32 %v2142, %v2260
    %v2293 = vmul.f32 %v2145, %v2261
    %v2294 = vmul.f32 %v2150, %v2262
    %v2295 = vmul.f32 %v2153, %v2263
    %v2296 = vmul.f32 %v2158, %v2264
    %v2297 = vmul.f32 %v2161, %v2265
    %v2298 = vmul.f32 %v2166, %v2266
    %v2299 = vmul.f32 %v2169, %v2267
    %v2300 = vunpack.c.l.bf16 %v77
    %v2301 = vunpack.c.l.bf16 %v78
    %v2302 = vunpack.c.l.bf16 %v79
    %v2303 = vunpack.c.l.bf16 %v80
    %v2304 = vunpack.c.l.bf16 %v81
    %v2305 = vunpack.c.l.bf16 %v82
    %v2306 = vunpack.c.l.bf16 %v83
    %v2307 = vunpack.c.l.bf16 %v84
    %v2308 = vunpack.c.l.bf16 %v85
    %v2309 = vunpack.c.l.bf16 %v86
    %v2310 = vunpack.c.l.bf16 %v87
    %v2311 = vunpack.c.l.bf16 %v88
    %v2312 = vunpack.c.l.bf16 %v89
    %v2313 = vunpack.c.l.bf16 %v90
    %v2314 = vunpack.c.l.bf16 %v91
    %v2315 = vunpack.c.l.bf16 %v92
    %v2316 = vunpack.c.l.bf16 %v93
    %v2317 = vunpack.c.l.bf16 %v94
    %v2318 = vunpack.c.l.bf16 %v95
    %v2319 = vunpack.c.l.bf16 %v96
    %v2320 = vunpack.c.l.bf16 %v97
    %v2321 = vunpack.c.l.bf16 %v98
    %v2322 = vunpack.c.l.bf16 %v99
    %v2323 = vunpack.c.l.bf16 %v100
    %v2324 = vunpack.c.l.bf16 %v101
    %v2325 = vunpack.c.l.bf16 %v102
    %v2326 = vunpack.c.l.bf16 %v103
    %v2327 = vunpack.c.l.bf16 %v104
    %v2328 = vunpack.c.l.bf16 %v105
    %v2329 = vunpack.c.l.bf16 %v106
    %v2330 = vunpack.c.l.bf16 %v107
    %v2331 = vunpack.c.l.bf16 %v108
    %v2332 = vmul.f32 %v1906, %v1906
    %v2333 = vmul.f32 %v1907, %v1907
    %v2334 = vmul.f32 %v1908, %v1908
    %v2335 = vmul.f32 %v1909, %v1909
    %v2336 = vmul.f32 %v1910, %v1910
    %v2337 = vmul.f32 %v1911, %v1911
    %v2338 = vmul.f32 %v1912, %v1912
    %v2339 = vmul.f32 %v1913, %v1913
    %v2340 = vmul.f32 %v1914, %v1914
    %v2341 = vmul.f32 %v1915, %v1915
    %v2342 = vmul.f32 %v1916, %v1916
    %v2343 = vmul.f32 %v1917, %v1917
    %v2344 = vmul.f32 %v1918, %v1918
    %v2345 = vmul.f32 %v1919, %v1919
    %v2346 = vmul.f32 %v1920, %v1920
    %v2347 = vmul.f32 %v1921, %v1921
    %v2348 = vmul.f32 %v1922, %v1922
    %v2349 = vmul.f32 %v1923, %v1923
    %v2350 = vmul.f32 %v1924, %v1924
    %v2351 = vmul.f32 %v1925, %v1925
    %v2352 = vmul.f32 %v1926, %v1926
    %v2353 = vmul.f32 %v1927, %v1927
    %v2354 = vmul.f32 %v1928, %v1928
    %v2355 = vmul.f32 %v1929, %v1929
    %v2356 = vmul.f32 %v1930, %v1930
    %v2357 = vmul.f32 %v1931, %v1931
    %v2358 = vmul.f32 %v1932, %v1932
    %v2359 = vmul.f32 %v1933, %v1933
    %v2360 = vmul.f32 %v1934, %v1934
    %v2361 = vmul.f32 %v1935, %v1935
    %v2362 = vmul.f32 %v1936, %v1936
    %v2363 = vmul.f32 %v1937, %v1937
    %v2364 = vsel %vm751, %v2332, 0.0
    %2365 = vadd.xlane.f32.xlu0 %v2364
    %v2366 = vpop.xlane.xlu0 %2365
    %v2367 = vsel %vm751, %v2333, 0.0
    %2368 = vadd.xlane.f32.xlu0 %v2367
    %v2369 = vpop.xlane.xlu0 %2368
    %v2370 = vsel %vm751, %v2334, 0.0
    %2371 = vadd.xlane.f32.xlu0 %v2370
    %v2372 = vpop.xlane.xlu0 %2371
    %v2373 = vsel %vm751, %v2335, 0.0
    %2374 = vadd.xlane.f32.xlu0 %v2373
    %v2375 = vpop.xlane.xlu0 %2374
    %v2376 = vsel %vm751, %v2336, 0.0
    %2377 = vadd.xlane.f32.xlu0 %v2376
    %v2378 = vpop.xlane.xlu0 %2377
    %v2379 = vsel %vm751, %v2337, 0.0
    %2380 = vadd.xlane.f32.xlu0 %v2379
    %v2381 = vpop.xlane.xlu0 %2380
    %v2382 = vsel %vm751, %v2338, 0.0
    %2383 = vadd.xlane.f32.xlu0 %v2382
    %v2384 = vpop.xlane.xlu0 %2383
    %v2385 = vsel %vm751, %v2339, 0.0
    %2386 = vadd.xlane.f32.xlu0 %v2385
    %v2387 = vpop.xlane.xlu0 %2386
    %v2388 = vsel %vm751, %v2340, 0.0
    %2389 = vadd.xlane.f32.xlu0 %v2388
    %v2390 = vpop.xlane.xlu0 %2389
    %v2391 = vsel %vm751, %v2341, 0.0
    %2392 = vadd.xlane.f32.xlu0 %v2391
    %v2393 = vpop.xlane.xlu0 %2392
    %v2394 = vsel %vm751, %v2342, 0.0
    %2395 = vadd.xlane.f32.xlu0 %v2394
    %v2396 = vpop.xlane.xlu0 %2395
    %v2397 = vsel %vm751, %v2343, 0.0
    %2398 = vadd.xlane.f32.xlu0 %v2397
    %v2399 = vpop.xlane.xlu0 %2398
    %v2400 = vsel %vm751, %v2344, 0.0
    %2401 = vadd.xlane.f32.xlu0 %v2400
    %v2402 = vpop.xlane.xlu0 %2401
    %v2403 = vsel %vm751, %v2345, 0.0
    %2404 = vadd.xlane.f32.xlu0 %v2403
    %v2405 = vpop.xlane.xlu0 %2404
    %v2406 = vsel %vm751, %v2346, 0.0
    %2407 = vadd.xlane.f32.xlu0 %v2406
    %v2408 = vpop.xlane.xlu0 %2407
    %v2409 = vsel %vm751, %v2347, 0.0
    %2410 = vadd.xlane.f32.xlu0 %v2409
    %v2411 = vpop.xlane.xlu0 %2410
    %v2412 = vsel %vm751, %v2348, 0.0
    %2413 = vadd.xlane.f32.xlu0 %v2412
    %v2414 = vpop.xlane.xlu0 %2413
    %v2415 = vsel %vm751, %v2349, 0.0
    %2416 = vadd.xlane.f32.xlu0 %v2415
    %v2417 = vpop.xlane.xlu0 %2416
    %v2418 = vsel %vm751, %v2350, 0.0
    %2419 = vadd.xlane.f32.xlu0 %v2418
    %v2420 = vpop.xlane.xlu0 %2419
    %v2421 = vsel %vm751, %v2351, 0.0
    %2422 = vadd.xlane.f32.xlu0 %v2421
    %v2423 = vpop.xlane.xlu0 %2422
    %v2424 = vsel %vm751, %v2352, 0.0
    %2425 = vadd.xlane.f32.xlu0 %v2424
    %v2426 = vpop.xlane.xlu0 %2425
    %v2427 = vsel %vm751, %v2353, 0.0
    %2428 = vadd.xlane.f32.xlu0 %v2427
    %v2429 = vpop.xlane.xlu0 %2428
    %v2430 = vsel %vm751, %v2354, 0.0
    %2431 = vadd.xlane.f32.xlu0 %v2430
    %v2432 = vpop.xlane.xlu0 %2431
    %v2433 = vsel %vm751, %v2355, 0.0
    %2434 = vadd.xlane.f32.xlu0 %v2433
    %v2435 = vpop.xlane.xlu0 %2434
    %v2436 = vsel %vm751, %v2356, 0.0
    %2437 = vadd.xlane.f32.xlu0 %v2436
    %v2438 = vpop.xlane.xlu0 %2437
    %v2439 = vsel %vm751, %v2357, 0.0
    %2440 = vadd.xlane.f32.xlu0 %v2439
    %v2441 = vpop.xlane.xlu0 %2440
    %v2442 = vsel %vm751, %v2358, 0.0
    %2443 = vadd.xlane.f32.xlu0 %v2442
    %v2444 = vpop.xlane.xlu0 %2443
    %v2445 = vsel %vm751, %v2359, 0.0
    %2446 = vadd.xlane.f32.xlu0 %v2445
    %v2447 = vpop.xlane.xlu0 %2446
    %v2448 = vsel %vm751, %v2360, 0.0
    %2449 = vadd.xlane.f32.xlu0 %v2448
    %v2450 = vpop.xlane.xlu0 %2449
    %v2451 = vsel %vm751, %v2361, 0.0
    %2452 = vadd.xlane.f32.xlu0 %v2451
    %v2453 = vpop.xlane.xlu0 %2452
    %v2454 = vsel %vm751, %v2362, 0.0
    %2455 = vadd.xlane.f32.xlu0 %v2454
    %v2456 = vpop.xlane.xlu0 %2455
    %v2457 = vsel %vm751, %v2363, 0.0
    %2458 = vadd.xlane.f32.xlu0 %v2457
    %v2459 = vpop.xlane.xlu0 %2458
    %v2460 = vmul.f32 %v2268, %v2268
    %v2461 = vmul.f32 %v2269, %v2269
    %v2462 = vmul.f32 %v2270, %v2270
    %v2463 = vmul.f32 %v2271, %v2271
    %v2464 = vmul.f32 %v2272, %v2272
    %v2465 = vmul.f32 %v2273, %v2273
    %v2466 = vmul.f32 %v2274, %v2274
    %v2467 = vmul.f32 %v2275, %v2275
    %v2468 = vmul.f32 %v2276, %v2276
    %v2469 = vmul.f32 %v2277, %v2277
    %v2470 = vmul.f32 %v2278, %v2278
    %v2471 = vmul.f32 %v2279, %v2279
    %v2472 = vmul.f32 %v2280, %v2280
    %v2473 = vmul.f32 %v2281, %v2281
    %v2474 = vmul.f32 %v2282, %v2282
    %v2475 = vmul.f32 %v2283, %v2283
    %v2476 = vmul.f32 %v2284, %v2284
    %v2477 = vmul.f32 %v2285, %v2285
    %v2478 = vmul.f32 %v2286, %v2286
    %v2479 = vmul.f32 %v2287, %v2287
    %v2480 = vmul.f32 %v2288, %v2288
    %v2481 = vmul.f32 %v2289, %v2289
    %v2482 = vmul.f32 %v2290, %v2290
    %v2483 = vmul.f32 %v2291, %v2291
    %v2484 = vmul.f32 %v2292, %v2292
    %v2485 = vmul.f32 %v2293, %v2293
    %v2486 = vmul.f32 %v2294, %v2294
    %v2487 = vmul.f32 %v2295, %v2295
    %v2488 = vmul.f32 %v2296, %v2296
    %v2489 = vmul.f32 %v2297, %v2297
    %v2490 = vmul.f32 %v2298, %v2298
    %v2491 = vmul.f32 %v2299, %v2299
    %2492 = vadd.xlane.f32.xlu0 %v2460
    %v2493 = vpop.xlane.xlu0 %2492
    %2494 = vadd.xlane.f32.xlu0 %v2461
    %v2495 = vpop.xlane.xlu0 %2494
    %2496 = vadd.xlane.f32.xlu0 %v2462
    %v2497 = vpop.xlane.xlu0 %2496
    %2498 = vadd.xlane.f32.xlu0 %v2463
    %v2499 = vpop.xlane.xlu0 %2498
    %2500 = vadd.xlane.f32.xlu0 %v2464
    %v2501 = vpop.xlane.xlu0 %2500
    %2502 = vadd.xlane.f32.xlu0 %v2465
    %v2503 = vpop.xlane.xlu0 %2502
    %2504 = vadd.xlane.f32.xlu0 %v2466
    %v2505 = vpop.xlane.xlu0 %2504
    %2506 = vadd.xlane.f32.xlu0 %v2467
    %v2507 = vpop.xlane.xlu0 %2506
    %2508 = vadd.xlane.f32.xlu0 %v2468
    %v2509 = vpop.xlane.xlu0 %2508
    %2510 = vadd.xlane.f32.xlu0 %v2469
    %v2511 = vpop.xlane.xlu0 %2510
    %2512 = vadd.xlane.f32.xlu0 %v2470
    %v2513 = vpop.xlane.xlu0 %2512
    %2514 = vadd.xlane.f32.xlu0 %v2471
    %v2515 = vpop.xlane.xlu0 %2514
    %2516 = vadd.xlane.f32.xlu0 %v2472
    %v2517 = vpop.xlane.xlu0 %2516
    %2518 = vadd.xlane.f32.xlu0 %v2473
    %v2519 = vpop.xlane.xlu0 %2518
    %2520 = vadd.xlane.f32.xlu0 %v2474
    %v2521 = vpop.xlane.xlu0 %2520
    %2522 = vadd.xlane.f32.xlu0 %v2475
    %v2523 = vpop.xlane.xlu0 %2522
    %2524 = vadd.xlane.f32.xlu0 %v2476
    %v2525 = vpop.xlane.xlu0 %2524
    %2526 = vadd.xlane.f32.xlu0 %v2477
    %v2527 = vpop.xlane.xlu0 %2526
    %2528 = vadd.xlane.f32.xlu0 %v2478
    %v2529 = vpop.xlane.xlu0 %2528
    %2530 = vadd.xlane.f32.xlu0 %v2479
    %v2531 = vpop.xlane.xlu0 %2530
    %2532 = vadd.xlane.f32.xlu0 %v2480
    %v2533 = vpop.xlane.xlu0 %2532
    %2534 = vadd.xlane.f32.xlu0 %v2481
    %v2535 = vpop.xlane.xlu0 %2534
    %2536 = vadd.xlane.f32.xlu0 %v2482
    %v2537 = vpop.xlane.xlu0 %2536
    %2538 = vadd.xlane.f32.xlu0 %v2483
    %v2539 = vpop.xlane.xlu0 %2538
    %2540 = vadd.xlane.f32.xlu0 %v2484
    %v2541 = vpop.xlane.xlu0 %2540
    %2542 = vadd.xlane.f32.xlu0 %v2485
    %v2543 = vpop.xlane.xlu0 %2542
    %2544 = vadd.xlane.f32.xlu0 %v2486
    %v2545 = vpop.xlane.xlu0 %2544
    %2546 = vadd.xlane.f32.xlu0 %v2487
    %v2547 = vpop.xlane.xlu0 %2546
    %2548 = vadd.xlane.f32.xlu0 %v2488
    %v2549 = vpop.xlane.xlu0 %2548
    %2550 = vadd.xlane.f32.xlu0 %v2489
    %v2551 = vpop.xlane.xlu0 %2550
    %2552 = vadd.xlane.f32.xlu0 %v2490
    %v2553 = vpop.xlane.xlu0 %2552
    %2554 = vadd.xlane.f32.xlu0 %v2491
    %v2555 = vpop.xlane.xlu0 %2554
    %v2556 = vmul.f32 %v488, %v488
    %v2557 = vmul.f32 %v489, %v489
    %v2558 = vmul.f32 %v490, %v490
    %v2559 = vmul.f32 %v491, %v491
    %v2560 = vmul.f32 %v492, %v492
    %v2561 = vmul.f32 %v493, %v493
    %v2562 = vmul.f32 %v494, %v494
    %v2563 = vmul.f32 %v495, %v495
    %v2564 = vmul.f32 %v496, %v496
    %v2565 = vmul.f32 %v497, %v497
    %v2566 = vmul.f32 %v498, %v498
    %v2567 = vmul.f32 %v499, %v499
    %v2568 = vmul.f32 %v500, %v500
    %v2569 = vmul.f32 %v501, %v501
    %v2570 = vmul.f32 %v502, %v502
    %v2571 = vmul.f32 %v503, %v503
    %v2572 = vmul.f32 %v504, %v504
    %v2573 = vmul.f32 %v505, %v505
    %v2574 = vmul.f32 %v506, %v506
    %v2575 = vmul.f32 %v507, %v507
    %v2576 = vmul.f32 %v508, %v508
    %v2577 = vmul.f32 %v509, %v509
    %v2578 = vmul.f32 %v510, %v510
    %v2579 = vmul.f32 %v511, %v511
    %v2580 = vmul.f32 %v512, %v512
    %v2581 = vmul.f32 %v513, %v513
    %v2582 = vmul.f32 %v514, %v514
    %v2583 = vmul.f32 %v515, %v515
    %v2584 = vmul.f32 %v516, %v516
    %v2585 = vmul.f32 %v517, %v517
    %v2586 = vmul.f32 %v518, %v518
    %v2587 = vmul.f32 %v519, %v519
    %2588 = vadd.xlane.f32.xlu0 %v2556
    %v2589 = vpop.xlane.xlu0 %2588
    %2590 = vadd.xlane.f32.xlu0 %v2557
    %v2591 = vpop.xlane.xlu0 %2590
    %2592 = vadd.xlane.f32.xlu0 %v2558
    %v2593 = vpop.xlane.xlu0 %2592
    %2594 = vadd.xlane.f32.xlu0 %v2559
    %v2595 = vpop.xlane.xlu0 %2594
    %2596 = vadd.xlane.f32.xlu0 %v2560
    %v2597 = vpop.xlane.xlu0 %2596
    %2598 = vadd.xlane.f32.xlu0 %v2561
    %v2599 = vpop.xlane.xlu0 %2598
    %2600 = vadd.xlane.f32.xlu0 %v2562
    %v2601 = vpop.xlane.xlu0 %2600
    %2602 = vadd.xlane.f32.xlu0 %v2563
    %v2603 = vpop.xlane.xlu0 %2602
    %2604 = vadd.xlane.f32.xlu0 %v2564
    %v2605 = vpop.xlane.xlu0 %2604
    %2606 = vadd.xlane.f32.xlu0 %v2565
    %v2607 = vpop.xlane.xlu0 %2606
    %2608 = vadd.xlane.f32.xlu0 %v2566
    %v2609 = vpop.xlane.xlu0 %2608
    %2610 = vadd.xlane.f32.xlu0 %v2567
    %v2611 = vpop.xlane.xlu0 %2610
    %2612 = vadd.xlane.f32.xlu0 %v2568
    %v2613 = vpop.xlane.xlu0 %2612
    %2614 = vadd.xlane.f32.xlu0 %v2569
    %v2615 = vpop.xlane.xlu0 %2614
    %2616 = vadd.xlane.f32.xlu0 %v2570
    %v2617 = vpop.xlane.xlu0 %2616
    %2618 = vadd.xlane.f32.xlu0 %v2571
    %v2619 = vpop.xlane.xlu0 %2618
    %2620 = vadd.xlane.f32.xlu0 %v2572
    %v2621 = vpop.xlane.xlu0 %2620
    %2622 = vadd.xlane.f32.xlu0 %v2573
    %v2623 = vpop.xlane.xlu0 %2622
    %2624 = vadd.xlane.f32.xlu0 %v2574
    %v2625 = vpop.xlane.xlu0 %2624
    %2626 = vadd.xlane.f32.xlu0 %v2575
    %v2627 = vpop.xlane.xlu0 %2626
    %2628 = vadd.xlane.f32.xlu0 %v2576
    %v2629 = vpop.xlane.xlu0 %2628
    %2630 = vadd.xlane.f32.xlu0 %v2577
    %v2631 = vpop.xlane.xlu0 %2630
    %2632 = vadd.xlane.f32.xlu0 %v2578
    %v2633 = vpop.xlane.xlu0 %2632
    %2634 = vadd.xlane.f32.xlu0 %v2579
    %v2635 = vpop.xlane.xlu0 %2634
    %2636 = vadd.xlane.f32.xlu0 %v2580
    %v2637 = vpop.xlane.xlu0 %2636
    %2638 = vadd.xlane.f32.xlu0 %v2581
    %v2639 = vpop.xlane.xlu0 %2638
    %2640 = vadd.xlane.f32.xlu0 %v2582
    %v2641 = vpop.xlane.xlu0 %2640
    %2642 = vadd.xlane.f32.xlu0 %v2583
    %v2643 = vpop.xlane.xlu0 %2642
    %2644 = vadd.xlane.f32.xlu0 %v2584
    %v2645 = vpop.xlane.xlu0 %2644
    %2646 = vadd.xlane.f32.xlu0 %v2585
    %v2647 = vpop.xlane.xlu0 %2646
    %2648 = vadd.xlane.f32.xlu0 %v2586
    %v2649 = vpop.xlane.xlu0 %2648
    %2650 = vadd.xlane.f32.xlu0 %v2587
    %v2651 = vpop.xlane.xlu0 %2650
    %v2652 = vmul.f32 %v2300, %v2300
    %v2653 = vmul.f32 %v2301, %v2301
    %v2654 = vmul.f32 %v2302, %v2302
    %v2655 = vmul.f32 %v2303, %v2303
    %v2656 = vmul.f32 %v2304, %v2304
    %v2657 = vmul.f32 %v2305, %v2305
    %v2658 = vmul.f32 %v2306, %v2306
    %v2659 = vmul.f32 %v2307, %v2307
    %v2660 = vmul.f32 %v2308, %v2308
    %v2661 = vmul.f32 %v2309, %v2309
    %v2662 = vmul.f32 %v2310, %v2310
    %v2663 = vmul.f32 %v2311, %v2311
    %v2664 = vmul.f32 %v2312, %v2312
    %v2665 = vmul.f32 %v2313, %v2313
    %v2666 = vmul.f32 %v2314, %v2314
    %v2667 = vmul.f32 %v2315, %v2315
    %v2668 = vmul.f32 %v2316, %v2316
    %v2669 = vmul.f32 %v2317, %v2317
    %v2670 = vmul.f32 %v2318, %v2318
    %v2671 = vmul.f32 %v2319, %v2319
    %v2672 = vmul.f32 %v2320, %v2320
    %v2673 = vmul.f32 %v2321, %v2321
    %v2674 = vmul.f32 %v2322, %v2322
    %v2675 = vmul.f32 %v2323, %v2323
    %v2676 = vmul.f32 %v2324, %v2324
    %v2677 = vmul.f32 %v2325, %v2325
    %v2678 = vmul.f32 %v2326, %v2326
    %v2679 = vmul.f32 %v2327, %v2327
    %v2680 = vmul.f32 %v2328, %v2328
    %v2681 = vmul.f32 %v2329, %v2329
    %v2682 = vmul.f32 %v2330, %v2330
    %v2683 = vmul.f32 %v2331, %v2331
    %2684 = vadd.xlane.f32.xlu0 %v2652
    %v2685 = vpop.xlane.xlu0 %2684
    %2686 = vadd.xlane.f32.xlu0 %v2653
    %v2687 = vpop.xlane.xlu0 %2686
    %2688 = vadd.xlane.f32.xlu0 %v2654
    %v2689 = vpop.xlane.xlu0 %2688
    %2690 = vadd.xlane.f32.xlu0 %v2655
    %v2691 = vpop.xlane.xlu0 %2690
    %2692 = vadd.xlane.f32.xlu0 %v2656
    %v2693 = vpop.xlane.xlu0 %2692
    %2694 = vadd.xlane.f32.xlu0 %v2657
    %v2695 = vpop.xlane.xlu0 %2694
    %2696 = vadd.xlane.f32.xlu0 %v2658
    %v2697 = vpop.xlane.xlu0 %2696
    %2698 = vadd.xlane.f32.xlu0 %v2659
    %v2699 = vpop.xlane.xlu0 %2698
    %2700 = vadd.xlane.f32.xlu0 %v2660
    %v2701 = vpop.xlane.xlu0 %2700
    %2702 = vadd.xlane.f32.xlu0 %v2661
    %v2703 = vpop.xlane.xlu0 %2702
    %2704 = vadd.xlane.f32.xlu0 %v2662
    %v2705 = vpop.xlane.xlu0 %2704
    %2706 = vadd.xlane.f32.xlu0 %v2663
    %v2707 = vpop.xlane.xlu0 %2706
    %2708 = vadd.xlane.f32.xlu0 %v2664
    %v2709 = vpop.xlane.xlu0 %2708
    %2710 = vadd.xlane.f32.xlu0 %v2665
    %v2711 = vpop.xlane.xlu0 %2710
    %2712 = vadd.xlane.f32.xlu0 %v2666
    %v2713 = vpop.xlane.xlu0 %2712
    %2714 = vadd.xlane.f32.xlu0 %v2667
    %v2715 = vpop.xlane.xlu0 %2714
    %2716 = vadd.xlane.f32.xlu0 %v2668
    %v2717 = vpop.xlane.xlu0 %2716
    %2718 = vadd.xlane.f32.xlu0 %v2669
    %v2719 = vpop.xlane.xlu0 %2718
    %2720 = vadd.xlane.f32.xlu0 %v2670
    %v2721 = vpop.xlane.xlu0 %2720
    %2722 = vadd.xlane.f32.xlu0 %v2671
    %v2723 = vpop.xlane.xlu0 %2722
    %2724 = vadd.xlane.f32.xlu0 %v2672
    %v2725 = vpop.xlane.xlu0 %2724
    %2726 = vadd.xlane.f32.xlu0 %v2673
    %v2727 = vpop.xlane.xlu0 %2726
    %2728 = vadd.xlane.f32.xlu0 %v2674
    %v2729 = vpop.xlane.xlu0 %2728
    %2730 = vadd.xlane.f32.xlu0 %v2675
    %v2731 = vpop.xlane.xlu0 %2730
    %2732 = vadd.xlane.f32.xlu0 %v2676
    %v2733 = vpop.xlane.xlu0 %2732
    %2734 = vadd.xlane.f32.xlu0 %v2677
    %v2735 = vpop.xlane.xlu0 %2734
    %2736 = vadd.xlane.f32.xlu0 %v2678
    %v2737 = vpop.xlane.xlu0 %2736
    %2738 = vadd.xlane.f32.xlu0 %v2679
    %v2739 = vpop.xlane.xlu0 %2738
    %2740 = vadd.xlane.f32.xlu0 %v2680
    %v2741 = vpop.xlane.xlu0 %2740
    %2742 = vadd.xlane.f32.xlu0 %v2681
    %v2743 = vpop.xlane.xlu0 %2742
    %2744 = vadd.xlane.f32.xlu0 %v2682
    %v2745 = vpop.xlane.xlu0 %2744
    %2746 = vadd.xlane.f32.xlu0 %v2683
    %v2747 = vpop.xlane.xlu0 %2746
    %v2748 = vlaneseq
    %v2749 = vshrl.u32 %v2748, 7
    %v2750 = vadd.s32 %v2749, 8
    %v2751 = vadd.s32 %v2749, 16
    %v2752 = vadd.s32 %v2749, 24
    %v2753 = vadd.s32 %v2749, 32
    %v2754 = vadd.s32 %v2749, 40
    %v2755 = vadd.s32 %v2749, 48
    %v2756 = vadd.s32 %v2749, 56
    %v2757 = vadd.s32 %v2749, 64
    %v2758 = vadd.s32 %v2749, 72
    %v2759 = vadd.s32 %v2749, 80
    %v2760 = vadd.s32 %v2749, 88
    %v2761 = vadd.s32 %v2749, 96
    %v2762 = vadd.s32 %v2749, 104
    %v2763 = vadd.s32 %v2749, 112
    %v2764 = vadd.s32 %v2749, 120
    %v2765 = vadd.s32 %v2749, 128
    %v2766 = vadd.s32 %v2749, 136
    %v2767 = vadd.s32 %v2749, 144
    %v2768 = vadd.s32 %v2749, 152
    %v2769 = vadd.s32 %v2749, 160
    %v2770 = vadd.s32 %v2749, 168
    %v2771 = vadd.s32 %v2749, 176
    %v2772 = vadd.s32 %v2749, 184
    %v2773 = vadd.s32 %v2749, 192
    %v2774 = vadd.s32 %v2749, 200
    %v2775 = vadd.s32 %v2749, 208
    %v2776 = vadd.s32 %v2749, 216
    %v2777 = vadd.s32 %v2749, 224
    %v2778 = vadd.s32 %v2749, 232
    %v2779 = vadd.s32 %v2749, 240
    %v2780 = vadd.s32 %v2749, 248
    %s2781 = sadd.s32 0, 0
    %s2782 = smul.u32 %s2781, 256
    %v2783 = vstv %s2782
    %v2784 = vadd.s32 %v2783, %v2749
    %v2785 = vadd.s32 %v2783, %v2750
    %v2786 = vadd.s32 %v2783, %v2751
    %v2787 = vadd.s32 %v2783, %v2752
    %v2788 = vadd.s32 %v2783, %v2753
    %v2789 = vadd.s32 %v2783, %v2754
    %v2790 = vadd.s32 %v2783, %v2755
    %v2791 = vadd.s32 %v2783, %v2756
    %v2792 = vadd.s32 %v2783, %v2757
    %v2793 = vadd.s32 %v2783, %v2758
    %v2794 = vadd.s32 %v2783, %v2759
    %v2795 = vadd.s32 %v2783, %v2760
    %v2796 = vadd.s32 %v2783, %v2761
    %v2797 = vadd.s32 %v2783, %v2762
    %v2798 = vadd.s32 %v2783, %v2763
    %v2799 = vadd.s32 %v2783, %v2764
    %v2800 = vadd.s32 %v2783, %v2765
    %v2801 = vadd.s32 %v2783, %v2766
    %v2802 = vadd.s32 %v2783, %v2767
    %v2803 = vadd.s32 %v2783, %v2768
    %v2804 = vadd.s32 %v2783, %v2769
    %v2805 = vadd.s32 %v2783, %v2770
    %v2806 = vadd.s32 %v2783, %v2771
    %v2807 = vadd.s32 %v2783, %v2772
    %v2808 = vadd.s32 %v2783, %v2773
    %v2809 = vadd.s32 %v2783, %v2774
    %v2810 = vadd.s32 %v2783, %v2775
    %v2811 = vadd.s32 %v2783, %v2776
    %v2812 = vadd.s32 %v2783, %v2777
    %v2813 = vadd.s32 %v2783, %v2778
    %v2814 = vadd.s32 %v2783, %v2779
    %v2815 = vadd.s32 %v2783, %v2780
    %vm2816 = vcmp.lt.s32.totalorder %v2784, 256
    %vm2817 = vcmp.lt.s32.totalorder %v2785, 256
    %vm2818 = vcmp.lt.s32.totalorder %v2786, 256
    %vm2819 = vcmp.lt.s32.totalorder %v2787, 256
    %vm2820 = vcmp.lt.s32.totalorder %v2788, 256
    %vm2821 = vcmp.lt.s32.totalorder %v2789, 256
    %vm2822 = vcmp.lt.s32.totalorder %v2790, 256
    %vm2823 = vcmp.lt.s32.totalorder %v2791, 256
    %vm2824 = vcmp.lt.s32.totalorder %v2792, 256
    %vm2825 = vcmp.lt.s32.totalorder %v2793, 256
    %vm2826 = vcmp.lt.s32.totalorder %v2794, 256
    %vm2827 = vcmp.lt.s32.totalorder %v2795, 256
    %vm2828 = vcmp.lt.s32.totalorder %v2796, 256
    %vm2829 = vcmp.lt.s32.totalorder %v2797, 256
    %vm2830 = vcmp.lt.s32.totalorder %v2798, 256
    %vm2831 = vcmp.lt.s32.totalorder %v2799, 256
    %vm2832 = vcmp.lt.s32.totalorder %v2800, 256
    %vm2833 = vcmp.lt.s32.totalorder %v2801, 256
    %vm2834 = vcmp.lt.s32.totalorder %v2802, 256
    %vm2835 = vcmp.lt.s32.totalorder %v2803, 256
    %vm2836 = vcmp.lt.s32.totalorder %v2804, 256
    %vm2837 = vcmp.lt.s32.totalorder %v2805, 256
    %vm2838 = vcmp.lt.s32.totalorder %v2806, 256
    %vm2839 = vcmp.lt.s32.totalorder %v2807, 256
    %vm2840 = vcmp.lt.s32.totalorder %v2808, 256
    %vm2841 = vcmp.lt.s32.totalorder %v2809, 256
    %vm2842 = vcmp.lt.s32.totalorder %v2810, 256
    %vm2843 = vcmp.lt.s32.totalorder %v2811, 256
    %vm2844 = vcmp.lt.s32.totalorder %v2812, 256
    %vm2845 = vcmp.lt.s32.totalorder %v2813, 256
    %vm2846 = vcmp.lt.s32.totalorder %v2814, 256
    %vm2847 = vcmp.lt.s32.totalorder %v2815, 256
    %v2848 = vsel %vm2816, 1, 0
    %v2849 = vsel %vm2817, 1, 0
    %v2850 = vsel %vm2818, 1, 0
    %v2851 = vsel %vm2819, 1, 0
    %v2852 = vsel %vm2820, 1, 0
    %v2853 = vsel %vm2821, 1, 0
    %v2854 = vsel %vm2822, 1, 0
    %v2855 = vsel %vm2823, 1, 0
    %v2856 = vsel %vm2824, 1, 0
    %v2857 = vsel %vm2825, 1, 0
    %v2858 = vsel %vm2826, 1, 0
    %v2859 = vsel %vm2827, 1, 0
    %v2860 = vsel %vm2828, 1, 0
    %v2861 = vsel %vm2829, 1, 0
    %v2862 = vsel %vm2830, 1, 0
    %v2863 = vsel %vm2831, 1, 0
    %v2864 = vsel %vm2832, 1, 0
    %v2865 = vsel %vm2833, 1, 0
    %v2866 = vsel %vm2834, 1, 0
    %v2867 = vsel %vm2835, 1, 0
    %v2868 = vsel %vm2836, 1, 0
    %v2869 = vsel %vm2837, 1, 0
    %v2870 = vsel %vm2838, 1, 0
    %v2871 = vsel %vm2839, 1, 0
    %v2872 = vsel %vm2840, 1, 0
    %v2873 = vsel %vm2841, 1, 0
    %v2874 = vsel %vm2842, 1, 0
    %v2875 = vsel %vm2843, 1, 0
    %v2876 = vsel %vm2844, 1, 0
    %v2877 = vsel %vm2845, 1, 0
    %v2878 = vsel %vm2846, 1, 0
    %v2879 = vsel %vm2847, 1, 0
    %v2880 = vcvt.s32.f32 %v2848
    %v2881 = vcvt.s32.f32 %v2849
    %v2882 = vcvt.s32.f32 %v2850
    %v2883 = vcvt.s32.f32 %v2851
    %v2884 = vcvt.s32.f32 %v2852
    %v2885 = vcvt.s32.f32 %v2853
    %v2886 = vcvt.s32.f32 %v2854
    %v2887 = vcvt.s32.f32 %v2855
    %v2888 = vcvt.s32.f32 %v2856
    %v2889 = vcvt.s32.f32 %v2857
    %v2890 = vcvt.s32.f32 %v2858
    %v2891 = vcvt.s32.f32 %v2859
    %v2892 = vcvt.s32.f32 %v2860
    %v2893 = vcvt.s32.f32 %v2861
    %v2894 = vcvt.s32.f32 %v2862
    %v2895 = vcvt.s32.f32 %v2863
    %v2896 = vcvt.s32.f32 %v2864
    %v2897 = vcvt.s32.f32 %v2865
    %v2898 = vcvt.s32.f32 %v2866
    %v2899 = vcvt.s32.f32 %v2867
    %v2900 = vcvt.s32.f32 %v2868
    %v2901 = vcvt.s32.f32 %v2869
    %v2902 = vcvt.s32.f32 %v2870
    %v2903 = vcvt.s32.f32 %v2871
    %v2904 = vcvt.s32.f32 %v2872
    %v2905 = vcvt.s32.f32 %v2873
    %v2906 = vcvt.s32.f32 %v2874
    %v2907 = vcvt.s32.f32 %v2875
    %v2908 = vcvt.s32.f32 %v2876
    %v2909 = vcvt.s32.f32 %v2877
    %v2910 = vcvt.s32.f32 %v2878
    %v2911 = vcvt.s32.f32 %v2879
    %v2912 = vmul.f32 %v2685, %v2493
    %v2913 = vmul.f32 %v2687, %v2495
    %v2914 = vmul.f32 %v2689, %v2497
    %v2915 = vmul.f32 %v2691, %v2499
    %v2916 = vmul.f32 %v2693, %v2501
    %v2917 = vmul.f32 %v2695, %v2503
    %v2918 = vmul.f32 %v2697, %v2505
    %v2919 = vmul.f32 %v2699, %v2507
    %v2920 = vmul.f32 %v2701, %v2509
    %v2921 = vmul.f32 %v2703, %v2511
    %v2922 = vmul.f32 %v2705, %v2513
    %v2923 = vmul.f32 %v2707, %v2515
    %v2924 = vmul.f32 %v2709, %v2517
    %v2925 = vmul.f32 %v2711, %v2519
    %v2926 = vmul.f32 %v2713, %v2521
    %v2927 = vmul.f32 %v2715, %v2523
    %v2928 = vmul.f32 %v2717, %v2525
    %v2929 = vmul.f32 %v2719, %v2527
    %v2930 = vmul.f32 %v2721, %v2529
    %v2931 = vmul.f32 %v2723, %v2531
    %v2932 = vmul.f32 %v2725, %v2533
    %v2933 = vmul.f32 %v2727, %v2535
    %v2934 = vmul.f32 %v2729, %v2537
    %v2935 = vmul.f32 %v2731, %v2539
    %v2936 = vmul.f32 %v2733, %v2541
    %v2937 = vmul.f32 %v2735, %v2543
    %v2938 = vmul.f32 %v2737, %v2545
    %v2939 = vmul.f32 %v2739, %v2547
    %v2940 = vmul.f32 %v2741, %v2549
    %v2941 = vmul.f32 %v2743, %v2551
    %v2942 = vmul.f32 %v2745, %v2553
    %v2943 = vmul.f32 %v2747, %v2555
    %v2944 = vmul.f32 %v2912, %v2880
    %v2945 = vmul.f32 %v2913, %v2881
    %v2946 = vmul.f32 %v2914, %v2882
    %v2947 = vmul.f32 %v2915, %v2883
    %v2948 = vmul.f32 %v2916, %v2884
    %v2949 = vmul.f32 %v2917, %v2885
    %v2950 = vmul.f32 %v2918, %v2886
    %v2951 = vmul.f32 %v2919, %v2887
    %v2952 = vmul.f32 %v2920, %v2888
    %v2953 = vmul.f32 %v2921, %v2889
    %v2954 = vmul.f32 %v2922, %v2890
    %v2955 = vmul.f32 %v2923, %v2891
    %v2956 = vmul.f32 %v2924, %v2892
    %v2957 = vmul.f32 %v2925, %v2893
    %v2958 = vmul.f32 %v2926, %v2894
    %v2959 = vmul.f32 %v2927, %v2895
    %v2960 = vmul.f32 %v2928, %v2896
    %v2961 = vmul.f32 %v2929, %v2897
    %v2962 = vmul.f32 %v2930, %v2898
    %v2963 = vmul.f32 %v2931, %v2899
    %v2964 = vmul.f32 %v2932, %v2900
    %v2965 = vmul.f32 %v2933, %v2901
    %v2966 = vmul.f32 %v2934, %v2902
    %v2967 = vmul.f32 %v2935, %v2903
    %v2968 = vmul.f32 %v2936, %v2904
    %v2969 = vmul.f32 %v2937, %v2905
    %v2970 = vmul.f32 %v2938, %v2906
    %v2971 = vmul.f32 %v2939, %v2907
    %v2972 = vmul.f32 %v2940, %v2908
    %v2973 = vmul.f32 %v2941, %v2909
    %v2974 = vmul.f32 %v2942, %v2910
    %v2975 = vmul.f32 %v2943, %v2911
    %vm2976 = vcmask 7168
    %v2977 = vsel %vm2976, %v2944, 0.0
    %v2978 = vsel %vm2976, %v2945, 0.0
    %v2979 = vadd.f32 %v2977, %v2978
    %v2980 = vsel %vm2976, %v2946, 0.0
    %v2981 = vadd.f32 %v2979, %v2980
    %v2982 = vsel %vm2976, %v2947, 0.0
    %v2983 = vadd.f32 %v2981, %v2982
    %v2984 = vsel %vm2976, %v2948, 0.0
    %v2985 = vadd.f32 %v2983, %v2984
    %v2986 = vsel %vm2976, %v2949, 0.0
    %v2987 = vadd.f32 %v2985, %v2986
    %v2988 = vsel %vm2976, %v2950, 0.0
    %v2989 = vadd.f32 %v2987, %v2988
    %v2990 = vsel %vm2976, %v2951, 0.0
    %v2991 = vadd.f32 %v2989, %v2990
    %v2992 = vsel %vm2976, %v2952, 0.0
    %v2993 = vadd.f32 %v2991, %v2992
    %v2994 = vsel %vm2976, %v2953, 0.0
    %v2995 = vadd.f32 %v2993, %v2994
    %v2996 = vsel %vm2976, %v2954, 0.0
    %v2997 = vadd.f32 %v2995, %v2996
    %v2998 = vsel %vm2976, %v2955, 0.0
    %v2999 = vadd.f32 %v2997, %v2998
    %v3000 = vsel %vm2976, %v2956, 0.0
    %v3001 = vadd.f32 %v2999, %v3000
    %v3002 = vsel %vm2976, %v2957, 0.0
    %v3003 = vadd.f32 %v3001, %v3002
    %v3004 = vsel %vm2976, %v2958, 0.0
    %v3005 = vadd.f32 %v3003, %v3004
    %v3006 = vsel %vm2976, %v2959, 0.0
    %v3007 = vadd.f32 %v3005, %v3006
    %v3008 = vsel %vm2976, %v2960, 0.0
    %v3009 = vadd.f32 %v3007, %v3008
    %v3010 = vsel %vm2976, %v2961, 0.0
    %v3011 = vadd.f32 %v3009, %v3010
    %v3012 = vsel %vm2976, %v2962, 0.0
    %v3013 = vadd.f32 %v3011, %v3012
    %v3014 = vsel %vm2976, %v2963, 0.0
    %v3015 = vadd.f32 %v3013, %v3014
    %v3016 = vsel %vm2976, %v2964, 0.0
    %v3017 = vadd.f32 %v3015, %v3016
    %v3018 = vsel %vm2976, %v2965, 0.0
    %v3019 = vadd.f32 %v3017, %v3018
    %v3020 = vsel %vm2976, %v2966, 0.0
    %v3021 = vadd.f32 %v3019, %v3020
    %v3022 = vsel %vm2976, %v2967, 0.0
    %v3023 = vadd.f32 %v3021, %v3022
    %v3024 = vsel %vm2976, %v2968, 0.0
    %v3025 = vadd.f32 %v3023, %v3024
    %v3026 = vsel %vm2976, %v2969, 0.0
    %v3027 = vadd.f32 %v3025, %v3026
    %v3028 = vsel %vm2976, %v2970, 0.0
    %v3029 = vadd.f32 %v3027, %v3028
    %v3030 = vsel %vm2976, %v2971, 0.0
    %v3031 = vadd.f32 %v3029, %v3030
    %v3032 = vsel %vm2976, %v2972, 0.0
    %v3033 = vadd.f32 %v3031, %v3032
    %v3034 = vsel %vm2976, %v2973, 0.0
    %v3035 = vadd.f32 %v3033, %v3034
    %v3036 = vsel %vm2976, %v2974, 0.0
    %v3037 = vadd.f32 %v3035, %v3036
    %v3038 = vsel %vm2976, %v2975, 0.0
    %v3039 = vadd.f32 %v3037, %v3038
    %3040 = vadd.xlane.f32.xlu0 %v3039
    %v3041 = vpop.xlane.xlu0 %3040
    %v3042 = vrot.slane %v3041, 4
    %v3043 = vadd.f32 %v3041, %v3042
    %v3044 = vrot.slane %v3043, 2
    %v3045 = vadd.f32 %v3043, %v3044
    %v3046 = vrot.slane %v3045, 1
    %v3047 = vadd.f32 %v3045, %v3046
    %s3048 = vtos %v3047
    %v3049 = vmul.f32 %v2493, %v2880
    %v3050 = vmul.f32 %v2495, %v2881
    %v3051 = vmul.f32 %v2497, %v2882
    %v3052 = vmul.f32 %v2499, %v2883
    %v3053 = vmul.f32 %v2501, %v2884
    %v3054 = vmul.f32 %v2503, %v2885
    %v3055 = vmul.f32 %v2505, %v2886
    %v3056 = vmul.f32 %v2507, %v2887
    %v3057 = vmul.f32 %v2509, %v2888
    %v3058 = vmul.f32 %v2511, %v2889
    %v3059 = vmul.f32 %v2513, %v2890
    %v3060 = vmul.f32 %v2515, %v2891
    %v3061 = vmul.f32 %v2517, %v2892
    %v3062 = vmul.f32 %v2519, %v2893
    %v3063 = vmul.f32 %v2521, %v2894
    %v3064 = vmul.f32 %v2523, %v2895
    %v3065 = vmul.f32 %v2525, %v2896
    %v3066 = vmul.f32 %v2527, %v2897
    %v3067 = vmul.f32 %v2529, %v2898
    %v3068 = vmul.f32 %v2531, %v2899
    %v3069 = vmul.f32 %v2533, %v2900
    %v3070 = vmul.f32 %v2535, %v2901
    %v3071 = vmul.f32 %v2537, %v2902
    %v3072 = vmul.f32 %v2539, %v2903
    %v3073 = vmul.f32 %v2541, %v2904
    %v3074 = vmul.f32 %v2543, %v2905
    %v3075 = vmul.f32 %v2545, %v2906
    %v3076 = vmul.f32 %v2547, %v2907
    %v3077 = vmul.f32 %v2549, %v2908
    %v3078 = vmul.f32 %v2551, %v2909
    %v3079 = vmul.f32 %v2553, %v2910
    %v3080 = vmul.f32 %v2555, %v2911
    %v3081 = vsel %vm2976, %v3049, 0.0
    %v3082 = vsel %vm2976, %v3050, 0.0
    %v3083 = vadd.f32 %v3081, %v3082
    %v3084 = vsel %vm2976, %v3051, 0.0
    %v3085 = vadd.f32 %v3083, %v3084
    %v3086 = vsel %vm2976, %v3052, 0.0
    %v3087 = vadd.f32 %v3085, %v3086
    %v3088 = vsel %vm2976, %v3053, 0.0
    %v3089 = vadd.f32 %v3087, %v3088
    %v3090 = vsel %vm2976, %v3054, 0.0
    %v3091 = vadd.f32 %v3089, %v3090
    %v3092 = vsel %vm2976, %v3055, 0.0
    %v3093 = vadd.f32 %v3091, %v3092
    %v3094 = vsel %vm2976, %v3056, 0.0
    %v3095 = vadd.f32 %v3093, %v3094
    %v3096 = vsel %vm2976, %v3057, 0.0
    %v3097 = vadd.f32 %v3095, %v3096
    %v3098 = vsel %vm2976, %v3058, 0.0
    %v3099 = vadd.f32 %v3097, %v3098
    %v3100 = vsel %vm2976, %v3059, 0.0
    %v3101 = vadd.f32 %v3099, %v3100
    %v3102 = vsel %vm2976, %v3060, 0.0
    %v3103 = vadd.f32 %v3101, %v3102
    %v3104 = vsel %vm2976, %v3061, 0.0
    %v3105 = vadd.f32 %v3103, %v3104
    %v3106 = vsel %vm2976, %v3062, 0.0
    %v3107 = vadd.f32 %v3105, %v3106
    %v3108 = vsel %vm2976, %v3063, 0.0
    %v3109 = vadd.f32 %v3107, %v3108
    %v3110 = vsel %vm2976, %v3064, 0.0
    %v3111 = vadd.f32 %v3109, %v3110
    %v3112 = vsel %vm2976, %v3065, 0.0
    %v3113 = vadd.f32 %v3111, %v3112
    %v3114 = vsel %vm2976, %v3066, 0.0
    %v3115 = vadd.f32 %v3113, %v3114
    %v3116 = vsel %vm2976, %v3067, 0.0
    %v3117 = vadd.f32 %v3115, %v3116
    %v3118 = vsel %vm2976, %v3068, 0.0
    %v3119 = vadd.f32 %v3117, %v3118
    %v3120 = vsel %vm2976, %v3069, 0.0
    %v3121 = vadd.f32 %v3119, %v3120
    %v3122 = vsel %vm2976, %v3070, 0.0
    %v3123 = vadd.f32 %v3121, %v3122
    %v3124 = vsel %vm2976, %v3071, 0.0
    %v3125 = vadd.f32 %v3123, %v3124
    %v3126 = vsel %vm2976, %v3072, 0.0
    %v3127 = vadd.f32 %v3125, %v3126
    %v3128 = vsel %vm2976, %v3073, 0.0
    %v3129 = vadd.f32 %v3127, %v3128
    %v3130 = vsel %vm2976, %v3074, 0.0
    %v3131 = vadd.f32 %v3129, %v3130
    %v3132 = vsel %vm2976, %v3075, 0.0
    %v3133 = vadd.f32 %v3131, %v3132
    %v3134 = vsel %vm2976, %v3076, 0.0
    %v3135 = vadd.f32 %v3133, %v3134
    %v3136 = vsel %vm2976, %v3077, 0.0
    %v3137 = vadd.f32 %v3135, %v3136
    %v3138 = vsel %vm2976, %v3078, 0.0
    %v3139 = vadd.f32 %v3137, %v3138
    %v3140 = vsel %vm2976, %v3079, 0.0
    %v3141 = vadd.f32 %v3139, %v3140
    %v3142 = vsel %vm2976, %v3080, 0.0
    %v3143 = vadd.f32 %v3141, %v3142
    %3144 = vadd.xlane.f32.xlu0 %v3143
    %v3145 = vpop.xlane.xlu0 %3144
    %v3146 = vrot.slane %v3145, 4
    %v3147 = vadd.f32 %v3145, %v3146
    %v3148 = vrot.slane %v3147, 2
    %v3149 = vadd.f32 %v3147, %v3148
    %v3150 = vrot.slane %v3149, 1
    %v3151 = vadd.f32 %v3149, %v3150
    %s3152 = vtos %v3151
    %v3153 = vmul.f32 %v2589, %v2366
    %v3154 = vmul.f32 %v2591, %v2369
    %v3155 = vmul.f32 %v2593, %v2372
    %v3156 = vmul.f32 %v2595, %v2375
    %v3157 = vmul.f32 %v2597, %v2378
    %v3158 = vmul.f32 %v2599, %v2381
    %v3159 = vmul.f32 %v2601, %v2384
    %v3160 = vmul.f32 %v2603, %v2387
    %v3161 = vmul.f32 %v2605, %v2390
    %v3162 = vmul.f32 %v2607, %v2393
    %v3163 = vmul.f32 %v2609, %v2396
    %v3164 = vmul.f32 %v2611, %v2399
    %v3165 = vmul.f32 %v2613, %v2402
    %v3166 = vmul.f32 %v2615, %v2405
    %v3167 = vmul.f32 %v2617, %v2408
    %v3168 = vmul.f32 %v2619, %v2411
    %v3169 = vmul.f32 %v2621, %v2414
    %v3170 = vmul.f32 %v2623, %v2417
    %v3171 = vmul.f32 %v2625, %v2420
    %v3172 = vmul.f32 %v2627, %v2423
    %v3173 = vmul.f32 %v2629, %v2426
    %v3174 = vmul.f32 %v2631, %v2429
    %v3175 = vmul.f32 %v2633, %v2432
    %v3176 = vmul.f32 %v2635, %v2435
    %v3177 = vmul.f32 %v2637, %v2438
    %v3178 = vmul.f32 %v2639, %v2441
    %v3179 = vmul.f32 %v2641, %v2444
    %v3180 = vmul.f32 %v2643, %v2447
    %v3181 = vmul.f32 %v2645, %v2450
    %v3182 = vmul.f32 %v2647, %v2453
    %v3183 = vmul.f32 %v2649, %v2456
    %v3184 = vmul.f32 %v2651, %v2459
    %v3185 = vmul.f32 %v3153, %v2880
    %v3186 = vmul.f32 %v3154, %v2881
    %v3187 = vmul.f32 %v3155, %v2882
    %v3188 = vmul.f32 %v3156, %v2883
    %v3189 = vmul.f32 %v3157, %v2884
    %v3190 = vmul.f32 %v3158, %v2885
    %v3191 = vmul.f32 %v3159, %v2886
    %v3192 = vmul.f32 %v3160, %v2887
    %v3193 = vmul.f32 %v3161, %v2888
    %v3194 = vmul.f32 %v3162, %v2889
    %v3195 = vmul.f32 %v3163, %v2890
    %v3196 = vmul.f32 %v3164, %v2891
    %v3197 = vmul.f32 %v3165, %v2892
    %v3198 = vmul.f32 %v3166, %v2893
    %v3199 = vmul.f32 %v3167, %v2894
    %v3200 = vmul.f32 %v3168, %v2895
    %v3201 = vmul.f32 %v3169, %v2896
    %v3202 = vmul.f32 %v3170, %v2897
    %v3203 = vmul.f32 %v3171, %v2898
    %v3204 = vmul.f32 %v3172, %v2899
    %v3205 = vmul.f32 %v3173, %v2900
    %v3206 = vmul.f32 %v3174, %v2901
    %v3207 = vmul.f32 %v3175, %v2902
    %v3208 = vmul.f32 %v3176, %v2903
    %v3209 = vmul.f32 %v3177, %v2904
    %v3210 = vmul.f32 %v3178, %v2905
    %v3211 = vmul.f32 %v3179, %v2906
    %v3212 = vmul.f32 %v3180, %v2907
    %v3213 = vmul.f32 %v3181, %v2908
    %v3214 = vmul.f32 %v3182, %v2909
    %v3215 = vmul.f32 %v3183, %v2910
    %v3216 = vmul.f32 %v3184, %v2911
    %v3217 = vsel %vm2976, %v3185, 0.0
    %v3218 = vsel %vm2976, %v3186, 0.0
    %v3219 = vadd.f32 %v3217, %v3218
    %v3220 = vsel %vm2976, %v3187, 0.0
    %v3221 = vadd.f32 %v3219, %v3220
    %v3222 = vsel %vm2976, %v3188, 0.0
    %v3223 = vadd.f32 %v3221, %v3222
    %v3224 = vsel %vm2976, %v3189, 0.0
    %v3225 = vadd.f32 %v3223, %v3224
    %v3226 = vsel %vm2976, %v3190, 0.0
    %v3227 = vadd.f32 %v3225, %v3226
    %v3228 = vsel %vm2976, %v3191, 0.0
    %v3229 = vadd.f32 %v3227, %v3228
    %v3230 = vsel %vm2976, %v3192, 0.0
    %v3231 = vadd.f32 %v3229, %v3230
    %v3232 = vsel %vm2976, %v3193, 0.0
    %v3233 = vadd.f32 %v3231, %v3232
    %v3234 = vsel %vm2976, %v3194, 0.0
    %v3235 = vadd.f32 %v3233, %v3234
    %v3236 = vsel %vm2976, %v3195, 0.0
    %v3237 = vadd.f32 %v3235, %v3236
    %v3238 = vsel %vm2976, %v3196, 0.0
    %v3239 = vadd.f32 %v3237, %v3238
    %v3240 = vsel %vm2976, %v3197, 0.0
    %v3241 = vadd.f32 %v3239, %v3240
    %v3242 = vsel %vm2976, %v3198, 0.0
    %v3243 = vadd.f32 %v3241, %v3242
    %v3244 = vsel %vm2976, %v3199, 0.0
    %v3245 = vadd.f32 %v3243, %v3244
    %v3246 = vsel %vm2976, %v3200, 0.0
    %v3247 = vadd.f32 %v3245, %v3246
    %v3248 = vsel %vm2976, %v3201, 0.0
    %v3249 = vadd.f32 %v3247, %v3248
    %v3250 = vsel %vm2976, %v3202, 0.0
    %v3251 = vadd.f32 %v3249, %v3250
    %v3252 = vsel %vm2976, %v3203, 0.0
    %v3253 = vadd.f32 %v3251, %v3252
    %v3254 = vsel %vm2976, %v3204, 0.0
    %v3255 = vadd.f32 %v3253, %v3254
    %v3256 = vsel %vm2976, %v3205, 0.0
    %v3257 = vadd.f32 %v3255, %v3256
    %v3258 = vsel %vm2976, %v3206, 0.0
    %v3259 = vadd.f32 %v3257, %v3258
    %v3260 = vsel %vm2976, %v3207, 0.0
    %v3261 = vadd.f32 %v3259, %v3260
    %v3262 = vsel %vm2976, %v3208, 0.0
    %v3263 = vadd.f32 %v3261, %v3262
    %v3264 = vsel %vm2976, %v3209, 0.0
    %v3265 = vadd.f32 %v3263, %v3264
    %v3266 = vsel %vm2976, %v3210, 0.0
    %v3267 = vadd.f32 %v3265, %v3266
    %v3268 = vsel %vm2976, %v3211, 0.0
    %v3269 = vadd.f32 %v3267, %v3268
    %v3270 = vsel %vm2976, %v3212, 0.0
    %v3271 = vadd.f32 %v3269, %v3270
    %v3272 = vsel %vm2976, %v3213, 0.0
    %v3273 = vadd.f32 %v3271, %v3272
    %v3274 = vsel %vm2976, %v3214, 0.0
    %v3275 = vadd.f32 %v3273, %v3274
    %v3276 = vsel %vm2976, %v3215, 0.0
    %v3277 = vadd.f32 %v3275, %v3276
    %v3278 = vsel %vm2976, %v3216, 0.0
    %v3279 = vadd.f32 %v3277, %v3278
    %3280 = vadd.xlane.f32.xlu0 %v3279
    %v3281 = vpop.xlane.xlu0 %3280
    %v3282 = vrot.slane %v3281, 4
    %v3283 = vadd.f32 %v3281, %v3282
    %v3284 = vrot.slane %v3283, 2
    %v3285 = vadd.f32 %v3283, %v3284
    %v3286 = vrot.slane %v3285, 1
    %v3287 = vadd.f32 %v3285, %v3286
    %s3288 = vtos %v3287
    %v3289 = vmul.f32 %v2366, %v2880
    %v3290 = vmul.f32 %v2369, %v2881
    %v3291 = vmul.f32 %v2372, %v2882
    %v3292 = vmul.f32 %v2375, %v2883
    %v3293 = vmul.f32 %v2378, %v2884
    %v3294 = vmul.f32 %v2381, %v2885
    %v3295 = vmul.f32 %v2384, %v2886
    %v3296 = vmul.f32 %v2387, %v2887
    %v3297 = vmul.f32 %v2390, %v2888
    %v3298 = vmul.f32 %v2393, %v2889
    %v3299 = vmul.f32 %v2396, %v2890
    %v3300 = vmul.f32 %v2399, %v2891
    %v3301 = vmul.f32 %v2402, %v2892
    %v3302 = vmul.f32 %v2405, %v2893
    %v3303 = vmul.f32 %v2408, %v2894
    %v3304 = vmul.f32 %v2411, %v2895
    %v3305 = vmul.f32 %v2414, %v2896
    %v3306 = vmul.f32 %v2417, %v2897
    %v3307 = vmul.f32 %v2420, %v2898
    %v3308 = vmul.f32 %v2423, %v2899
    %v3309 = vmul.f32 %v2426, %v2900
    %v3310 = vmul.f32 %v2429, %v2901
    %v3311 = vmul.f32 %v2432, %v2902
    %v3312 = vmul.f32 %v2435, %v2903
    %v3313 = vmul.f32 %v2438, %v2904
    %v3314 = vmul.f32 %v2441, %v2905
    %v3315 = vmul.f32 %v2444, %v2906
    %v3316 = vmul.f32 %v2447, %v2907
    %v3317 = vmul.f32 %v2450, %v2908
    %v3318 = vmul.f32 %v2453, %v2909
    %v3319 = vmul.f32 %v2456, %v2910
    %v3320 = vmul.f32 %v2459, %v2911
    %v3321 = vsel %vm2976, %v3289, 0.0
    %v3322 = vsel %vm2976, %v3290, 0.0
    %v3323 = vadd.f32 %v3321, %v3322
    %v3324 = vsel %vm2976, %v3291, 0.0
    %v3325 = vadd.f32 %v3323, %v3324
    %v3326 = vsel %vm2976, %v3292, 0.0
    %v3327 = vadd.f32 %v3325, %v3326
    %v3328 = vsel %vm2976, %v3293, 0.0
    %v3329 = vadd.f32 %v3327, %v3328
    %v3330 = vsel %vm2976, %v3294, 0.0
    %v3331 = vadd.f32 %v3329, %v3330
    %v3332 = vsel %vm2976, %v3295, 0.0
    %v3333 = vadd.f32 %v3331, %v3332
    %v3334 = vsel %vm2976, %v3296, 0.0
    %v3335 = vadd.f32 %v3333, %v3334
    %v3336 = vsel %vm2976, %v3297, 0.0
    %v3337 = vadd.f32 %v3335, %v3336
    %v3338 = vsel %vm2976, %v3298, 0.0
    %v3339 = vadd.f32 %v3337, %v3338
    %v3340 = vsel %vm2976, %v3299, 0.0
    %v3341 = vadd.f32 %v3339, %v3340
    %v3342 = vsel %vm2976, %v3300, 0.0
    %v3343 = vadd.f32 %v3341, %v3342
    %v3344 = vsel %vm2976, %v3301, 0.0
    %v3345 = vadd.f32 %v3343, %v3344
    %v3346 = vsel %vm2976, %v3302, 0.0
    %v3347 = vadd.f32 %v3345, %v3346
    %v3348 = vsel %vm2976, %v3303, 0.0
    %v3349 = vadd.f32 %v3347, %v3348
    %v3350 = vsel %vm2976, %v3304, 0.0
    %v3351 = vadd.f32 %v3349, %v3350
    %v3352 = vsel %vm2976, %v3305, 0.0
    %v3353 = vadd.f32 %v3351, %v3352
    %v3354 = vsel %vm2976, %v3306, 0.0
    %v3355 = vadd.f32 %v3353, %v3354
    %v3356 = vsel %vm2976, %v3307, 0.0
    %v3357 = vadd.f32 %v3355, %v3356
    %v3358 = vsel %vm2976, %v3308, 0.0
    %v3359 = vadd.f32 %v3357, %v3358
    %v3360 = vsel %vm2976, %v3309, 0.0
    %v3361 = vadd.f32 %v3359, %v3360
    %v3362 = vsel %vm2976, %v3310, 0.0
    %v3363 = vadd.f32 %v3361, %v3362
    %v3364 = vsel %vm2976, %v3311, 0.0
    %v3365 = vadd.f32 %v3363, %v3364
    %v3366 = vsel %vm2976, %v3312, 0.0
    %v3367 = vadd.f32 %v3365, %v3366
    %v3368 = vsel %vm2976, %v3313, 0.0
    %v3369 = vadd.f32 %v3367, %v3368
    %v3370 = vsel %vm2976, %v3314, 0.0
    %v3371 = vadd.f32 %v3369, %v3370
    %v3372 = vsel %vm2976, %v3315, 0.0
    %v3373 = vadd.f32 %v3371, %v3372
    %v3374 = vsel %vm2976, %v3316, 0.0
    %v3375 = vadd.f32 %v3373, %v3374
    %v3376 = vsel %vm2976, %v3317, 0.0
    %v3377 = vadd.f32 %v3375, %v3376
    %v3378 = vsel %vm2976, %v3318, 0.0
    %v3379 = vadd.f32 %v3377, %v3378
    %v3380 = vsel %vm2976, %v3319, 0.0
    %v3381 = vadd.f32 %v3379, %v3380
    %v3382 = vsel %vm2976, %v3320, 0.0
    %v3383 = vadd.f32 %v3381, %v3382
    %3384 = vadd.xlane.f32.xlu0 %v3383
    %v3385 = vpop.xlane.xlu0 %3384
    %v3386 = vrot.slane %v3385, 4
    %v3387 = vadd.f32 %v3385, %v3386
    %v3388 = vrot.slane %v3387, 2
    %v3389 = vadd.f32 %v3387, %v3388
    %v3390 = vrot.slane %v3389, 1
    %v3391 = vadd.f32 %v3389, %v3390
    %s3392 = vtos %v3391
    %v3393 = vld [vmem:[#allocation2] sm:$0x1]
    %vm3394 = vcmp.eq.s32.totalorder %v1137, 0
    %v3395 = vstv %s3048
    %v3396 = vsel %vm3394, %v3395, 0.0
    %vm3397 = vcmp.eq.s32.totalorder %v1137, 1
    %v3398 = vstv %s3152
    %v3399 = vsel %vm3397, %v3398, 0.0
    %v3400 = vadd.f32 %v3396, %v3399
    %vm3401 = vcmp.eq.s32.totalorder %v1137, 2
    %v3402 = vstv %s3288
    %v3403 = vsel %vm3401, %v3402, 0.0
    %v3404 = vadd.f32 %v3400, %v3403
    %vm3405 = vcmp.eq.s32.totalorder %v1137, 3
    %v3406 = vstv %s3392
    %v3407 = vsel %vm3405, %v3406, 0.0
    %v3408 = vadd.f32 %v3404, %v3407
    %v3409 = vadd.f32 %v3393, %v3408
    %3410 = vst [vmem:[#allocation2] sm:$0x1] %v3409
    // Predicated region
    $region34: #{tpu_custom_call.1} parent=1 // pred_check
      %p3411 = pneg %p72
    $region35: #{tpu_custom_call.1} parent=1 // pred_check_branch
      %3413 = sbr.rel (%p3411) target = $region37
    $region36: #{tpu_custom_call.1} parent=1 // pred_region
      %v3414 = vld [vmem:[#allocation2] sm:$0x1]
      %v3415 = vmul.f32 %v3414, 0.00390625
      %3416 = vst [vmem:[#allocation2] sm:$0x1] %v3415
    $region37: #{tpu_custom_call.1} parent=1 // pred_fallthru
      _
    // Predicated region
    $region38: #{tpu_custom_call.1} parent=1 // pred_check
      _
    $region39: #{tpu_custom_call.1} parent=1 // pred_check_branch
      %3418 = sbr.rel (0) target = $region41
    $region40: #{tpu_custom_call.1} parent=1 // pred_region
      %s3420 = ssub.s32 16, 16
      %3421 = vsyncadd [#allocation3], %s3420
      %s3423 = sshll.u32 [#allocation2], 4
      %s3424 = int_to_ptr.vmem [resolvable:$true] %s3423
      %3426 = dma.vmem_to_hbm [thread:$0]  %s3424, 16, %s7, [#allocation3]
    $region41: #{tpu_custom_call.1} parent=1 // pred_fallthru
      _
    // Predicated region
    $region42: #{tpu_custom_call.1} parent=1 // pred_check
      _
    $region43: #{tpu_custom_call.1} parent=1 // pred_check_branch
      %3428 = sbr.rel (0) target = $region45
    $region44: #{tpu_custom_call.1} parent=1 // pred_region
      %3429 = dma.done [#allocation3], 16
    $region45: #{tpu_custom_call.1} parent=1 // pred_fallthru
      _
    %3430 = vsyncpa [#allocation3], 1

</llo_original>
